<compile_context>
chip_gen: v5e
topology: v5e:2x2
jax: 0.10.0
libtpu: 0.0.40
codegen_flags: <defaults>
</compile_context>

<pallas_src>
import functools

import jax
import jax.numpy as jnp
from jax.experimental import pallas as pl
from jax.experimental.pallas import tpu as pltpu

EPS = 1e-5          # nn.GroupNorm default eps
EXPANSION = 4       # Bottleneck.expansion

_CPARAMS = pltpu.CompilerParams(
    dimension_semantics=("parallel",),      # shard samples across TCs (v7x)
    vmem_limit_bytes=48 * 1024 * 1024,      # fused per-sample working set is small
)


def _gn_act(acc, gamma, beta, *, relu):
    """Instance-norm (+optional ReLU) epilogue on an f32 accumulator (HW, C).

    Single-pass statistics (sum & sum-of-squares in one sweep) with the affine
    folded into a single scale/shift application; rsqrt runs on the EUP slot.
    """
    inv_n = 1.0 / acc.shape[0]
    s1 = jnp.sum(acc, axis=0, keepdims=True)
    s2 = jnp.sum(acc * acc, axis=0, keepdims=True)
    mean = s1 * inv_n
    var = jnp.maximum(s2 * inv_n - mean * mean, 0.0)
    scale = gamma * jax.lax.rsqrt(var + EPS)
    shift = beta - mean * scale
    y = acc * scale + shift
    if relu:
        y = jnp.maximum(y, 0.0)
    return y


def _bottleneck_kernel(*refs, H, W, P, has_proj):
    if has_proj:
        (x_ref, m_ref, w1_ref, g1_ref, b1_ref, w2_ref, g2_ref, b2_ref,
         w3_ref, g3_ref, b3_ref, ws_ref, gs_ref, bs_ref, o_ref, col_ref) = refs
    else:
        (x_ref, m_ref, w1_ref, g1_ref, b1_ref, w2_ref, g2_ref, b2_ref,
         w3_ref, g3_ref, b3_ref, o_ref, col_ref) = refs
        ws_ref = gs_ref = bs_ref = None

    HW = H * W
    x = x_ref[0]                                                    # (HW, Cin) bf16

    # ---- conv1 (1x1) + GN + ReLU ------------------------------------------
    a1 = jnp.dot(x, w1_ref[...], preferred_element_type=jnp.float32)
    h1 = _gn_act(a1, g1_ref[...], b1_ref[...], relu=True).astype(jnp.bfloat16)

    # ---- conv2 (3x3, pad=1, stride=1) --------------------------------------
    # kw is folded into K: build an (HW, 3P) slab [h1[h,w-1] | h1[h,w] | h1[h,w+1]]
    # (W-edge columns zeroed via precomputed masks), stored into a VMEM scratch
    # with W zero rows above/below acting as the pad=1 halo along H.  The conv
    # is then 3 matmuls (one per kh) with K = 3P, accumulated in f32.
    m_w = m_ref[0]                                                  # (HW, 1): 0 at w==0
    m_e = m_ref[1]                                                  # (HW, 1): 0 at w==W-1
    zrow = jnp.zeros((1, P), jnp.bfloat16)
    west = jnp.concatenate([zrow, h1[:HW - 1, :]], axis=0) * m_w    # h1[h, w-1]
    east = jnp.concatenate([h1[1:, :], zrow], axis=0) * m_e         # h1[h, w+1]
    slab = jnp.concatenate([west, h1, east], axis=-1)               # (HW, 3P) bf16

    zpad = jnp.zeros((W, 3 * P), jnp.bfloat16)
    col_ref[0:W, :] = zpad                                          # halo row h = -1
    col_ref[W + HW:2 * W + HW, :] = zpad                            # halo row h = H
    col_ref[W:W + HW, :] = slab

    acc2 = None
    for kh in range(3):                                             # static unroll
        lhs = col_ref[kh * W:kh * W + HW, :]                        # (HW, 3P)
        t = jnp.dot(lhs, w2_ref[kh], preferred_element_type=jnp.float32)
        acc2 = t if acc2 is None else acc2 + t
    h2 = _gn_act(acc2, g2_ref[...], b2_ref[...], relu=True).astype(jnp.bfloat16)

    # ---- shortcut (stays in VMEM/vregs, never round-trips HBM) -------------
    if has_proj:
        ar = jnp.dot(x, ws_ref[...], preferred_element_type=jnp.float32)
        res = _gn_act(ar, gs_ref[...], bs_ref[...], relu=False)
    else:
        res = x.astype(jnp.float32)                                 # identity (bf16 x)

    # ---- conv3 (1x1) + GN + residual add + ReLU ----------------------------
    a3 = jnp.dot(h2, w3_ref[...], preferred_element_type=jnp.float32)
    y = _gn_act(a3, g3_ref[...], b3_ref[...], relu=False) + res
    o_ref[0] = jnp.maximum(y, 0.0).astype(o_ref.dtype)


def bottleneck_forward_nhwc(params, x_nhwc, *, stride=1):
    """Fused Bottleneck forward, NHWC in / NHWC out (preferred when chaining)."""
    if stride != 1:
        # TODO(synk): stride > 1 (strided conv2 window + strided projection
        # shortcut) is not implemented in the fused kernel.
        raise NotImplementedError("Bottleneck Pallas kernel supports stride == 1 only")
    N, H, W, Cin = x_nhwc.shape
    P = params['w1'].shape[1]
    Cout = params['w3'].shape[1]
    has_proj = 'ws' in params
    HW = H * W

    x2d = x_nhwc.reshape(N, HW, Cin).astype(jnp.bfloat16)
    # W-edge masks for the kw-shifted slab, built once outside the kernel
    # (avoids vector integer mod on the VPU).
    wcol = jnp.arange(HW, dtype=jnp.int32) % W
    edge_mask = jnp.stack(
        [(wcol != 0).astype(jnp.bfloat16), (wcol != W - 1).astype(jnp.bfloat16)],
        axis=0).reshape(2, HW, 1)

    bcast2 = lambda n: (0, 0)
    bcast3 = lambda n: (0, 0, 0)
    in_specs = [
        pl.BlockSpec((1, HW, Cin), lambda n: (n, 0, 0)),
        pl.BlockSpec((2, HW, 1), bcast3),
        pl.BlockSpec((Cin, P), bcast2),
        pl.BlockSpec((1, P), bcast2),
        pl.BlockSpec((1, P), bcast2),
        pl.BlockSpec((3, 3 * P, P), bcast3),
        pl.BlockSpec((1, P), bcast2),
        pl.BlockSpec((1, P), bcast2),
        pl.BlockSpec((P, Cout), bcast2),
        pl.BlockSpec((1, Cout), bcast2),
        pl.BlockSpec((1, Cout), bcast2),
    ]
    args = [x2d, edge_mask, params['w1'], params['g1'], params['b1'],
            params['w2'], params['g2'], params['b2'],
            params['w3'], params['g3'], params['b3']]
    if has_proj:
        in_specs += [pl.BlockSpec((Cin, Cout), bcast2),
                     pl.BlockSpec((1, Cout), bcast2),
                     pl.BlockSpec((1, Cout), bcast2)]
        args += [params['ws'], params['gs'], params['bs']]

    kern = functools.partial(_bottleneck_kernel, H=H, W=W, P=P, has_proj=has_proj)
    out = pl.pallas_call(
        kern,
        out_shape=jax.ShapeDtypeStruct((N, HW, Cout), jnp.float32),
        grid=(N,),
        in_specs=in_specs,
        out_specs=pl.BlockSpec((1, HW, Cout), lambda n: (n, 0, 0)),
        scratch_shapes=[pltpu.VMEM(((H + 2) * W, 3 * P), jnp.bfloat16)],
        compiler_params=_CPARAMS,
    )(*args)
    return out.reshape(N, H, W, Cout)


def bottleneck_forward(params, x_nchw, *, stride=1):
    """PyTorch-interface wrapper (NCHW in / NCHW out).  When chaining blocks,
    prefer bottleneck_forward_nhwc and change layout once at the model boundary
    (avoids a full-HBM relayout per block)."""
    x_nhwc = jnp.transpose(x_nchw, (0, 2, 3, 1))
    out = bottleneck_forward_nhwc(params, x_nhwc, stride=stride)
    return jnp.transpose(out, (0, 3, 1, 2))


# --------------------------------- params ----------------------------------

def init_bottleneck_params(key, in_planes, planes, stride=1):
    out_planes = EXPANSION * planes
    ks = jax.random.split(key, 12)

    def gn_params(kg, kb, c):
        g = 1.0 + 0.1 * jax.random.normal(kg, (1, c), jnp.float32)
        b = 0.1 * jax.random.normal(kb, (1, c), jnp.float32)
        return g, b

    p = {}
    p['w1'] = (jax.random.normal(ks[0], (in_planes, planes), jnp.float32)
               / jnp.sqrt(in_planes)).astype(jnp.bfloat16)
    p['g1'], p['b1'] = gn_params(ks[1], ks[2], planes)
    # w2[kh, kw*P + ci, co] == W_torch[co, ci, kh, kw]   (kw folded into K)
    p['w2'] = (jax.random.normal(ks[3], (3, 3 * planes, planes), jnp.float32)
               / jnp.sqrt(9 * planes)).astype(jnp.bfloat16)
    p['g2'], p['b2'] = gn_params(ks[4], ks[5], planes)
    p['w3'] = (jax.random.normal(ks[6], (planes, out_planes), jnp.float32)
               / jnp.sqrt(planes)).astype(jnp.bfloat16)
    p['g3'], p['b3'] = gn_params(ks[7], ks[8], out_planes)
    if stride != 1 or in_planes != out_planes:       # projection shortcut
        p['ws'] = (jax.random.normal(ks[9], (in_planes, out_planes), jnp.float32)
                   / jnp.sqrt(in_planes)).astype(jnp.bfloat16)
        p['gs'], p['bs'] = gn_params(ks[10], ks[11], out_planes)
    return p


# ------------------------------- reference ----------------------------------

def _reference_forward(params, x_nchw):
    """Pure-JAX/XLA reference using the same dtype policy as the kernel."""
    N, Cin, H, W = x_nchw.shape
    P = params['w1'].shape[1]
    x = jnp.transpose(x_nchw, (0, 2, 3, 1)).astype(jnp.bfloat16).astype(jnp.float32)

    def gn(a, g, b):
        mean = jnp.mean(a, axis=(1, 2), keepdims=True)
        var = jnp.var(a, axis=(1, 2), keepdims=True)
        y = (a - mean) * jax.lax.rsqrt(var + EPS)
        return y * g.reshape(1, 1, 1, -1) + b.reshape(1, 1, 1, -1)

    h1 = jnp.einsum('nhwc,cp->nhwp', x, params['w1'].astype(jnp.float32))
    h1 = jnp.maximum(gn(h1, params['g1'], params['b1']), 0.0)
    h1 = h1.astype(jnp.bfloat16).astype(jnp.float32)

    w2 = params['w2'].astype(jnp.float32)
    h1p = jnp.pad(h1, ((0, 0), (1, 1), (1, 1), (0, 0)))
    acc = jnp.zeros((N, H, W, P), jnp.float32)
    for kh in range(3):
        for kw in range(3):
            wt = w2[kh, kw * P:(kw + 1) * P, :]
            win = h1p[:, kh:kh + H, kw:kw + W, :]
            acc = acc + jnp.einsum('nhwc,cp->nhwp', win, wt)
    h2 = jnp.maximum(gn(acc, params['g2'], params['b2']), 0.0)
    h2 = h2.astype(jnp.bfloat16).astype(jnp.float32)

    a3 = jnp.einsum('nhwc,cp->nhwp', h2, params['w3'].astype(jnp.float32))
    y = gn(a3, params['g3'], params['b3'])
    if 'ws' in params:
        ar = jnp.einsum('nhwc,cp->nhwp', x, params['ws'].astype(jnp.float32))
        res = gn(ar, params['gs'], params['bs'])
    else:
        res = x
    out = jnp.maximum(y + res, 0.0)
    return jnp.transpose(out, (0, 3, 1, 2))


if __name__ == "__main__":
    key = jax.random.PRNGKey(0)
    kp, kx = jax.random.split(key)
    in_planes, planes, stride = 32, 16, 1            # projection shortcut exercised
    params = init_bottleneck_params(kp, in_planes, planes, stride)
    x = jax.random.normal(kx, (2, in_planes, 16, 16), jnp.float32)

    fwd = jax.jit(functools.partial(bottleneck_forward, stride=stride))
    out = fwd(params, x)
    jax.block_until_ready(out)

    ref = _reference_forward(params, x)
    err = float(jnp.max(jnp.abs(out - ref)))

    assert out.shape == (2, EXPANSION * planes, 16, 16)
    assert out.dtype == jnp.float32
    assert bool(jnp.isfinite(out).all())
    assert err < 1e-1, f"max abs err vs reference: {err}"
    print("KERNEL_OK")
</pallas_src>

<mosaic_0001>
module attributes {stable_mosaic.version = 11 : i64} {
  func.func @_bottleneck_kernel(%arg0: i32, %arg1: memref<1x256x32xbf16, #tpu.memory_space<vmem>>, %arg2: memref<2x256x1xbf16, #tpu.memory_space<vmem>>, %arg3: memref<32x16xbf16, #tpu.memory_space<vmem>>, %arg4: memref<1x16xf32, #tpu.memory_space<vmem>>, %arg5: memref<1x16xf32, #tpu.memory_space<vmem>>, %arg6: memref<3x48x16xbf16, #tpu.memory_space<vmem>>, %arg7: memref<1x16xf32, #tpu.memory_space<vmem>>, %arg8: memref<1x16xf32, #tpu.memory_space<vmem>>, %arg9: memref<16x64xbf16, #tpu.memory_space<vmem>>, %arg10: memref<1x64xf32, #tpu.memory_space<vmem>>, %arg11: memref<1x64xf32, #tpu.memory_space<vmem>>, %arg12: memref<32x64xbf16, #tpu.memory_space<vmem>>, %arg13: memref<1x64xf32, #tpu.memory_space<vmem>>, %arg14: memref<1x64xf32, #tpu.memory_space<vmem>>, %arg15: memref<1x256x64xf32, #tpu.memory_space<vmem>>, %arg16: memref<288x48xbf16, #tpu.memory_space<vmem>>) attributes {dimension_semantics = [#tpu.dimension_semantics<parallel>], iteration_bounds = array<i64: 2>, scalar_prefetch = 0 : i64, scratch_operands = 1 : i64, tpu.core_type = #tpu.core_type<tc>, window_params = [{transform_indices = @transform_0, window_bounds = array<i64: 1, 256, 32>}, {pipeline_mode = #tpu.pipeline_mode<synchronous>, transform_indices = @transform_1, window_bounds = array<i64: 2, 256, 1>}, {pipeline_mode = #tpu.pipeline_mode<synchronous>, transform_indices = @transform_2, window_bounds = array<i64: 32, 16>}, {pipeline_mode = #tpu.pipeline_mode<synchronous>, transform_indices = @transform_3, window_bounds = array<i64: 1, 16>}, {pipeline_mode = #tpu.pipeline_mode<synchronous>, transform_indices = @transform_4, window_bounds = array<i64: 1, 16>}, {pipeline_mode = #tpu.pipeline_mode<synchronous>, transform_indices = @transform_5, window_bounds = array<i64: 3, 48, 16>}, {pipeline_mode = #tpu.pipeline_mode<synchronous>, transform_indices = @transform_6, window_bounds = array<i64: 1, 16>}, {pipeline_mode = #tpu.pipeline_mode<synchronous>, transform_indices = @transform_7, window_bounds = array<i64: 1, 16>}, {pipeline_mode = #tpu.pipeline_mode<synchronous>, transform_indices = @transform_8, window_bounds = array<i64: 16, 64>}, {pipeline_mode = #tpu.pipeline_mode<synchronous>, transform_indices = @transform_9, window_bounds = array<i64: 1, 64>}, {pipeline_mode = #tpu.pipeline_mode<synchronous>, transform_indices = @transform_10, window_bounds = array<i64: 1, 64>}, {pipeline_mode = #tpu.pipeline_mode<synchronous>, transform_indices = @transform_11, window_bounds = array<i64: 32, 64>}, {pipeline_mode = #tpu.pipeline_mode<synchronous>, transform_indices = @transform_12, window_bounds = array<i64: 1, 64>}, {pipeline_mode = #tpu.pipeline_mode<synchronous>, transform_indices = @transform_13, window_bounds = array<i64: 1, 64>}, {transform_indices = @transform_14, window_bounds = array<i64: 1, 256, 64>}]} {
    %c0 = arith.constant 0 : index
    %c0_0 = arith.constant 0 : index
    %c0_1 = arith.constant 0 : index
    %0 = vector.load %arg1[%c0, %c0_0, %c0_1] : memref<1x256x32xbf16, #tpu.memory_space<vmem>>, vector<1x256x32xbf16>
    %1 = vector.shape_cast %0 : vector<1x256x32xbf16> to vector<256x32xbf16>
    %c0_2 = arith.constant 0 : index
    %c0_3 = arith.constant 0 : index
    %2 = vector.load %arg3[%c0_2, %c0_3] : memref<32x16xbf16, #tpu.memory_space<vmem>>, vector<32x16xbf16>
    %cst = arith.constant dense<0.000000e+00> : vector<256x16xf32>
    %3 = tpu.matmul %1, %2, %cst {dimension_numbers = #tpu.dot_dimension_numbers<[1], [0], [0], [1], [0, 0, 1, 1], [], []>} : vector<256x32xbf16>, vector<32x16xbf16>, vector<256x16xf32> -> vector<256x16xf32>
    %c0_4 = arith.constant 0 : index
    %c0_5 = arith.constant 0 : index
    %4 = vector.load %arg4[%c0_4, %c0_5] : memref<1x16xf32, #tpu.memory_space<vmem>>, vector<1x16xf32>
    %c0_6 = arith.constant 0 : index
    %c0_7 = arith.constant 0 : index
    %5 = vector.load %arg5[%c0_6, %c0_7] : memref<1x16xf32, #tpu.memory_space<vmem>>, vector<1x16xf32>
    %cst_8 = arith.constant dense<0.000000e+00> : vector<16xf32>
    %6 = vector.multi_reduction <add>, %3, %cst_8 [0] : vector<256x16xf32> to vector<16xf32>
    %7 = vector.shape_cast %6 : vector<16xf32> to vector<1x16xf32>
    %8 = arith.mulf %3, %3 : vector<256x16xf32>
    %cst_9 = arith.constant dense<0.000000e+00> : vector<16xf32>
    %9 = vector.multi_reduction <add>, %8, %cst_9 [0] : vector<256x16xf32> to vector<16xf32>
    %10 = vector.shape_cast %9 : vector<16xf32> to vector<1x16xf32>
    %cst_10 = arith.constant 3.906250e-03 : f32
    %11 = vector.broadcast %cst_10 : f32 to vector<1x16xf32>
    %12 = arith.mulf %7, %11 : vector<1x16xf32>
    %cst_11 = arith.constant 3.906250e-03 : f32
    %13 = vector.broadcast %cst_11 : f32 to vector<1x16xf32>
    %14 = arith.mulf %10, %13 : vector<1x16xf32>
    %15 = arith.mulf %12, %12 : vector<1x16xf32>
    %16 = arith.subf %14, %15 : vector<1x16xf32>
    %cst_12 = arith.constant 0.000000e+00 : f32
    %17 = vector.broadcast %cst_12 : f32 to vector<1x16xf32>
    %18 = arith.maximumf %16, %17 : vector<1x16xf32>
    %cst_13 = arith.constant 9.99999974E-6 : f32
    %19 = vector.broadcast %cst_13 : f32 to vector<1x16xf32>
    %20 = arith.addf %18, %19 : vector<1x16xf32>
    %21 = math.rsqrt %20 : vector<1x16xf32>
    %22 = arith.mulf %4, %21 : vector<1x16xf32>
    %23 = arith.mulf %12, %22 : vector<1x16xf32>
    %24 = arith.subf %5, %23 : vector<1x16xf32>
    %25 = vector.broadcast %22 : vector<1x16xf32> to vector<256x16xf32>
    %26 = arith.mulf %3, %25 : vector<256x16xf32>
    %27 = vector.broadcast %24 : vector<1x16xf32> to vector<256x16xf32>
    %28 = arith.addf %26, %27 : vector<256x16xf32>
    %cst_14 = arith.constant 0.000000e+00 : f32
    %29 = vector.broadcast %cst_14 : f32 to vector<256x16xf32>
    %30 = arith.maximumf %28, %29 : vector<256x16xf32>
    %31 = arith.truncf %30 : vector<256x16xf32> to vector<256x16xbf16>
    %c0_15 = arith.constant 0 : index
    %c0_16 = arith.constant 0 : index
    %c0_17 = arith.constant 0 : index
    %32 = vector.load %arg2[%c0_15, %c0_16, %c0_17] : memref<2x256x1xbf16, #tpu.memory_space<vmem>>, vector<1x256x1xbf16>
    %33 = vector.shape_cast %32 : vector<1x256x1xbf16> to vector<256x1xbf16>
    %c1 = arith.constant 1 : index
    %c0_18 = arith.constant 0 : index
    %c0_19 = arith.constant 0 : index
    %34 = vector.load %arg2[%c1, %c0_18, %c0_19] : memref<2x256x1xbf16, #tpu.memory_space<vmem>>, vector<1x256x1xbf16>
    %35 = vector.shape_cast %34 : vector<1x256x1xbf16> to vector<256x1xbf16>
    %cst_20 = arith.constant 0.000000e+00 : bf16
    %36 = vector.broadcast %cst_20 : bf16 to vector<1x16xbf16>
    %37 = vector.extract_strided_slice %31 {offsets = [0, 0], sizes = [255, 16], strides = [1, 1]} : vector<256x16xbf16> to vector<255x16xbf16>
    %38 = tpu.concatenate %36, %37 in 0 : vector<1x16xbf16>, vector<255x16xbf16> -> vector<256x16xbf16>
    %39 = vector.broadcast %33 : vector<256x1xbf16> to vector<256x16xbf16>
    %40 = arith.mulf %38, %39 : vector<256x16xbf16>
    %41 = vector.extract_strided_slice %31 {offsets = [1, 0], sizes = [255, 16], strides = [1, 1]} : vector<256x16xbf16> to vector<255x16xbf16>
    %42 = tpu.concatenate %41, %36 in 0 : vector<255x16xbf16>, vector<1x16xbf16> -> vector<256x16xbf16>
    %43 = vector.broadcast %35 : vector<256x1xbf16> to vector<256x16xbf16>
    %44 = arith.mulf %42, %43 : vector<256x16xbf16>
    %45 = tpu.concatenate %40, %31, %44 in 1 : vector<256x16xbf16>, vector<256x16xbf16>, vector<256x16xbf16> -> vector<256x48xbf16>
    %cst_21 = arith.constant 0.000000e+00 : bf16
    %46 = vector.broadcast %cst_21 : bf16 to vector<16x48xbf16>
    %c0_22 = arith.constant 0 : index
    %c0_23 = arith.constant 0 : index
    %47 = vector.load %arg16[%c0_22, %c0_23] : memref<288x48xbf16, #tpu.memory_space<vmem>>, vector<16x48xbf16>
    tpu.vector_store %arg16[%c0_22, %c0_23], %46 {strides = array<i32>} : memref<288x48xbf16, #tpu.memory_space<vmem>>, vector<16x48xbf16>,
    %c272 = arith.constant 272 : index
    %c0_24 = arith.constant 0 : index
    %48 = vector.load %arg16[%c272, %c0_24] : memref<288x48xbf16, #tpu.memory_space<vmem>>, vector<16x48xbf16>
    tpu.vector_store %arg16[%c272, %c0_24], %46 {strides = array<i32>} : memref<288x48xbf16, #tpu.memory_space<vmem>>, vector<16x48xbf16>,
    %c16 = arith.constant 16 : index
    %c0_25 = arith.constant 0 : index
    %49 = vector.load %arg16[%c16, %c0_25] : memref<288x48xbf16, #tpu.memory_space<vmem>>, vector<256x48xbf16>
    tpu.vector_store %arg16[%c16, %c0_25], %45 {strides = array<i32>} : memref<288x48xbf16, #tpu.memory_space<vmem>>, vector<256x48xbf16>,
    %c0_26 = arith.constant 0 : index
    %c0_27 = arith.constant 0 : index
    %50 = vector.load %arg16[%c0_26, %c0_27] : memref<288x48xbf16, #tpu.memory_space<vmem>>, vector<256x48xbf16>
    %c0_28 = arith.constant 0 : index
    %c0_29 = arith.constant 0 : index
    %c0_30 = arith.constant 0 : index
    %51 = vector.load %arg6[%c0_28, %c0_29, %c0_30] : memref<3x48x16xbf16, #tpu.memory_space<vmem>>, vector<1x48x16xbf16>
    %52 = vector.shape_cast %51 : vector<1x48x16xbf16> to vector<48x16xbf16>
    %cst_31 = arith.constant dense<0.000000e+00> : vector<256x16xf32>
    %53 = tpu.matmul %50, %52, %cst_31 {dimension_numbers = #tpu.dot_dimension_numbers<[1], [0], [0], [1], [0, 0, 1, 1], [], []>} : vector<256x48xbf16>, vector<48x16xbf16>, vector<256x16xf32> -> vector<256x16xf32>
    %c16_32 = arith.constant 16 : index
    %c0_33 = arith.constant 0 : index
    %54 = vector.load %arg16[%c16_32, %c0_33] : memref<288x48xbf16, #tpu.memory_space<vmem>>, vector<256x48xbf16>
    %c1_34 = arith.constant 1 : index
    %c0_35 = arith.constant 0 : index
    %c0_36 = arith.constant 0 : index
    %55 = vector.load %arg6[%c1_34, %c0_35, %c0_36] : memref<3x48x16xbf16, #tpu.memory_space<vmem>>, vector<1x48x16xbf16>
    %56 = vector.shape_cast %55 : vector<1x48x16xbf16> to vector<48x16xbf16>
    %cst_37 = arith.constant dense<0.000000e+00> : vector<256x16xf32>
    %57 = tpu.matmul %54, %56, %cst_37 {dimension_numbers = #tpu.dot_dimension_numbers<[1], [0], [0], [1], [0, 0, 1, 1], [], []>} : vector<256x48xbf16>, vector<48x16xbf16>, vector<256x16xf32> -> vector<256x16xf32>
    %58 = arith.addf %53, %57 : vector<256x16xf32>
    %c32 = arith.constant 32 : index
    %c0_38 = arith.constant 0 : index
    %59 = vector.load %arg16[%c32, %c0_38] : memref<288x48xbf16, #tpu.memory_space<vmem>>, vector<256x48xbf16>
    %c2 = arith.constant 2 : index
    %c0_39 = arith.constant 0 : index
    %c0_40 = arith.constant 0 : index
    %60 = vector.load %arg6[%c2, %c0_39, %c0_40] : memref<3x48x16xbf16, #tpu.memory_space<vmem>>, vector<1x48x16xbf16>
    %61 = vector.shape_cast %60 : vector<1x48x16xbf16> to vector<48x16xbf16>
    %cst_41 = arith.constant dense<0.000000e+00> : vector<256x16xf32>
    %62 = tpu.matmul %59, %61, %cst_41 {dimension_numbers = #tpu.dot_dimension_numbers<[1], [0], [0], [1], [0, 0, 1, 1], [], []>} : vector<256x48xbf16>, vector<48x16xbf16>, vector<256x16xf32> -> vector<256x16xf32>
    %63 = arith.addf %58, %62 : vector<256x16xf32>
    %c0_42 = arith.constant 0 : index
    %c0_43 = arith.constant 0 : index
    %64 = vector.load %arg7[%c0_42, %c0_43] : memref<1x16xf32, #tpu.memory_space<vmem>>, vector<1x16xf32>
    %c0_44 = arith.constant 0 : index
    %c0_45 = arith.constant 0 : index
    %65 = vector.load %arg8[%c0_44, %c0_45] : memref<1x16xf32, #tpu.memory_space<vmem>>, vector<1x16xf32>
    %cst_46 = arith.constant dense<0.000000e+00> : vector<16xf32>
    %66 = vector.multi_reduction <add>, %63, %cst_46 [0] : vector<256x16xf32> to vector<16xf32>
    %67 = vector.shape_cast %66 : vector<16xf32> to vector<1x16xf32>
    %68 = arith.mulf %63, %63 : vector<256x16xf32>
    %cst_47 = arith.constant dense<0.000000e+00> : vector<16xf32>
    %69 = vector.multi_reduction <add>, %68, %cst_47 [0] : vector<256x16xf32> to vector<16xf32>
    %70 = vector.shape_cast %69 : vector<16xf32> to vector<1x16xf32>
    %cst_48 = arith.constant 3.906250e-03 : f32
    %71 = vector.broadcast %cst_48 : f32 to vector<1x16xf32>
    %72 = arith.mulf %67, %71 : vector<1x16xf32>
    %cst_49 = arith.constant 3.906250e-03 : f32
    %73 = vector.broadcast %cst_49 : f32 to vector<1x16xf32>
    %74 = arith.mulf %70, %73 : vector<1x16xf32>
    %75 = arith.mulf %72, %72 : vector<1x16xf32>
    %76 = arith.subf %74, %75 : vector<1x16xf32>
    %cst_50 = arith.constant 0.000000e+00 : f32
    %77 = vector.broadcast %cst_50 : f32 to vector<1x16xf32>
    %78 = arith.maximumf %76, %77 : vector<1x16xf32>
    %cst_51 = arith.constant 9.99999974E-6 : f32
    %79 = vector.broadcast %cst_51 : f32 to vector<1x16xf32>
    %80 = arith.addf %78, %79 : vector<1x16xf32>
    %81 = math.rsqrt %80 : vector<1x16xf32>
    %82 = arith.mulf %64, %81 : vector<1x16xf32>
    %83 = arith.mulf %72, %82 : vector<1x16xf32>
    %84 = arith.subf %65, %83 : vector<1x16xf32>
    %85 = vector.broadcast %82 : vector<1x16xf32> to vector<256x16xf32>
    %86 = arith.mulf %63, %85 : vector<256x16xf32>
    %87 = vector.broadcast %84 : vector<1x16xf32> to vector<256x16xf32>
    %88 = arith.addf %86, %87 : vector<256x16xf32>
    %cst_52 = arith.constant 0.000000e+00 : f32
    %89 = vector.broadcast %cst_52 : f32 to vector<256x16xf32>
    %90 = arith.maximumf %88, %89 : vector<256x16xf32>
    %91 = arith.truncf %90 : vector<256x16xf32> to vector<256x16xbf16>
    %c0_53 = arith.constant 0 : index
    %c0_54 = arith.constant 0 : index
    %92 = vector.load %arg12[%c0_53, %c0_54] : memref<32x64xbf16, #tpu.memory_space<vmem>>, vector<32x64xbf16>
    %cst_55 = arith.constant dense<0.000000e+00> : vector<256x64xf32>
    %93 = tpu.matmul %1, %92, %cst_55 {dimension_numbers = #tpu.dot_dimension_numbers<[1], [0], [0], [1], [0, 0, 1, 1], [], []>} : vector<256x32xbf16>, vector<32x64xbf16>, vector<256x64xf32> -> vector<256x64xf32>
    %c0_56 = arith.constant 0 : index
    %c0_57 = arith.constant 0 : index
    %94 = vector.load %arg13[%c0_56, %c0_57] : memref<1x64xf32, #tpu.memory_space<vmem>>, vector<1x64xf32>
    %c0_58 = arith.constant 0 : index
    %c0_59 = arith.constant 0 : index
    %95 = vector.load %arg14[%c0_58, %c0_59] : memref<1x64xf32, #tpu.memory_space<vmem>>, vector<1x64xf32>
    %cst_60 = arith.constant dense<0.000000e+00> : vector<64xf32>
    %96 = vector.multi_reduction <add>, %93, %cst_60 [0] : vector<256x64xf32> to vector<64xf32>
    %97 = vector.shape_cast %96 : vector<64xf32> to vector<1x64xf32>
    %98 = arith.mulf %93, %93 : vector<256x64xf32>
    %cst_61 = arith.constant dense<0.000000e+00> : vector<64xf32>
    %99 = vector.multi_reduction <add>, %98, %cst_61 [0] : vector<256x64xf32> to vector<64xf32>
    %100 = vector.shape_cast %99 : vector<64xf32> to vector<1x64xf32>
    %cst_62 = arith.constant 3.906250e-03 : f32
    %101 = vector.broadcast %cst_62 : f32 to vector<1x64xf32>
    %102 = arith.mulf %97, %101 : vector<1x64xf32>
    %cst_63 = arith.constant 3.906250e-03 : f32
    %103 = vector.broadcast %cst_63 : f32 to vector<1x64xf32>
    %104 = arith.mulf %100, %103 : vector<1x64xf32>
    %105 = arith.mulf %102, %102 : vector<1x64xf32>
    %106 = arith.subf %104, %105 : vector<1x64xf32>
    %cst_64 = arith.constant 0.000000e+00 : f32
    %107 = vector.broadcast %cst_64 : f32 to vector<1x64xf32>
    %108 = arith.maximumf %106, %107 : vector<1x64xf32>
    %cst_65 = arith.constant 9.99999974E-6 : f32
    %109 = vector.broadcast %cst_65 : f32 to vector<1x64xf32>
    %110 = arith.addf %108, %109 : vector<1x64xf32>
    %111 = math.rsqrt %110 : vector<1x64xf32>
    %112 = arith.mulf %94, %111 : vector<1x64xf32>
    %113 = arith.mulf %102, %112 : vector<1x64xf32>
    %114 = arith.subf %95, %113 : vector<1x64xf32>
    %115 = vector.broadcast %112 : vector<1x64xf32> to vector<256x64xf32>
    %116 = arith.mulf %93, %115 : vector<256x64xf32>
    %117 = vector.broadcast %114 : vector<1x64xf32> to vector<256x64xf32>
    %118 = arith.addf %116, %117 : vector<256x64xf32>
    %c0_66 = arith.constant 0 : index
    %c0_67 = arith.constant 0 : index
    %119 = vector.load %arg9[%c0_66, %c0_67] : memref<16x64xbf16, #tpu.memory_space<vmem>>, vector<16x64xbf16>
    %cst_68 = arith.constant dense<0.000000e+00> : vector<256x64xf32>
    %120 = tpu.matmul %91, %119, %cst_68 {dimension_numbers = #tpu.dot_dimension_numbers<[1], [0], [0], [1], [0, 0, 1, 1], [], []>} : vector<256x16xbf16>, vector<16x64xbf16>, vector<256x64xf32> -> vector<256x64xf32>
    %c0_69 = arith.constant 0 : index
    %c0_70 = arith.constant 0 : index
    %121 = vector.load %arg10[%c0_69, %c0_70] : memref<1x64xf32, #tpu.memory_space<vmem>>, vector<1x64xf32>
    %c0_71 = arith.constant 0 : index
    %c0_72 = arith.constant 0 : index
    %122 = vector.load %arg11[%c0_71, %c0_72] : memref<1x64xf32, #tpu.memory_space<vmem>>, vector<1x64xf32>
    %cst_73 = arith.constant dense<0.000000e+00> : vector<64xf32>
    %123 = vector.multi_reduction <add>, %120, %cst_73 [0] : vector<256x64xf32> to vector<64xf32>
    %124 = vector.shape_cast %123 : vector<64xf32> to vector<1x64xf32>
    %125 = arith.mulf %120, %120 : vector<256x64xf32>
    %cst_74 = arith.constant dense<0.000000e+00> : vector<64xf32>
    %126 = vector.multi_reduction <add>, %125, %cst_74 [0] : vector<256x64xf32> to vector<64xf32>
    %127 = vector.shape_cast %126 : vector<64xf32> to vector<1x64xf32>
    %cst_75 = arith.constant 3.906250e-03 : f32
    %128 = vector.broadcast %cst_75 : f32 to vector<1x64xf32>
    %129 = arith.mulf %124, %128 : vector<1x64xf32>
    %cst_76 = arith.constant 3.906250e-03 : f32
    %130 = vector.broadcast %cst_76 : f32 to vector<1x64xf32>
    %131 = arith.mulf %127, %130 : vector<1x64xf32>
    %132 = arith.mulf %129, %129 : vector<1x64xf32>
    %133 = arith.subf %131, %132 : vector<1x64xf32>
    %cst_77 = arith.constant 0.000000e+00 : f32
    %134 = vector.broadcast %cst_77 : f32 to vector<1x64xf32>
    %135 = arith.maximumf %133, %134 : vector<1x64xf32>
    %cst_78 = arith.constant 9.99999974E-6 : f32
    %136 = vector.broadcast %cst_78 : f32 to vector<1x64xf32>
    %137 = arith.addf %135, %136 : vector<1x64xf32>
    %138 = math.rsqrt %137 : vector<1x64xf32>
    %139 = arith.mulf %121, %138 : vector<1x64xf32>
    %140 = arith.mulf %129, %139 : vector<1x64xf32>
    %141 = arith.subf %122, %140 : vector<1x64xf32>
    %142 = vector.broadcast %139 : vector<1x64xf32> to vector<256x64xf32>
    %143 = arith.mulf %120, %142 : vector<256x64xf32>
    %144 = vector.broadcast %141 : vector<1x64xf32> to vector<256x64xf32>
    %145 = arith.addf %143, %144 : vector<256x64xf32>
    %146 = arith.addf %145, %118 : vector<256x64xf32>
    %cst_79 = arith.constant 0.000000e+00 : f32
    %147 = vector.broadcast %cst_79 : f32 to vector<256x64xf32>
    %148 = arith.maximumf %146, %147 : vector<256x64xf32>
    %c0_80 = arith.constant 0 : index
    %c0_81 = arith.constant 0 : index
    %c0_82 = arith.constant 0 : index
    %149 = vector.load %arg15[%c0_80, %c0_81, %c0_82] : memref<1x256x64xf32, #tpu.memory_space<vmem>>, vector<1x256x64xf32>
    %150 = vector.shape_cast %149 : vector<1x256x64xf32> to vector<256x64xf32>
    %151 = vector.shape_cast %148 : vector<256x64xf32> to vector<1x256x64xf32>
    tpu.vector_store %arg15[%c0_80, %c0_81, %c0_82], %151 {strides = array<i32>} : memref<1x256x64xf32, #tpu.memory_space<vmem>>, vector<1x256x64xf32>,
    return
  }
  func.func @transform_0(%arg0: i32) -> (i32, i32, i32) {
    %c0_i32 = arith.constant 0 : i32
    %c0_i32_0 = arith.constant 0 : i32
    %c0_i32_1 = arith.constant 0 : i32
    return %arg0, %c0_i32, %c0_i32_0 : i32, i32, i32
  }
  func.func @transform_1(%arg0: i32) -> (i32, i32, i32) {
    %c0_i32 = arith.constant 0 : i32
    %c0_i32_0 = arith.constant 0 : i32
    %c0_i32_1 = arith.constant 0 : i32
    %c0_i32_2 = arith.constant 0 : i32
    return %c0_i32, %c0_i32_0, %c0_i32_1 : i32, i32, i32
  }
  func.func @transform_2(%arg0: i32) -> (i32, i32) {
    %c0_i32 = arith.constant 0 : i32
    %c0_i32_0 = arith.constant 0 : i32
    %c0_i32_1 = arith.constant 0 : i32
    return %c0_i32, %c0_i32_0 : i32, i32
  }
  func.func @transform_3(%arg0: i32) -> (i32, i32) {
    %c0_i32 = arith.constant 0 : i32
    %c0_i32_0 = arith.constant 0 : i32
    %c0_i32_1 = arith.constant 0 : i32
    return %c0_i32, %c0_i32_0 : i32, i32
  }
  func.func @transform_4(%arg0: i32) -> (i32, i32) {
    %c0_i32 = arith.constant 0 : i32
    %c0_i32_0 = arith.constant 0 : i32
    %c0_i32_1 = arith.constant 0 : i32
    return %c0_i32, %c0_i32_0 : i32, i32
  }
  func.func @transform_5(%arg0: i32) -> (i32, i32, i32) {
    %c0_i32 = arith.constant 0 : i32
    %c0_i32_0 = arith.constant 0 : i32
    %c0_i32_1 = arith.constant 0 : i32
    %c0_i32_2 = arith.constant 0 : i32
    return %c0_i32, %c0_i32_0, %c0_i32_1 : i32, i32, i32
  }
  func.func @transform_6(%arg0: i32) -> (i32, i32) {
    %c0_i32 = arith.constant 0 : i32
    %c0_i32_0 = arith.constant 0 : i32
    %c0_i32_1 = arith.constant 0 : i32
    return %c0_i32, %c0_i32_0 : i32, i32
  }
  func.func @transform_7(%arg0: i32) -> (i32, i32) {
    %c0_i32 = arith.constant 0 : i32
    %c0_i32_0 = arith.constant 0 : i32
    %c0_i32_1 = arith.constant 0 : i32
    return %c0_i32, %c0_i32_0 : i32, i32
  }
  func.func @transform_8(%arg0: i32) -> (i32, i32) {
    %c0_i32 = arith.constant 0 : i32
    %c0_i32_0 = arith.constant 0 : i32
    %c0_i32_1 = arith.constant 0 : i32
    return %c0_i32, %c0_i32_0 : i32, i32
  }
  func.func @transform_9(%arg0: i32) -> (i32, i32) {
    %c0_i32 = arith.constant 0 : i32
    %c0_i32_0 = arith.constant 0 : i32
    %c0_i32_1 = arith.constant 0 : i32
    return %c0_i32, %c0_i32_0 : i32, i32
  }
  func.func @transform_10(%arg0: i32) -> (i32, i32) {
    %c0_i32 = arith.constant 0 : i32
    %c0_i32_0 = arith.constant 0 : i32
    %c0_i32_1 = arith.constant 0 : i32
    return %c0_i32, %c0_i32_0 : i32, i32
  }
  func.func @transform_11(%arg0: i32) -> (i32, i32) {
    %c0_i32 = arith.constant 0 : i32
    %c0_i32_0 = arith.constant 0 : i32
    %c0_i32_1 = arith.constant 0 : i32
    return %c0_i32, %c0_i32_0 : i32, i32
  }
  func.func @transform_12(%arg0: i32) -> (i32, i32) {
    %c0_i32 = arith.constant 0 : i32
    %c0_i32_0 = arith.constant 0 : i32
    %c0_i32_1 = arith.constant 0 : i32
    return %c0_i32, %c0_i32_0 : i32, i32
  }
  func.func @transform_13(%arg0: i32) -> (i32, i32) {
    %c0_i32 = arith.constant 0 : i32
    %c0_i32_0 = arith.constant 0 : i32
    %c0_i32_1 = arith.constant 0 : i32
    return %c0_i32, %c0_i32_0 : i32, i32
  }
  func.func @transform_14(%arg0: i32) -> (i32, i32, i32) {
    %c0_i32 = arith.constant 0 : i32
    %c0_i32_0 = arith.constant 0 : i32
    %c0_i32_1 = arith.constant 0 : i32
    return %arg0, %c0_i32, %c0_i32_0 : i32, i32, i32
  }
}

</mosaic_0001>

<llo_original>
// kernel: bottleneck_forward.1
$region0: #{bottleneck_forward.1}
  #allocation0 [shape = 'u32[]', space=smem, size = 0x4, offset = 0x4, fixed_abs, tag = 'smem constant byte address 0x4 - core index']
  #allocation1 [shape = 'u32[72,128]{1,0:T(1,128)}', space=vmem, size = 0x9000, scoped, tag = 'internal scratch']
  #allocation2 [shape = 'bf16[288,48]{1,0:T(8,128)(2,1)}', space=vmem, size = 0x12000, scoped, tag = 'scratch operand']
  %s0 = inlined_call_operand.vmem [shape: bf16[2,256,32], index: 0, kind: input, shape index: {}]
  %s1 = inlined_call_operand.vmem [shape: bf16[2,256,1], index: 1, kind: input, shape index: {}]
  %s2 = inlined_call_operand.vmem [shape: bf16[32,16], index: 2, kind: input, shape index: {}]
  %s3 = inlined_call_operand.vmem [shape: f32[1,16], index: 3, kind: input, shape index: {}]
  %s4 = inlined_call_operand.vmem [shape: f32[1,16], index: 4, kind: input, shape index: {}]
  %s5 = inlined_call_operand.vmem [shape: bf16[3,48,16], index: 5, kind: input, shape index: {}]
  %s6 = inlined_call_operand.vmem [shape: f32[1,16], index: 6, kind: input, shape index: {}]
  %s7 = inlined_call_operand.vmem [shape: f32[1,16], index: 7, kind: input, shape index: {}]
  %s8 = inlined_call_operand.vmem [shape: bf16[16,64], index: 8, kind: input, shape index: {}]
  %s9 = inlined_call_operand.vmem [shape: f32[1,64], index: 9, kind: input, shape index: {}]
  %s10 = inlined_call_operand.vmem [shape: f32[1,64], index: 10, kind: input, shape index: {}]
  %s11 = inlined_call_operand.vmem [shape: bf16[32,64], index: 11, kind: input, shape index: {}]
  %s12 = inlined_call_operand.vmem [shape: f32[1,64], index: 12, kind: input, shape index: {}]
  %s13 = inlined_call_operand.vmem [shape: f32[1,64], index: 13, kind: input, shape index: {}]
  %s14 = inlined_call_operand.hbm [shape: f32[2,256,64], index: 14, kind: output, shape index: {}]
  %s15 = sld [smem:[#allocation0]]
  $region89: #{bottleneck_forward.1} parent=0
    _
  %s17 = ssub.s32 1, %s15
  %s18 = scalar_select 0, %s17, %s15
  $region1: #{bottleneck_forward.1} parent=0
    #allocation3 [shape = 'u8[262144]{0}', space=vmem, size = 0x40000, scoped, tag = 'output window, operand 0']
    #allocation4 [shape = 's32[2]{0}', space=sflag, size = 0x8, scoped, tag = 'scoped memory for bottleneck_forward.1']
    %19 = vsyncpa [#allocation4], 0
    %s20 = scalar_lea.sflag [#allocation4], 1
    %21 = vsyncpa %s20, 0
    loop: start=0, step=1, limit=4
    $region2: #{bottleneck_forward.1} parent=1 // loop_pre_header
      _
    $region3: #{bottleneck_forward.1} parent=1 // loop_header
      %s23 = sphi 0, %s27
      %p24 = scmp.ge.s32.totalorder %s23, 4
      %s33 = sphi 0, %s35
      %s36 = sphi 0, %s33
      %s37 = sphi 0, %s36
      %s53 = sphi 0, %s37
      %s57 = sphi 0, %s57
      %s59 = sphi 0, %s57
      %s60 = sphi 0, %s59
      %s74 = sphi 0, %s60
      %s78 = sphi 0, %s78
      %s80 = sphi 0, %s78
      %s81 = sphi 0, %s80
      %s95 = sphi 0, %s81
      %s99 = sphi 0, %s99
      %s101 = sphi 0, %s99
      %s102 = sphi 0, %s101
      %s116 = sphi 0, %s102
      %s120 = sphi 0, %s120
      %s122 = sphi 0, %s120
      %s123 = sphi 0, %s122
      %s137 = sphi 0, %s123
      %s141 = sphi 0, %s141
      %s143 = sphi 0, %s141
      %s144 = sphi 0, %s143
      %s158 = sphi 0, %s144
      %s162 = sphi 0, %s162
      %s164 = sphi 0, %s162
      %s165 = sphi 0, %s164
      %s179 = sphi 0, %s165
      %s183 = sphi 0, %s183
      %s185 = sphi 0, %s183
      %s186 = sphi 0, %s185
      %s200 = sphi 0, %s186
      %s204 = sphi 0, %s204
      %s206 = sphi 0, %s204
      %s207 = sphi 0, %s206
      %s221 = sphi 0, %s207
      %s225 = sphi 0, %s225
      %s227 = sphi 0, %s225
      %s228 = sphi 0, %s227
      %s242 = sphi 0, %s228
      %s246 = sphi 0, %s246
      %s248 = sphi 0, %s246
      %s249 = sphi 0, %s248
      %s263 = sphi 0, %s249
      %s267 = sphi 0, %s267
      %s269 = sphi 0, %s267
      %s270 = sphi 0, %s269
      %s284 = sphi 0, %s270
      %s288 = sphi 0, %s288
      %s290 = sphi 0, %s288
      %s291 = sphi 0, %s290
      %s305 = sphi 0, %s291
      %s309 = sphi 0, %s309
      %s311 = sphi 0, %s309
      %s312 = sphi 0, %s311
      %s326 = sphi 0, %s312
      %s332 = sphi 0, %s334
      %s335 = sphi 0, %s332
      %s336 = sphi 0, %s335
      %s352 = sphi 0, %s336
    $region4: #{bottleneck_forward.1} parent=1 // loop_header_branch
      %26 = sbr.rel (%p24) target = $region8
    $region5: #{bottleneck_forward.1} parent=1 // loop_body
      %s28 = ssub.s32 %s23, 1
      %s29 = ssub.s32 %s23, 2
      %s30 = sadd.s32 %s23, 1
      %s31 = ssub.s32 %s23, %s30
      %p32 = scmp.eq.s32.totalorder %s31, 0
      %s34 = sadd.s32 %s33, 1
      %s35 = scalar_select %p32, %s33, %s34
      %p38 = pneg %p32
      %p39 = scmp.eq.s32.totalorder %s23, 1
      %p40 = por %p38, %p39
      %p41 = scmp.ne.s32.totalorder %s33, %s36
      %p42 = scmp.eq.s32.totalorder %s23, 0
      %p43 = por %p41, %p42
      %p44 = scmp.ne.s32.totalorder %s33, %s36
      %p45 = scmp.eq.s32.totalorder %s28, 1
      %p46 = por %p44, %p45
      %p47 = scmp.ne.s32.totalorder %s36, %s37
      %p48 = scmp.eq.s32.totalorder %s28, 0
      %p49 = por %p47, %p48
      %p50 = scmp.ne.s32.totalorder %s36, %s37
      %p51 = scmp.eq.s32.totalorder %s29, 1
      %p52 = por %p50, %p51
      %p54 = scmp.ne.s32.totalorder %s37, %s53
      %p55 = scmp.eq.s32.totalorder %s29, 0
      %p56 = por %p54, %p55
      %s58 = sadd.s32 %s57, 1
      %p61 = scmp.eq.s32.totalorder %s23, 1
      %p62 = scmp.ne.s32.totalorder %s57, %s59
      %p63 = scmp.eq.s32.totalorder %s23, 0
      %p64 = por %p62, %p63
      %p65 = scmp.ne.s32.totalorder %s57, %s59
      %p66 = scmp.eq.s32.totalorder %s28, 1
      %p67 = por %p65, %p66
      %p68 = scmp.ne.s32.totalorder %s59, %s60
      %p69 = scmp.eq.s32.totalorder %s28, 0
      %p70 = por %p68, %p69
      %p71 = scmp.ne.s32.totalorder %s59, %s60
      %p72 = scmp.eq.s32.totalorder %s29, 1
      %p73 = por %p71, %p72
      %p75 = scmp.ne.s32.totalorder %s60, %s74
      %p76 = scmp.eq.s32.totalorder %s29, 0
      %p77 = por %p75, %p76
      %s79 = sadd.s32 %s78, 1
      %p82 = scmp.eq.s32.totalorder %s23, 1
      %p83 = scmp.ne.s32.totalorder %s78, %s80
      %p84 = scmp.eq.s32.totalorder %s23, 0
      %p85 = por %p83, %p84
      %p86 = scmp.ne.s32.totalorder %s78, %s80
      %p87 = scmp.eq.s32.totalorder %s28, 1
      %p88 = por %p86, %p87
      %p89 = scmp.ne.s32.totalorder %s80, %s81
      %p90 = scmp.eq.s32.totalorder %s28, 0
      %p91 = por %p89, %p90
      %p92 = scmp.ne.s32.totalorder %s80, %s81
      %p93 = scmp.eq.s32.totalorder %s29, 1
      %p94 = por %p92, %p93
      %p96 = scmp.ne.s32.totalorder %s81, %s95
      %p97 = scmp.eq.s32.totalorder %s29, 0
      %p98 = por %p96, %p97
      %s100 = sadd.s32 %s99, 1
      %p103 = scmp.eq.s32.totalorder %s23, 1
      %p104 = scmp.ne.s32.totalorder %s99, %s101
      %p105 = scmp.eq.s32.totalorder %s23, 0
      %p106 = por %p104, %p105
      %p107 = scmp.ne.s32.totalorder %s99, %s101
      %p108 = scmp.eq.s32.totalorder %s28, 1
      %p109 = por %p107, %p108
      %p110 = scmp.ne.s32.totalorder %s101, %s102
      %p111 = scmp.eq.s32.totalorder %s28, 0
      %p112 = por %p110, %p111
      %p113 = scmp.ne.s32.totalorder %s101, %s102
      %p114 = scmp.eq.s32.totalorder %s29, 1
      %p115 = por %p113, %p114
      %p117 = scmp.ne.s32.totalorder %s102, %s116
      %p118 = scmp.eq.s32.totalorder %s29, 0
      %p119 = por %p117, %p118
      %s121 = sadd.s32 %s120, 1
      %p124 = scmp.eq.s32.totalorder %s23, 1
      %p125 = scmp.ne.s32.totalorder %s120, %s122
      %p126 = scmp.eq.s32.totalorder %s23, 0
      %p127 = por %p125, %p126
      %p128 = scmp.ne.s32.totalorder %s120, %s122
      %p129 = scmp.eq.s32.totalorder %s28, 1
      %p130 = por %p128, %p129
      %p131 = scmp.ne.s32.totalorder %s122, %s123
      %p132 = scmp.eq.s32.totalorder %s28, 0
      %p133 = por %p131, %p132
      %p134 = scmp.ne.s32.totalorder %s122, %s123
      %p135 = scmp.eq.s32.totalorder %s29, 1
      %p136 = por %p134, %p135
      %p138 = scmp.ne.s32.totalorder %s123, %s137
      %p139 = scmp.eq.s32.totalorder %s29, 0
      %p140 = por %p138, %p139
      %s142 = sadd.s32 %s141, 1
      %p145 = scmp.eq.s32.totalorder %s23, 1
      %p146 = scmp.ne.s32.totalorder %s141, %s143
      %p147 = scmp.eq.s32.totalorder %s23, 0
      %p148 = por %p146, %p147
      %p149 = scmp.ne.s32.totalorder %s141, %s143
      %p150 = scmp.eq.s32.totalorder %s28, 1
      %p151 = por %p149, %p150
      %p152 = scmp.ne.s32.totalorder %s143, %s144
      %p153 = scmp.eq.s32.totalorder %s28, 0
      %p154 = por %p152, %p153
      %p155 = scmp.ne.s32.totalorder %s143, %s144
      %p156 = scmp.eq.s32.totalorder %s29, 1
      %p157 = por %p155, %p156
      %p159 = scmp.ne.s32.totalorder %s144, %s158
      %p160 = scmp.eq.s32.totalorder %s29, 0
      %p161 = por %p159, %p160
      %s163 = sadd.s32 %s162, 1
      %p166 = scmp.eq.s32.totalorder %s23, 1
      %p167 = scmp.ne.s32.totalorder %s162, %s164
      %p168 = scmp.eq.s32.totalorder %s23, 0
      %p169 = por %p167, %p168
      %p170 = scmp.ne.s32.totalorder %s162, %s164
      %p171 = scmp.eq.s32.totalorder %s28, 1
      %p172 = por %p170, %p171
      %p173 = scmp.ne.s32.totalorder %s164, %s165
      %p174 = scmp.eq.s32.totalorder %s28, 0
      %p175 = por %p173, %p174
      %p176 = scmp.ne.s32.totalorder %s164, %s165
      %p177 = scmp.eq.s32.totalorder %s29, 1
      %p178 = por %p176, %p177
      %p180 = scmp.ne.s32.totalorder %s165, %s179
      %p181 = scmp.eq.s32.totalorder %s29, 0
      %p182 = por %p180, %p181
      %s184 = sadd.s32 %s183, 1
      %p187 = scmp.eq.s32.totalorder %s23, 1
      %p188 = scmp.ne.s32.totalorder %s183, %s185
      %p189 = scmp.eq.s32.totalorder %s23, 0
      %p190 = por %p188, %p189
      %p191 = scmp.ne.s32.totalorder %s183, %s185
      %p192 = scmp.eq.s32.totalorder %s28, 1
      %p193 = por %p191, %p192
      %p194 = scmp.ne.s32.totalorder %s185, %s186
      %p195 = scmp.eq.s32.totalorder %s28, 0
      %p196 = por %p194, %p195
      %p197 = scmp.ne.s32.totalorder %s185, %s186
      %p198 = scmp.eq.s32.totalorder %s29, 1
      %p199 = por %p197, %p198
      %p201 = scmp.ne.s32.totalorder %s186, %s200
      %p202 = scmp.eq.s32.totalorder %s29, 0
      %p203 = por %p201, %p202
      %s205 = sadd.s32 %s204, 1
      %p208 = scmp.eq.s32.totalorder %s23, 1
      %p209 = scmp.ne.s32.totalorder %s204, %s206
      %p210 = scmp.eq.s32.totalorder %s23, 0
      %p211 = por %p209, %p210
      %p212 = scmp.ne.s32.totalorder %s204, %s206
      %p213 = scmp.eq.s32.totalorder %s28, 1
      %p214 = por %p212, %p213
      %p215 = scmp.ne.s32.totalorder %s206, %s207
      %p216 = scmp.eq.s32.totalorder %s28, 0
      %p217 = por %p215, %p216
      %p218 = scmp.ne.s32.totalorder %s206, %s207
      %p219 = scmp.eq.s32.totalorder %s29, 1
      %p220 = por %p218, %p219
      %p222 = scmp.ne.s32.totalorder %s207, %s221
      %p223 = scmp.eq.s32.totalorder %s29, 0
      %p224 = por %p222, %p223
      %s226 = sadd.s32 %s225, 1
      %p229 = scmp.eq.s32.totalorder %s23, 1
      %p230 = scmp.ne.s32.totalorder %s225, %s227
      %p231 = scmp.eq.s32.totalorder %s23, 0
      %p232 = por %p230, %p231
      %p233 = scmp.ne.s32.totalorder %s225, %s227
      %p234 = scmp.eq.s32.totalorder %s28, 1
      %p235 = por %p233, %p234
      %p236 = scmp.ne.s32.totalorder %s227, %s228
      %p237 = scmp.eq.s32.totalorder %s28, 0
      %p238 = por %p236, %p237
      %p239 = scmp.ne.s32.totalorder %s227, %s228
      %p240 = scmp.eq.s32.totalorder %s29, 1
      %p241 = por %p239, %p240
      %p243 = scmp.ne.s32.totalorder %s228, %s242
      %p244 = scmp.eq.s32.totalorder %s29, 0
      %p245 = por %p243, %p244
      %s247 = sadd.s32 %s246, 1
      %p250 = scmp.eq.s32.totalorder %s23, 1
      %p251 = scmp.ne.s32.totalorder %s246, %s248
      %p252 = scmp.eq.s32.totalorder %s23, 0
      %p253 = por %p251, %p252
      %p254 = scmp.ne.s32.totalorder %s246, %s248
      %p255 = scmp.eq.s32.totalorder %s28, 1
      %p256 = por %p254, %p255
      %p257 = scmp.ne.s32.totalorder %s248, %s249
      %p258 = scmp.eq.s32.totalorder %s28, 0
      %p259 = por %p257, %p258
      %p260 = scmp.ne.s32.totalorder %s248, %s249
      %p261 = scmp.eq.s32.totalorder %s29, 1
      %p262 = por %p260, %p261
      %p264 = scmp.ne.s32.totalorder %s249, %s263
      %p265 = scmp.eq.s32.totalorder %s29, 0
      %p266 = por %p264, %p265
      %s268 = sadd.s32 %s267, 1
      %p271 = scmp.eq.s32.totalorder %s23, 1
      %p272 = scmp.ne.s32.totalorder %s267, %s269
      %p273 = scmp.eq.s32.totalorder %s23, 0
      %p274 = por %p272, %p273
      %p275 = scmp.ne.s32.totalorder %s267, %s269
      %p276 = scmp.eq.s32.totalorder %s28, 1
      %p277 = por %p275, %p276
      %p278 = scmp.ne.s32.totalorder %s269, %s270
      %p279 = scmp.eq.s32.totalorder %s28, 0
      %p280 = por %p278, %p279
      %p281 = scmp.ne.s32.totalorder %s269, %s270
      %p282 = scmp.eq.s32.totalorder %s29, 1
      %p283 = por %p281, %p282
      %p285 = scmp.ne.s32.totalorder %s270, %s284
      %p286 = scmp.eq.s32.totalorder %s29, 0
      %p287 = por %p285, %p286
      %s289 = sadd.s32 %s288, 1
      %p292 = scmp.eq.s32.totalorder %s23, 1
      %p293 = scmp.ne.s32.totalorder %s288, %s290
      %p294 = scmp.eq.s32.totalorder %s23, 0
      %p295 = por %p293, %p294
      %p296 = scmp.ne.s32.totalorder %s288, %s290
      %p297 = scmp.eq.s32.totalorder %s28, 1
      %p298 = por %p296, %p297
      %p299 = scmp.ne.s32.totalorder %s290, %s291
      %p300 = scmp.eq.s32.totalorder %s28, 0
      %p301 = por %p299, %p300
      %p302 = scmp.ne.s32.totalorder %s290, %s291
      %p303 = scmp.eq.s32.totalorder %s29, 1
      %p304 = por %p302, %p303
      %p306 = scmp.ne.s32.totalorder %s291, %s305
      %p307 = scmp.eq.s32.totalorder %s29, 0
      %p308 = por %p306, %p307
      %s310 = sadd.s32 %s309, 1
      %p313 = scmp.eq.s32.totalorder %s23, 1
      %p314 = scmp.ne.s32.totalorder %s309, %s311
      %p315 = scmp.eq.s32.totalorder %s23, 0
      %p316 = por %p314, %p315
      %p317 = scmp.ne.s32.totalorder %s309, %s311
      %p318 = scmp.eq.s32.totalorder %s28, 1
      %p319 = por %p317, %p318
      %p320 = scmp.ne.s32.totalorder %s311, %s312
      %p321 = scmp.eq.s32.totalorder %s28, 0
      %p322 = por %p320, %p321
      %p323 = scmp.ne.s32.totalorder %s311, %s312
      %p324 = scmp.eq.s32.totalorder %s29, 1
      %p325 = por %p323, %p324
      %p327 = scmp.ne.s32.totalorder %s312, %s326
      %p328 = scmp.eq.s32.totalorder %s29, 0
      %p329 = por %p327, %p328
      %s330 = ssub.s32 %s23, %s30
      %p331 = scmp.eq.s32.totalorder %s330, 0
      %s333 = sadd.s32 %s332, 1
      %s334 = scalar_select %p331, %s332, %s333
      %p337 = pneg %p331
      %p338 = scmp.eq.s32.totalorder %s23, 1
      %p339 = por %p337, %p338
      %p340 = scmp.ne.s32.totalorder %s332, %s335
      %p341 = scmp.eq.s32.totalorder %s23, 0
      %p342 = por %p340, %p341
      %p343 = scmp.ne.s32.totalorder %s332, %s335
      %p344 = scmp.eq.s32.totalorder %s28, 1
      %p345 = por %p343, %p344
      %p346 = scmp.ne.s32.totalorder %s335, %s336
      %p347 = scmp.eq.s32.totalorder %s28, 0
      %p348 = por %p346, %p347
      %p349 = scmp.ne.s32.totalorder %s335, %s336
      %p350 = scmp.eq.s32.totalorder %s29, 1
      %p351 = por %p349, %p350
      %p353 = scmp.ne.s32.totalorder %s336, %s352
      %p354 = scmp.eq.s32.totalorder %s29, 0
      %p355 = por %p353, %p354
      %p356 = scmp.le.s32.totalorder 1, %s23
      %p357 = scmp.lt.s32.totalorder %s23, 3
      %p358 = pnand %p356, %p357
      %p359 = pneg %p358
      // Predicated region
      $region9: #{bottleneck_forward.1} parent=5 // pred_check
        _
      $region10: #{bottleneck_forward.1} parent=5 // pred_check_branch
        %361 = sbr.rel (%p358) target = $region12
      $region11: #{bottleneck_forward.1} parent=5 // pred_region
        %s362 = ssub.s32 %s23, 1
        // Predicated region
        $region13: #{bottleneck_forward.1} parent=11 // pred_check
          %p363 = pneg %p70
        $region14: #{bottleneck_forward.1} parent=11 // pred_check_branch
          %365 = sbr.rel (%p363) target = $region16
        $region15: #{bottleneck_forward.1} parent=11 // pred_region
          _
        $region16: #{bottleneck_forward.1} parent=11 // pred_fallthru
          _
        // Predicated region
        $region17: #{bottleneck_forward.1} parent=11 // pred_check
          %p366 = pneg %p91
        $region18: #{bottleneck_forward.1} parent=11 // pred_check_branch
          %368 = sbr.rel (%p366) target = $region20
        $region19: #{bottleneck_forward.1} parent=11 // pred_region
          _
        $region20: #{bottleneck_forward.1} parent=11 // pred_fallthru
          _
        // Predicated region
        $region21: #{bottleneck_forward.1} parent=11 // pred_check
          %p369 = pneg %p112
        $region22: #{bottleneck_forward.1} parent=11 // pred_check_branch
          %371 = sbr.rel (%p369) target = $region24
        $region23: #{bottleneck_forward.1} parent=11 // pred_region
          _
        $region24: #{bottleneck_forward.1} parent=11 // pred_fallthru
          _
        // Predicated region
        $region25: #{bottleneck_forward.1} parent=11 // pred_check
          %p372 = pneg %p133
        $region26: #{bottleneck_forward.1} parent=11 // pred_check_branch
          %374 = sbr.rel (%p372) target = $region28
        $region27: #{bottleneck_forward.1} parent=11 // pred_region
          _
        $region28: #{bottleneck_forward.1} parent=11 // pred_fallthru
          _
        // Predicated region
        $region29: #{bottleneck_forward.1} parent=11 // pred_check
          %p375 = pneg %p154
        $region30: #{bottleneck_forward.1} parent=11 // pred_check_branch
          %377 = sbr.rel (%p375) target = $region32
        $region31: #{bottleneck_forward.1} parent=11 // pred_region
          _
        $region32: #{bottleneck_forward.1} parent=11 // pred_fallthru
          _
        // Predicated region
        $region33: #{bottleneck_forward.1} parent=11 // pred_check
          %p378 = pneg %p175
        $region34: #{bottleneck_forward.1} parent=11 // pred_check_branch
          %380 = sbr.rel (%p378) target = $region36
        $region35: #{bottleneck_forward.1} parent=11 // pred_region
          _
        $region36: #{bottleneck_forward.1} parent=11 // pred_fallthru
          _
        // Predicated region
        $region37: #{bottleneck_forward.1} parent=11 // pred_check
          %p381 = pneg %p196
        $region38: #{bottleneck_forward.1} parent=11 // pred_check_branch
          %383 = sbr.rel (%p381) target = $region40
        $region39: #{bottleneck_forward.1} parent=11 // pred_region
          _
        $region40: #{bottleneck_forward.1} parent=11 // pred_fallthru
          _
        // Predicated region
        $region41: #{bottleneck_forward.1} parent=11 // pred_check
          %p384 = pneg %p217
        $region42: #{bottleneck_forward.1} parent=11 // pred_check_branch
          %386 = sbr.rel (%p384) target = $region44
        $region43: #{bottleneck_forward.1} parent=11 // pred_region
          _
        $region44: #{bottleneck_forward.1} parent=11 // pred_fallthru
          _
        // Predicated region
        $region45: #{bottleneck_forward.1} parent=11 // pred_check
          %p387 = pneg %p238
        $region46: #{bottleneck_forward.1} parent=11 // pred_check_branch
          %389 = sbr.rel (%p387) target = $region48
        $region47: #{bottleneck_forward.1} parent=11 // pred_region
          _
        $region48: #{bottleneck_forward.1} parent=11 // pred_fallthru
          _
        // Predicated region
        $region49: #{bottleneck_forward.1} parent=11 // pred_check
          %p390 = pneg %p259
        $region50: #{bottleneck_forward.1} parent=11 // pred_check_branch
          %392 = sbr.rel (%p390) target = $region52
        $region51: #{bottleneck_forward.1} parent=11 // pred_region
          _
        $region52: #{bottleneck_forward.1} parent=11 // pred_fallthru
          _
        // Predicated region
        $region53: #{bottleneck_forward.1} parent=11 // pred_check
          %p393 = pneg %p280
        $region54: #{bottleneck_forward.1} parent=11 // pred_check_branch
          %395 = sbr.rel (%p393) target = $region56
        $region55: #{bottleneck_forward.1} parent=11 // pred_region
          _
        $region56: #{bottleneck_forward.1} parent=11 // pred_fallthru
          _
        // Predicated region
        $region57: #{bottleneck_forward.1} parent=11 // pred_check
          %p396 = pneg %p301
        $region58: #{bottleneck_forward.1} parent=11 // pred_check_branch
          %398 = sbr.rel (%p396) target = $region60
        $region59: #{bottleneck_forward.1} parent=11 // pred_region
          _
        $region60: #{bottleneck_forward.1} parent=11 // pred_fallthru
          _
        // Predicated region
        $region61: #{bottleneck_forward.1} parent=11 // pred_check
          %p399 = pneg %p322
        $region62: #{bottleneck_forward.1} parent=11 // pred_check_branch
          %401 = sbr.rel (%p399) target = $region64
        $region63: #{bottleneck_forward.1} parent=11 // pred_region
          _
        $region64: #{bottleneck_forward.1} parent=11 // pred_fallthru
          _
      $region12: #{bottleneck_forward.1} parent=5 // pred_fallthru
        _
      %p402 = scmp.lt.s32.totalorder %s23, 2
      // Predicated region
      $region65: #{bottleneck_forward.1} parent=5 // pred_check
        %p403 = pneg %p402
      $region66: #{bottleneck_forward.1} parent=5 // pred_check_branch
        %405 = sbr.rel (%p403) target = $region68
      $region67: #{bottleneck_forward.1} parent=5 // pred_region
        // Predicated region
        $region69: #{bottleneck_forward.1} parent=67 // pred_check
          %p406 = pneg %p43
        $region70: #{bottleneck_forward.1} parent=67 // pred_check_branch
          %408 = sbr.rel (%p406) target = $region72
        $region71: #{bottleneck_forward.1} parent=67 // pred_region
          %p409 = scmp.lt.s32.totalorder %s23, 1
          %s410 = scalar_select %p409, %s23, 1
          %s411 = smul.addr %s410, 32
          %s412 = smul.addr %s411, 4
          %s413 = scalar_lea.vmem %s0, %s412
        $region72: #{bottleneck_forward.1} parent=67 // pred_fallthru
          _
      $region68: #{bottleneck_forward.1} parent=5 // pred_fallthru
        _
      %p414 = scmp.le.s32.totalorder 1, %s23
      %p415 = scmp.lt.s32.totalorder %s23, 3
      %p416 = pnand %p414, %p415
      %p417 = pneg %p416
      // Predicated region
      $region73: #{bottleneck_forward.1} parent=5 // pred_check
        _
      $region74: #{bottleneck_forward.1} parent=5 // pred_check_branch
        %419 = sbr.rel (%p416) target = $region76
      $region75: #{bottleneck_forward.1} parent=5 // pred_region
        %s420 = ssub.s32 %s23, 1
        %p421 = scmp.lt.s32.totalorder %s28, 1
        %s422 = scalar_select %p421, %s28, 1
        %s423 = smul.addr %s422, 32
        %s424 = smul.addr %s423, 4
        %s425 = scalar_lea.vmem %s0, %s424
        %p426 = pneg %p49
        %p427 = pneg %p46
        %p428 = pneg %p70
        %p429 = pneg %p67
        %p430 = pneg %p91
        %p431 = pneg %p88
        %p432 = pneg %p112
        %p433 = pneg %p109
        %p434 = pneg %p133
        %p435 = pneg %p130
        %p436 = pneg %p154
        %p437 = pneg %p151
        %p438 = pneg %p175
        %p439 = pneg %p172
        %p440 = pneg %p196
        %p441 = pneg %p193
        %p442 = pneg %p217
        %p443 = pneg %p214
        %p444 = pneg %p238
        %p445 = pneg %p235
        %p446 = pneg %p259
        %p447 = pneg %p256
        %p448 = pneg %p280
        %p449 = pneg %p277
        %p450 = pneg %p301
        %p451 = pneg %p298
        %p452 = pneg %p322
        %p453 = pneg %p319
        %p454 = pneg %p348
        %p455 = pneg %p345
        %s456 = sand.u32 %s335, 1
        %s457 = scalar_lea.sflag [#allocation4], %s456
        %s458 = sand.u32 %s335, 1
        %s459 = smul.addr %s458, 256
        %s460 = scalar_lea.vmem [#allocation3], %s459
        %p461 = scmp.lt.s32.totalorder %s28, 1
        %s462 = scalar_select %p461, %s28, 1
        %s463 = smul.addr %s462, 32
        %s464 = smul.addr %s463, 4
        %s465 = scalar_lea.vmem %s0, %s464
        %v467 = vld [vmem:[%s465] sm:$0xf]
        %v468 = vld [vmem:[%s465 + $0x4] sm:$0xf]
        %v469 = vld [vmem:[%s465 + $0x8] sm:$0xf]
        %v470 = vld [vmem:[%s465 + $0xc] sm:$0xf]
        %v471 = vld [vmem:[%s465 + $0x10] sm:$0xf]
        %v472 = vld [vmem:[%s465 + $0x14] sm:$0xf]
        %v473 = vld [vmem:[%s465 + $0x18] sm:$0xf]
        %v474 = vld [vmem:[%s465 + $0x1c] sm:$0xf]
        %v475 = vld [vmem:[%s465 + $0x20] sm:$0xf]
        %v476 = vld [vmem:[%s465 + $0x24] sm:$0xf]
        %v477 = vld [vmem:[%s465 + $0x28] sm:$0xf]
        %v478 = vld [vmem:[%s465 + $0x2c] sm:$0xf]
        %v479 = vld [vmem:[%s465 + $0x30] sm:$0xf]
        %v480 = vld [vmem:[%s465 + $0x34] sm:$0xf]
        %v481 = vld [vmem:[%s465 + $0x38] sm:$0xf]
        %v482 = vld [vmem:[%s465 + $0x3c] sm:$0xf]
        %v483 = vld [vmem:[%s465 + $0x40] sm:$0xf]
        %v484 = vld [vmem:[%s465 + $0x44] sm:$0xf]
        %v485 = vld [vmem:[%s465 + $0x48] sm:$0xf]
        %v486 = vld [vmem:[%s465 + $0x4c] sm:$0xf]
        %v487 = vld [vmem:[%s465 + $0x50] sm:$0xf]
        %v488 = vld [vmem:[%s465 + $0x54] sm:$0xf]
        %v489 = vld [vmem:[%s465 + $0x58] sm:$0xf]
        %v490 = vld [vmem:[%s465 + $0x5c] sm:$0xf]
        %v491 = vld [vmem:[%s465 + $0x60] sm:$0xf]
        %v492 = vld [vmem:[%s465 + $0x64] sm:$0xf]
        %v493 = vld [vmem:[%s465 + $0x68] sm:$0xf]
        %v494 = vld [vmem:[%s465 + $0x6c] sm:$0xf]
        %v495 = vld [vmem:[%s465 + $0x70] sm:$0xf]
        %v496 = vld [vmem:[%s465 + $0x74] sm:$0xf]
        %v497 = vld [vmem:[%s465 + $0x78] sm:$0xf]
        %v498 = vld [vmem:[%s465 + $0x7c] sm:$0xf]
        %v499 = vld [vmem:[%s2] sm:$0xf]
        %v500 = vld [vmem:[%s2 + $0x4] sm:$0xf]
        %v501 = vld [vmem:[%s2 + $0x8] sm:$0xf]
        %v502 = vld [vmem:[%s2 + $0xc] sm:$0xf]
        %v535 = vunpack.c.l.b16 %v467
        %v536 = vunpack.c.l.b16 %v468
        %v537 = vunpack.c.l.b16 %v469
        %v538 = vunpack.c.l.b16 %v470
        %v539 = vunpack.c.l.b16 %v471
        %v540 = vunpack.c.l.b16 %v472
        %v541 = vunpack.c.l.b16 %v473
        %v542 = vunpack.c.l.b16 %v474
        %v543 = vunpack.c.l.b16 %v475
        %v544 = vunpack.c.l.b16 %v476
        %v545 = vunpack.c.l.b16 %v477
        %v546 = vunpack.c.l.b16 %v478
        %v547 = vunpack.c.l.b16 %v479
        %v548 = vunpack.c.l.b16 %v480
        %v549 = vunpack.c.l.b16 %v481
        %v550 = vunpack.c.l.b16 %v482
        %v551 = vunpack.c.l.b16 %v483
        %v552 = vunpack.c.l.b16 %v484
        %v553 = vunpack.c.l.b16 %v485
        %v554 = vunpack.c.l.b16 %v486
        %v555 = vunpack.c.l.b16 %v487
        %v556 = vunpack.c.l.b16 %v488
        %v557 = vunpack.c.l.b16 %v489
        %v558 = vunpack.c.l.b16 %v490
        %v559 = vunpack.c.l.b16 %v491
        %v560 = vunpack.c.l.b16 %v492
        %v561 = vunpack.c.l.b16 %v493
        %v562 = vunpack.c.l.b16 %v494
        %v563 = vunpack.c.l.b16 %v495
        %v564 = vunpack.c.l.b16 %v496
        %v565 = vunpack.c.l.b16 %v497
        %v566 = vunpack.c.l.b16 %v498
        %v567 = vpack.c.b16 %v536, %v535
        %v568 = vpack.c.b16 %v538, %v537
        %v569 = vpack.c.b16 %v540, %v539
        %v570 = vpack.c.b16 %v542, %v541
        %v571 = vpack.c.b16 %v544, %v543
        %v572 = vpack.c.b16 %v546, %v545
        %v573 = vpack.c.b16 %v548, %v547
        %v574 = vpack.c.b16 %v550, %v549
        %v575 = vpack.c.b16 %v552, %v551
        %v576 = vpack.c.b16 %v554, %v553
        %v577 = vpack.c.b16 %v556, %v555
        %v578 = vpack.c.b16 %v558, %v557
        %v579 = vpack.c.b16 %v560, %v559
        %v580 = vpack.c.b16 %v562, %v561
        %v581 = vpack.c.b16 %v564, %v563
        %v582 = vpack.c.b16 %v566, %v565
        %v587 = vunpack.c.l.b16 %v499
        %v588 = vunpack.c.l.b16 %v500
        %v589 = vunpack.c.l.b16 %v501
        %v590 = vunpack.c.l.b16 %v502
        %v591 = vpack.c.b16 %v588, %v587
        %v592 = vpack.c.b16 %v590, %v589
        %vm595 = vcmask 261120
        %v597 = vsel %vm595, %v567, 0
        %v600 = vsel %vm595, %v568, 0
        %v603 = vsel %vm595, %v569, 0
        %v606 = vsel %vm595, %v570, 0
        %v609 = vsel %vm595, %v571, 0
        %v612 = vsel %vm595, %v572, 0
        %v615 = vsel %vm595, %v573, 0
        %v618 = vsel %vm595, %v574, 0
        %v621 = vsel %vm595, %v575, 0
        %v624 = vsel %vm595, %v576, 0
        %v627 = vsel %vm595, %v577, 0
        %v630 = vsel %vm595, %v578, 0
        %v633 = vsel %vm595, %v579, 0
        %v636 = vsel %vm595, %v580, 0
        %v639 = vsel %vm595, %v581, 0
        %v642 = vsel %vm595, %v582, 0
        %644 = vmatpush.bf16.msra.mxu0 0
        %645 = vmatpush.bf16.msra.mxu0 0
        %646 = vmatpush.bf16.msra.mxu0 0
        %647 = vmatpush.bf16.msra.mxu0 0
        %648 = vmatpush.bf16.msra.mxu0 0
        %649 = vmatpush.bf16.msra.mxu0 0
        %650 = vmatpush.bf16.msra.mxu0 %v592
        %651 = vmatpush.bf16.msra.mxu0 %v591
        %652 = vmatmul.bf16.gmra.mxu0 %v597
        %v653 = vpop.f32.mrf.mxu0
        %v654 = vadd.f32 0.0, %v653
        %v655 = vpop.f32.mrf.mxu0
        %v656 = vadd.f32 0.0, %v655
        %657 = vmatmul.bf16.gmra.mxu0 %v600
        %v658 = vpop.f32.mrf.mxu0
        %v659 = vadd.f32 0.0, %v658
        %v660 = vpop.f32.mrf.mxu0
        %v661 = vadd.f32 0.0, %v660
        %662 = vmatmul.bf16.gmra.mxu0 %v603
        %v663 = vpop.f32.mrf.mxu0
        %v664 = vadd.f32 0.0, %v663
        %v665 = vpop.f32.mrf.mxu0
        %v666 = vadd.f32 0.0, %v665
        %667 = vmatmul.bf16.gmra.mxu0 %v606
        %v668 = vpop.f32.mrf.mxu0
        %v669 = vadd.f32 0.0, %v668
        %v670 = vpop.f32.mrf.mxu0
        %v671 = vadd.f32 0.0, %v670
        %672 = vmatmul.bf16.gmra.mxu0 %v609
        %v673 = vpop.f32.mrf.mxu0
        %v674 = vadd.f32 0.0, %v673
        %v675 = vpop.f32.mrf.mxu0
        %v676 = vadd.f32 0.0, %v675
        %677 = vmatmul.bf16.gmra.mxu0 %v612
        %v678 = vpop.f32.mrf.mxu0
        %v679 = vadd.f32 0.0, %v678
        %v680 = vpop.f32.mrf.mxu0
        %v681 = vadd.f32 0.0, %v680
        %682 = vmatmul.bf16.gmra.mxu0 %v615
        %v683 = vpop.f32.mrf.mxu0
        %v684 = vadd.f32 0.0, %v683
        %v685 = vpop.f32.mrf.mxu0
        %v686 = vadd.f32 0.0, %v685
        %687 = vmatmul.bf16.gmra.mxu0 %v618
        %v688 = vpop.f32.mrf.mxu0
        %v689 = vadd.f32 0.0, %v688
        %v690 = vpop.f32.mrf.mxu0
        %v691 = vadd.f32 0.0, %v690
        %692 = vmatmul.bf16.gmra.mxu0 %v621
        %v693 = vpop.f32.mrf.mxu0
        %v694 = vadd.f32 0.0, %v693
        %v695 = vpop.f32.mrf.mxu0
        %v696 = vadd.f32 0.0, %v695
        %697 = vmatmul.bf16.gmra.mxu0 %v624
        %v698 = vpop.f32.mrf.mxu0
        %v699 = vadd.f32 0.0, %v698
        %v700 = vpop.f32.mrf.mxu0
        %v701 = vadd.f32 0.0, %v700
        %702 = vmatmul.bf16.gmra.mxu0 %v627
        %v703 = vpop.f32.mrf.mxu0
        %v704 = vadd.f32 0.0, %v703
        %v705 = vpop.f32.mrf.mxu0
        %v706 = vadd.f32 0.0, %v705
        %707 = vmatmul.bf16.gmra.mxu0 %v630
        %v708 = vpop.f32.mrf.mxu0
        %v709 = vadd.f32 0.0, %v708
        %v710 = vpop.f32.mrf.mxu0
        %v711 = vadd.f32 0.0, %v710
        %712 = vmatmul.bf16.gmra.mxu0 %v633
        %v713 = vpop.f32.mrf.mxu0
        %v714 = vadd.f32 0.0, %v713
        %v715 = vpop.f32.mrf.mxu0
        %v716 = vadd.f32 0.0, %v715
        %717 = vmatmul.bf16.gmra.mxu0 %v636
        %v718 = vpop.f32.mrf.mxu0
        %v719 = vadd.f32 0.0, %v718
        %v720 = vpop.f32.mrf.mxu0
        %v721 = vadd.f32 0.0, %v720
        %722 = vmatmul.bf16.gmra.mxu0 %v639
        %v723 = vpop.f32.mrf.mxu0
        %v724 = vadd.f32 0.0, %v723
        %v725 = vpop.f32.mrf.mxu0
        %v726 = vadd.f32 0.0, %v725
        %727 = vmatmul.bf16.gmra.mxu0 %v642
        %v728 = vpop.f32.mrf.mxu0
        %v729 = vadd.f32 0.0, %v728
        %v730 = vpop.f32.mrf.mxu0
        %v731 = vadd.f32 0.0, %v730
        %732 = vdwg.mxu0
        %v733 = vld [vmem:[%s3] sm:$0x1]
        %v734 = vld [vmem:[%s4] sm:$0x1]
        %vm735 = vcmask 130048
        %v736 = vsel %vm735, %v654, 0.0
        %v737 = vsel %vm735, %v656, 0.0
        %v738 = vadd.f32 %v736, %v737
        %v739 = vsel %vm735, %v659, 0.0
        %v740 = vadd.f32 %v738, %v739
        %v741 = vsel %vm735, %v661, 0.0
        %v742 = vadd.f32 %v740, %v741
        %v743 = vsel %vm735, %v664, 0.0
        %v744 = vadd.f32 %v742, %v743
        %v745 = vsel %vm735, %v666, 0.0
        %v746 = vadd.f32 %v744, %v745
        %v747 = vsel %vm735, %v669, 0.0
        %v748 = vadd.f32 %v746, %v747
        %v749 = vsel %vm735, %v671, 0.0
        %v750 = vadd.f32 %v748, %v749
        %v751 = vsel %vm735, %v674, 0.0
        %v752 = vadd.f32 %v750, %v751
        %v753 = vsel %vm735, %v676, 0.0
        %v754 = vadd.f32 %v752, %v753
        %v755 = vsel %vm735, %v679, 0.0
        %v756 = vadd.f32 %v754, %v755
        %v757 = vsel %vm735, %v681, 0.0
        %v758 = vadd.f32 %v756, %v757
        %v759 = vsel %vm735, %v684, 0.0
        %v760 = vadd.f32 %v758, %v759
        %v761 = vsel %vm735, %v686, 0.0
        %v762 = vadd.f32 %v760, %v761
        %v763 = vsel %vm735, %v689, 0.0
        %v764 = vadd.f32 %v762, %v763
        %v765 = vsel %vm735, %v691, 0.0
        %v766 = vadd.f32 %v764, %v765
        %v767 = vsel %vm735, %v694, 0.0
        %v768 = vadd.f32 %v766, %v767
        %v769 = vsel %vm735, %v696, 0.0
        %v770 = vadd.f32 %v768, %v769
        %v771 = vsel %vm735, %v699, 0.0
        %v772 = vadd.f32 %v770, %v771
        %v773 = vsel %vm735, %v701, 0.0
        %v774 = vadd.f32 %v772, %v773
        %v775 = vsel %vm735, %v704, 0.0
        %v776 = vadd.f32 %v774, %v775
        %v777 = vsel %vm735, %v706, 0.0
        %v778 = vadd.f32 %v776, %v777
        %v779 = vsel %vm735, %v709, 0.0
        %v780 = vadd.f32 %v778, %v779
        %v781 = vsel %vm735, %v711, 0.0
        %v782 = vadd.f32 %v780, %v781
        %v783 = vsel %vm735, %v714, 0.0
        %v784 = vadd.f32 %v782, %v783
        %v785 = vsel %vm735, %v716, 0.0
        %v786 = vadd.f32 %v784, %v785
        %v787 = vsel %vm735, %v719, 0.0
        %v788 = vadd.f32 %v786, %v787
        %v789 = vsel %vm735, %v721, 0.0
        %v790 = vadd.f32 %v788, %v789
        %v791 = vsel %vm735, %v724, 0.0
        %v792 = vadd.f32 %v790, %v791
        %v793 = vsel %vm735, %v726, 0.0
        %v794 = vadd.f32 %v792, %v793
        %v795 = vsel %vm735, %v729, 0.0
        %v796 = vadd.f32 %v794, %v795
        %v797 = vsel %vm735, %v731, 0.0
        %v798 = vadd.f32 %v796, %v797
        %v799 = vrot.slane %v798, 4
        %v800 = vadd.f32 %v798, %v799
        %v801 = vrot.slane %v800, 2
        %v802 = vadd.f32 %v800, %v801
        %v803 = vrot.slane %v802, 1
        %v804 = vadd.f32 %v802, %v803
        %v805 = vmul.f32 %v654, %v654
        %v806 = vmul.f32 %v656, %v656
        %v807 = vmul.f32 %v659, %v659
        %v808 = vmul.f32 %v661, %v661
        %v809 = vmul.f32 %v664, %v664
        %v810 = vmul.f32 %v666, %v666
        %v811 = vmul.f32 %v669, %v669
        %v812 = vmul.f32 %v671, %v671
        %v813 = vmul.f32 %v674, %v674
        %v814 = vmul.f32 %v676, %v676
        %v815 = vmul.f32 %v679, %v679
        %v816 = vmul.f32 %v681, %v681
        %v817 = vmul.f32 %v684, %v684
        %v818 = vmul.f32 %v686, %v686
        %v819 = vmul.f32 %v689, %v689
        %v820 = vmul.f32 %v691, %v691
        %v821 = vmul.f32 %v694, %v694
        %v822 = vmul.f32 %v696, %v696
        %v823 = vmul.f32 %v699, %v699
        %v824 = vmul.f32 %v701, %v701
        %v825 = vmul.f32 %v704, %v704
        %v826 = vmul.f32 %v706, %v706
        %v827 = vmul.f32 %v709, %v709
        %v828 = vmul.f32 %v711, %v711
        %v829 = vmul.f32 %v714, %v714
        %v830 = vmul.f32 %v716, %v716
        %v831 = vmul.f32 %v719, %v719
        %v832 = vmul.f32 %v721, %v721
        %v833 = vmul.f32 %v724, %v724
        %v834 = vmul.f32 %v726, %v726
        %v835 = vmul.f32 %v729, %v729
        %v836 = vmul.f32 %v731, %v731
        %v837 = vsel %vm735, %v805, 0.0
        %v838 = vsel %vm735, %v806, 0.0
        %v839 = vadd.f32 %v837, %v838
        %v840 = vsel %vm735, %v807, 0.0
        %v841 = vadd.f32 %v839, %v840
        %v842 = vsel %vm735, %v808, 0.0
        %v843 = vadd.f32 %v841, %v842
        %v844 = vsel %vm735, %v809, 0.0
        %v845 = vadd.f32 %v843, %v844
        %v846 = vsel %vm735, %v810, 0.0
        %v847 = vadd.f32 %v845, %v846
        %v848 = vsel %vm735, %v811, 0.0
        %v849 = vadd.f32 %v847, %v848
        %v850 = vsel %vm735, %v812, 0.0
        %v851 = vadd.f32 %v849, %v850
        %v852 = vsel %vm735, %v813, 0.0
        %v853 = vadd.f32 %v851, %v852
        %v854 = vsel %vm735, %v814, 0.0
        %v855 = vadd.f32 %v853, %v854
        %v856 = vsel %vm735, %v815, 0.0
        %v857 = vadd.f32 %v855, %v856
        %v858 = vsel %vm735, %v816, 0.0
        %v859 = vadd.f32 %v857, %v858
        %v860 = vsel %vm735, %v817, 0.0
        %v861 = vadd.f32 %v859, %v860
        %v862 = vsel %vm735, %v818, 0.0
        %v863 = vadd.f32 %v861, %v862
        %v864 = vsel %vm735, %v819, 0.0
        %v865 = vadd.f32 %v863, %v864
        %v866 = vsel %vm735, %v820, 0.0
        %v867 = vadd.f32 %v865, %v866
        %v868 = vsel %vm735, %v821, 0.0
        %v869 = vadd.f32 %v867, %v868
        %v870 = vsel %vm735, %v822, 0.0
        %v871 = vadd.f32 %v869, %v870
        %v872 = vsel %vm735, %v823, 0.0
        %v873 = vadd.f32 %v871, %v872
        %v874 = vsel %vm735, %v824, 0.0
        %v875 = vadd.f32 %v873, %v874
        %v876 = vsel %vm735, %v825, 0.0
        %v877 = vadd.f32 %v875, %v876
        %v878 = vsel %vm735, %v826, 0.0
        %v879 = vadd.f32 %v877, %v878
        %v880 = vsel %vm735, %v827, 0.0
        %v881 = vadd.f32 %v879, %v880
        %v882 = vsel %vm735, %v828, 0.0
        %v883 = vadd.f32 %v881, %v882
        %v884 = vsel %vm735, %v829, 0.0
        %v885 = vadd.f32 %v883, %v884
        %v886 = vsel %vm735, %v830, 0.0
        %v887 = vadd.f32 %v885, %v886
        %v888 = vsel %vm735, %v831, 0.0
        %v889 = vadd.f32 %v887, %v888
        %v890 = vsel %vm735, %v832, 0.0
        %v891 = vadd.f32 %v889, %v890
        %v892 = vsel %vm735, %v833, 0.0
        %v893 = vadd.f32 %v891, %v892
        %v894 = vsel %vm735, %v834, 0.0
        %v895 = vadd.f32 %v893, %v894
        %v896 = vsel %vm735, %v835, 0.0
        %v897 = vadd.f32 %v895, %v896
        %v898 = vsel %vm735, %v836, 0.0
        %v899 = vadd.f32 %v897, %v898
        %v900 = vrot.slane %v899, 4
        %v901 = vadd.f32 %v899, %v900
        %v902 = vrot.slane %v901, 2
        %v903 = vadd.f32 %v901, %v902
        %v904 = vrot.slane %v903, 1
        %v905 = vadd.f32 %v903, %v904
        %v906 = vmul.f32 %v804, 0.00390625
        %v907 = vmul.f32 %v905, 0.00390625
        %v908 = vmul.f32 %v906, %v906
        %v909 = vsub.f32 %v907, %v908
        %v910 = vmax.f32 %v909, 0.0
        %v911 = vadd.f32 %v910, 1e-05
        %v912 = vrsqrt.pop %v911
        %v913 = vmul.f32 %v912, %v911
        %v914 = vmul.f32 %v913, %v912
        %v915 = vmul.f32 0.5, %v914
        %v916 = vsub.f32 1.5, %v915
        %v917 = vmul.f32 %v912, %v916
        %vm918 = vweird.f32 %v911
        %vm919 = vweird.f32 %v912
        %vm920 = vmor %vm918, %vm919
        %v921 = vsel %vm920, %v912, %v917
        %v922 = vmul.f32 %v733, %v921
        %v923 = vmul.f32 %v906, %v922
        %v924 = vsub.f32 %v734, %v923
        %v926 = vperm.slane %v922, 0
        %v928 = vmul.f32 %v654, %v926
        %v929 = vmul.f32 %v656, %v926
        %v930 = vmul.f32 %v659, %v926
        %v931 = vmul.f32 %v661, %v926
        %v932 = vmul.f32 %v664, %v926
        %v933 = vmul.f32 %v666, %v926
        %v934 = vmul.f32 %v669, %v926
        %v935 = vmul.f32 %v671, %v926
        %v936 = vmul.f32 %v674, %v926
        %v937 = vmul.f32 %v676, %v926
        %v938 = vmul.f32 %v679, %v926
        %v939 = vmul.f32 %v681, %v926
        %v940 = vmul.f32 %v684, %v926
        %v941 = vmul.f32 %v686, %v926
        %v942 = vmul.f32 %v689, %v926
        %v943 = vmul.f32 %v691, %v926
        %v944 = vmul.f32 %v694, %v926
        %v945 = vmul.f32 %v696, %v926
        %v946 = vmul.f32 %v699, %v926
        %v947 = vmul.f32 %v701, %v926
        %v948 = vmul.f32 %v704, %v926
        %v949 = vmul.f32 %v706, %v926
        %v950 = vmul.f32 %v709, %v926
        %v951 = vmul.f32 %v711, %v926
        %v952 = vmul.f32 %v714, %v926
        %v953 = vmul.f32 %v716, %v926
        %v954 = vmul.f32 %v719, %v926
        %v955 = vmul.f32 %v721, %v926
        %v956 = vmul.f32 %v724, %v926
        %v957 = vmul.f32 %v726, %v926
        %v958 = vmul.f32 %v729, %v926
        %v959 = vmul.f32 %v731, %v926
        %v961 = vperm.slane %v924, 0
        %v963 = vadd.f32 %v928, %v961
        %v964 = vadd.f32 %v929, %v961
        %v965 = vadd.f32 %v930, %v961
        %v966 = vadd.f32 %v931, %v961
        %v967 = vadd.f32 %v932, %v961
        %v968 = vadd.f32 %v933, %v961
        %v969 = vadd.f32 %v934, %v961
        %v970 = vadd.f32 %v935, %v961
        %v971 = vadd.f32 %v936, %v961
        %v972 = vadd.f32 %v937, %v961
        %v973 = vadd.f32 %v938, %v961
        %v974 = vadd.f32 %v939, %v961
        %v975 = vadd.f32 %v940, %v961
        %v976 = vadd.f32 %v941, %v961
        %v977 = vadd.f32 %v942, %v961
        %v978 = vadd.f32 %v943, %v961
        %v979 = vadd.f32 %v944, %v961
        %v980 = vadd.f32 %v945, %v961
        %v981 = vadd.f32 %v946, %v961
        %v982 = vadd.f32 %v947, %v961
        %v983 = vadd.f32 %v948, %v961
        %v984 = vadd.f32 %v949, %v961
        %v985 = vadd.f32 %v950, %v961
        %v986 = vadd.f32 %v951, %v961
        %v987 = vadd.f32 %v952, %v961
        %v988 = vadd.f32 %v953, %v961
        %v989 = vadd.f32 %v954, %v961
        %v990 = vadd.f32 %v955, %v961
        %v991 = vadd.f32 %v956, %v961
        %v992 = vadd.f32 %v957, %v961
        %v993 = vadd.f32 %v958, %v961
        %v994 = vadd.f32 %v959, %v961
        %v995 = vmax.f32 %v963, 0.0
        %v996 = vmax.f32 %v964, 0.0
        %v997 = vmax.f32 %v965, 0.0
        %v998 = vmax.f32 %v966, 0.0
        %v999 = vmax.f32 %v967, 0.0
        %v1000 = vmax.f32 %v968, 0.0
        %v1001 = vmax.f32 %v969, 0.0
        %v1002 = vmax.f32 %v970, 0.0
        %v1003 = vmax.f32 %v971, 0.0
        %v1004 = vmax.f32 %v972, 0.0
        %v1005 = vmax.f32 %v973, 0.0
        %v1006 = vmax.f32 %v974, 0.0
        %v1007 = vmax.f32 %v975, 0.0
        %v1008 = vmax.f32 %v976, 0.0
        %v1009 = vmax.f32 %v977, 0.0
        %v1010 = vmax.f32 %v978, 0.0
        %v1011 = vmax.f32 %v979, 0.0
        %v1012 = vmax.f32 %v980, 0.0
        %v1013 = vmax.f32 %v981, 0.0
        %v1014 = vmax.f32 %v982, 0.0
        %v1015 = vmax.f32 %v983, 0.0
        %v1016 = vmax.f32 %v984, 0.0
        %v1017 = vmax.f32 %v985, 0.0
        %v1018 = vmax.f32 %v986, 0.0
        %v1019 = vmax.f32 %v987, 0.0
        %v1020 = vmax.f32 %v988, 0.0
        %v1021 = vmax.f32 %v989, 0.0
        %v1022 = vmax.f32 %v990, 0.0
        %v1023 = vmax.f32 %v991, 0.0
        %v1024 = vmax.f32 %v992, 0.0
        %v1025 = vmax.f32 %v993, 0.0
        %v1026 = vmax.f32 %v994, 0.0
        %v1027 = vpack.c.bf16 %v995, %v995
        %v1028 = vpack.c.bf16 %v996, %v996
        %v1029 = vpack.c.bf16 %v997, %v997
        %v1030 = vpack.c.bf16 %v998, %v998
        %v1031 = vpack.c.bf16 %v999, %v999
        %v1032 = vpack.c.bf16 %v1000, %v1000
        %v1033 = vpack.c.bf16 %v1001, %v1001
        %v1034 = vpack.c.bf16 %v1002, %v1002
        %v1035 = vpack.c.bf16 %v1003, %v1003
        %v1036 = vpack.c.bf16 %v1004, %v1004
        %v1037 = vpack.c.bf16 %v1005, %v1005
        %v1038 = vpack.c.bf16 %v1006, %v1006
        %v1039 = vpack.c.bf16 %v1007, %v1007
        %v1040 = vpack.c.bf16 %v1008, %v1008
        %v1041 = vpack.c.bf16 %v1009, %v1009
        %v1042 = vpack.c.bf16 %v1010, %v1010
        %v1043 = vpack.c.bf16 %v1011, %v1011
        %v1044 = vpack.c.bf16 %v1012, %v1012
        %v1045 = vpack.c.bf16 %v1013, %v1013
        %v1046 = vpack.c.bf16 %v1014, %v1014
        %v1047 = vpack.c.bf16 %v1015, %v1015
        %v1048 = vpack.c.bf16 %v1016, %v1016
        %v1049 = vpack.c.bf16 %v1017, %v1017
        %v1050 = vpack.c.bf16 %v1018, %v1018
        %v1051 = vpack.c.bf16 %v1019, %v1019
        %v1052 = vpack.c.bf16 %v1020, %v1020
        %v1053 = vpack.c.bf16 %v1021, %v1021
        %v1054 = vpack.c.bf16 %v1022, %v1022
        %v1055 = vpack.c.bf16 %v1023, %v1023
        %v1056 = vpack.c.bf16 %v1024, %v1024
        %v1057 = vpack.c.bf16 %v1025, %v1025
        %v1058 = vpack.c.bf16 %v1026, %v1026
        %v1059 = vld [vmem:[%s1] sm:$0xf]
        %v1060 = vld [vmem:[%s1 + $0x4] sm:$0xf]
        %v1061 = vld [vmem:[%s1 + $0x8] sm:$0xf]
        %v1062 = vld [vmem:[%s1 + $0xc] sm:$0xf]
        %v1063 = vld [vmem:[%s1 + $0x10] sm:$0xf]
        %v1064 = vld [vmem:[%s1 + $0x14] sm:$0xf]
        %v1065 = vld [vmem:[%s1 + $0x18] sm:$0xf]
        %v1066 = vld [vmem:[%s1 + $0x1c] sm:$0xf]
        %v1067 = vld [vmem:[%s1 + $0x20] sm:$0xf]
        %v1068 = vld [vmem:[%s1 + $0x24] sm:$0xf]
        %v1069 = vld [vmem:[%s1 + $0x28] sm:$0xf]
        %v1070 = vld [vmem:[%s1 + $0x2c] sm:$0xf]
        %v1071 = vld [vmem:[%s1 + $0x30] sm:$0xf]
        %v1072 = vld [vmem:[%s1 + $0x34] sm:$0xf]
        %v1073 = vld [vmem:[%s1 + $0x38] sm:$0xf]
        %v1074 = vld [vmem:[%s1 + $0x3c] sm:$0xf]
        %v1075 = vld [vmem:[%s1 + $0x40] sm:$0xf]
        %v1076 = vld [vmem:[%s1 + $0x44] sm:$0xf]
        %v1077 = vld [vmem:[%s1 + $0x48] sm:$0xf]
        %v1078 = vld [vmem:[%s1 + $0x4c] sm:$0xf]
        %v1079 = vld [vmem:[%s1 + $0x50] sm:$0xf]
        %v1080 = vld [vmem:[%s1 + $0x54] sm:$0xf]
        %v1081 = vld [vmem:[%s1 + $0x58] sm:$0xf]
        %v1082 = vld [vmem:[%s1 + $0x5c] sm:$0xf]
        %v1083 = vld [vmem:[%s1 + $0x60] sm:$0xf]
        %v1084 = vld [vmem:[%s1 + $0x64] sm:$0xf]
        %v1085 = vld [vmem:[%s1 + $0x68] sm:$0xf]
        %v1086 = vld [vmem:[%s1 + $0x6c] sm:$0xf]
        %v1087 = vld [vmem:[%s1 + $0x70] sm:$0xf]
        %v1088 = vld [vmem:[%s1 + $0x74] sm:$0xf]
        %v1089 = vld [vmem:[%s1 + $0x78] sm:$0xf]
        %v1090 = vld [vmem:[%s1 + $0x7c] sm:$0xf]
        %s1091 = scalar_lea.vmem %s1, 128
        %v1092 = vld [vmem:[%s1091] sm:$0xf]
        %v1093 = vld [vmem:[%s1091 + $0x4] sm:$0xf]
        %v1094 = vld [vmem:[%s1091 + $0x8] sm:$0xf]
        %v1095 = vld [vmem:[%s1091 + $0xc] sm:$0xf]
        %v1096 = vld [vmem:[%s1091 + $0x10] sm:$0xf]
        %v1097 = vld [vmem:[%s1091 + $0x14] sm:$0xf]
        %v1098 = vld [vmem:[%s1091 + $0x18] sm:$0xf]
        %v1099 = vld [vmem:[%s1091 + $0x1c] sm:$0xf]
        %v1100 = vld [vmem:[%s1091 + $0x20] sm:$0xf]
        %v1101 = vld [vmem:[%s1091 + $0x24] sm:$0xf]
        %v1102 = vld [vmem:[%s1091 + $0x28] sm:$0xf]
        %v1103 = vld [vmem:[%s1091 + $0x2c] sm:$0xf]
        %v1104 = vld [vmem:[%s1091 + $0x30] sm:$0xf]
        %v1105 = vld [vmem:[%s1091 + $0x34] sm:$0xf]
        %v1106 = vld [vmem:[%s1091 + $0x38] sm:$0xf]
        %v1107 = vld [vmem:[%s1091 + $0x3c] sm:$0xf]
        %v1108 = vld [vmem:[%s1091 + $0x40] sm:$0xf]
        %v1109 = vld [vmem:[%s1091 + $0x44] sm:$0xf]
        %v1110 = vld [vmem:[%s1091 + $0x48] sm:$0xf]
        %v1111 = vld [vmem:[%s1091 + $0x4c] sm:$0xf]
        %v1112 = vld [vmem:[%s1091 + $0x50] sm:$0xf]
        %v1113 = vld [vmem:[%s1091 + $0x54] sm:$0xf]
        %v1114 = vld [vmem:[%s1091 + $0x58] sm:$0xf]
        %v1115 = vld [vmem:[%s1091 + $0x5c] sm:$0xf]
        %v1116 = vld [vmem:[%s1091 + $0x60] sm:$0xf]
        %v1117 = vld [vmem:[%s1091 + $0x64] sm:$0xf]
        %v1118 = vld [vmem:[%s1091 + $0x68] sm:$0xf]
        %v1119 = vld [vmem:[%s1091 + $0x6c] sm:$0xf]
        %v1120 = vld [vmem:[%s1091 + $0x70] sm:$0xf]
        %v1121 = vld [vmem:[%s1091 + $0x74] sm:$0xf]
        %v1122 = vld [vmem:[%s1091 + $0x78] sm:$0xf]
        %v1123 = vld [vmem:[%s1091 + $0x7c] sm:$0xf]
        %v1156 = vunpack.c.l.b16 %v1027
        %v1157 = vunpack.c.l.b16 %v1028
        %v1158 = vunpack.c.l.b16 %v1029
        %v1159 = vunpack.c.l.b16 %v1030
        %v1160 = vunpack.c.l.b16 %v1031
        %v1161 = vunpack.c.l.b16 %v1032
        %v1162 = vunpack.c.l.b16 %v1033
        %v1163 = vunpack.c.l.b16 %v1034
        %v1164 = vunpack.c.l.b16 %v1035
        %v1165 = vunpack.c.l.b16 %v1036
        %v1166 = vunpack.c.l.b16 %v1037
        %v1167 = vunpack.c.l.b16 %v1038
        %v1168 = vunpack.c.l.b16 %v1039
        %v1169 = vunpack.c.l.b16 %v1040
        %v1170 = vunpack.c.l.b16 %v1041
        %v1171 = vunpack.c.l.b16 %v1042
        %v1172 = vunpack.c.l.b16 %v1043
        %v1173 = vunpack.c.l.b16 %v1044
        %v1174 = vunpack.c.l.b16 %v1045
        %v1175 = vunpack.c.l.b16 %v1046
        %v1176 = vunpack.c.l.b16 %v1047
        %v1177 = vunpack.c.l.b16 %v1048
        %v1178 = vunpack.c.l.b16 %v1049
        %v1179 = vunpack.c.l.b16 %v1050
        %v1180 = vunpack.c.l.b16 %v1051
        %v1181 = vunpack.c.l.b16 %v1052
        %v1182 = vunpack.c.l.b16 %v1053
        %v1183 = vunpack.c.l.b16 %v1054
        %v1184 = vunpack.c.l.b16 %v1055
        %v1185 = vunpack.c.l.b16 %v1056
        %v1186 = vunpack.c.l.b16 %v1057
        %v1187 = vunpack.c.l.b16 %v1058
        %v1188 = vpack.c.b16 %v1157, %v1156
        %v1189 = vpack.c.b16 %v1159, %v1158
        %v1190 = vpack.c.b16 %v1161, %v1160
        %v1191 = vpack.c.b16 %v1163, %v1162
        %v1192 = vpack.c.b16 %v1165, %v1164
        %v1193 = vpack.c.b16 %v1167, %v1166
        %v1194 = vpack.c.b16 %v1169, %v1168
        %v1195 = vpack.c.b16 %v1171, %v1170
        %v1196 = vpack.c.b16 %v1173, %v1172
        %v1197 = vpack.c.b16 %v1175, %v1174
        %v1198 = vpack.c.b16 %v1177, %v1176
        %v1199 = vpack.c.b16 %v1179, %v1178
        %v1200 = vpack.c.b16 %v1181, %v1180
        %v1201 = vpack.c.b16 %v1183, %v1182
        %v1202 = vpack.c.b16 %v1185, %v1184
        %v1203 = vpack.c.b16 %v1187, %v1186
        %vm1204 = vsmask.f32 256
        %v1206 = vshrl.u32 %v1188, 16
        %v1208 = vrot.slane %v1206, 7
        %v1209 = vshll.u32 %v1188, 16
        %v1211 = vor.u32 %v1208, %v1209
        %v1213 = vshrl.u32 %v1189, 16
        %v1215 = vrot.slane %v1213, 7
        %v1216 = vshll.u32 %v1189, 16
        %v1218 = vor.u32 %v1215, %v1216
        %v1219 = vsel %vm1204, %v1208, %v1218
        %v1221 = vshrl.u32 %v1190, 16
        %v1223 = vrot.slane %v1221, 7
        %v1224 = vshll.u32 %v1190, 16
        %v1226 = vor.u32 %v1223, %v1224
        %v1227 = vsel %vm1204, %v1215, %v1226
        %v1229 = vshrl.u32 %v1191, 16
        %v1231 = vrot.slane %v1229, 7
        %v1232 = vshll.u32 %v1191, 16
        %v1234 = vor.u32 %v1231, %v1232
        %v1235 = vsel %vm1204, %v1223, %v1234
        %v1237 = vshrl.u32 %v1192, 16
        %v1239 = vrot.slane %v1237, 7
        %v1240 = vshll.u32 %v1192, 16
        %v1242 = vor.u32 %v1239, %v1240
        %v1243 = vsel %vm1204, %v1231, %v1242
        %v1245 = vshrl.u32 %v1193, 16
        %v1247 = vrot.slane %v1245, 7
        %v1248 = vshll.u32 %v1193, 16
        %v1250 = vor.u32 %v1247, %v1248
        %v1251 = vsel %vm1204, %v1239, %v1250
        %v1253 = vshrl.u32 %v1194, 16
        %v1255 = vrot.slane %v1253, 7
        %v1256 = vshll.u32 %v1194, 16
        %v1258 = vor.u32 %v1255, %v1256
        %v1259 = vsel %vm1204, %v1247, %v1258
        %v1261 = vshrl.u32 %v1195, 16
        %v1263 = vrot.slane %v1261, 7
        %v1264 = vshll.u32 %v1195, 16
        %v1266 = vor.u32 %v1263, %v1264
        %v1267 = vsel %vm1204, %v1255, %v1266
        %v1269 = vshrl.u32 %v1196, 16
        %v1271 = vrot.slane %v1269, 7
        %v1272 = vshll.u32 %v1196, 16
        %v1274 = vor.u32 %v1271, %v1272
        %v1275 = vsel %vm1204, %v1263, %v1274
        %v1277 = vshrl.u32 %v1197, 16
        %v1279 = vrot.slane %v1277, 7
        %v1280 = vshll.u32 %v1197, 16
        %v1282 = vor.u32 %v1279, %v1280
        %v1283 = vsel %vm1204, %v1271, %v1282
        %v1285 = vshrl.u32 %v1198, 16
        %v1287 = vrot.slane %v1285, 7
        %v1288 = vshll.u32 %v1198, 16
        %v1290 = vor.u32 %v1287, %v1288
        %v1291 = vsel %vm1204, %v1279, %v1290
        %v1293 = vshrl.u32 %v1199, 16
        %v1295 = vrot.slane %v1293, 7
        %v1296 = vshll.u32 %v1199, 16
        %v1298 = vor.u32 %v1295, %v1296
        %v1299 = vsel %vm1204, %v1287, %v1298
        %v1301 = vshrl.u32 %v1200, 16
        %v1303 = vrot.slane %v1301, 7
        %v1304 = vshll.u32 %v1200, 16
        %v1306 = vor.u32 %v1303, %v1304
        %v1307 = vsel %vm1204, %v1295, %v1306
        %v1309 = vshrl.u32 %v1201, 16
        %v1311 = vrot.slane %v1309, 7
        %v1312 = vshll.u32 %v1201, 16
        %v1314 = vor.u32 %v1311, %v1312
        %v1315 = vsel %vm1204, %v1303, %v1314
        %v1317 = vshrl.u32 %v1202, 16
        %v1319 = vrot.slane %v1317, 7
        %v1320 = vshll.u32 %v1202, 16
        %v1322 = vor.u32 %v1319, %v1320
        %v1323 = vsel %vm1204, %v1311, %v1322
        %v1325 = vshrl.u32 %v1203, 16
        %v1327 = vrot.slane %v1325, 7
        %v1328 = vshll.u32 %v1203, 16
        %v1330 = vor.u32 %v1327, %v1328
        %v1331 = vsel %vm1204, %v1319, %v1330
        %vm1348 = vcmask 1040384
        %vm1349 = vmand %vm1348, %vm1204
        %v1350 = vsel %vm1349, 0, %v1211
        %1352 = vset.pattern.permute.xlu0 0
        %1353 = vperm.xlu0 %1352, %v1059
        %v1354 = vpop.permute.xlu0 %1353
        %v1357 = vunpack.c.l.s4 839922192
        %v1358 = vunpack.c.0.s8 %v1357
        %v1359 = vperm.slane %v1354, %v1358
        %1361 = vset.pattern.permute.xlu0 0
        %1362 = vperm.xlu0 %1361, %v1060
        %v1363 = vpop.permute.xlu0 %1362
        %v1366 = vunpack.c.l.s4 839922192
        %v1367 = vunpack.c.0.s8 %v1366
        %v1368 = vperm.slane %v1363, %v1367
        %1370 = vset.pattern.permute.xlu0 0
        %1371 = vperm.xlu0 %1370, %v1061
        %v1372 = vpop.permute.xlu0 %1371
        %v1375 = vunpack.c.l.s4 839922192
        %v1376 = vunpack.c.0.s8 %v1375
        %v1377 = vperm.slane %v1372, %v1376
        %1379 = vset.pattern.permute.xlu0 0
        %1380 = vperm.xlu0 %1379, %v1062
        %v1381 = vpop.permute.xlu0 %1380
        %v1384 = vunpack.c.l.s4 839922192
        %v1385 = vunpack.c.0.s8 %v1384
        %v1386 = vperm.slane %v1381, %v1385
        %1388 = vset.pattern.permute.xlu0 0
        %1389 = vperm.xlu0 %1388, %v1063
        %v1390 = vpop.permute.xlu0 %1389
        %v1393 = vunpack.c.l.s4 839922192
        %v1394 = vunpack.c.0.s8 %v1393
        %v1395 = vperm.slane %v1390, %v1394
        %1397 = vset.pattern.permute.xlu0 0
        %1398 = vperm.xlu0 %1397, %v1064
        %v1399 = vpop.permute.xlu0 %1398
        %v1402 = vunpack.c.l.s4 839922192
        %v1403 = vunpack.c.0.s8 %v1402
        %v1404 = vperm.slane %v1399, %v1403
        %1406 = vset.pattern.permute.xlu0 0
        %1407 = vperm.xlu0 %1406, %v1065
        %v1408 = vpop.permute.xlu0 %1407
        %v1411 = vunpack.c.l.s4 839922192
        %v1412 = vunpack.c.0.s8 %v1411
        %v1413 = vperm.slane %v1408, %v1412
        %1415 = vset.pattern.permute.xlu0 0
        %1416 = vperm.xlu0 %1415, %v1066
        %v1417 = vpop.permute.xlu0 %1416
        %v1420 = vunpack.c.l.s4 839922192
        %v1421 = vunpack.c.0.s8 %v1420
        %v1422 = vperm.slane %v1417, %v1421
        %1424 = vset.pattern.permute.xlu0 0
        %1425 = vperm.xlu0 %1424, %v1067
        %v1426 = vpop.permute.xlu0 %1425
        %v1429 = vunpack.c.l.s4 839922192
        %v1430 = vunpack.c.0.s8 %v1429
        %v1431 = vperm.slane %v1426, %v1430
        %1433 = vset.pattern.permute.xlu0 0
        %1434 = vperm.xlu0 %1433, %v1068
        %v1435 = vpop.permute.xlu0 %1434
        %v1438 = vunpack.c.l.s4 839922192
        %v1439 = vunpack.c.0.s8 %v1438
        %v1440 = vperm.slane %v1435, %v1439
        %1442 = vset.pattern.permute.xlu0 0
        %1443 = vperm.xlu0 %1442, %v1069
        %v1444 = vpop.permute.xlu0 %1443
        %v1447 = vunpack.c.l.s4 839922192
        %v1448 = vunpack.c.0.s8 %v1447
        %v1449 = vperm.slane %v1444, %v1448
        %1451 = vset.pattern.permute.xlu0 0
        %1452 = vperm.xlu0 %1451, %v1070
        %v1453 = vpop.permute.xlu0 %1452
        %v1456 = vunpack.c.l.s4 839922192
        %v1457 = vunpack.c.0.s8 %v1456
        %v1458 = vperm.slane %v1453, %v1457
        %1460 = vset.pattern.permute.xlu0 0
        %1461 = vperm.xlu0 %1460, %v1071
        %v1462 = vpop.permute.xlu0 %1461
        %v1465 = vunpack.c.l.s4 839922192
        %v1466 = vunpack.c.0.s8 %v1465
        %v1467 = vperm.slane %v1462, %v1466
        %1469 = vset.pattern.permute.xlu0 0
        %1470 = vperm.xlu0 %1469, %v1072
        %v1471 = vpop.permute.xlu0 %1470
        %v1474 = vunpack.c.l.s4 839922192
        %v1475 = vunpack.c.0.s8 %v1474
        %v1476 = vperm.slane %v1471, %v1475
        %1478 = vset.pattern.permute.xlu0 0
        %1479 = vperm.xlu0 %1478, %v1073
        %v1480 = vpop.permute.xlu0 %1479
        %v1483 = vunpack.c.l.s4 839922192
        %v1484 = vunpack.c.0.s8 %v1483
        %v1485 = vperm.slane %v1480, %v1484
        %1487 = vset.pattern.permute.xlu0 0
        %1488 = vperm.xlu0 %1487, %v1074
        %v1489 = vpop.permute.xlu0 %1488
        %v1492 = vunpack.c.l.s4 839922192
        %v1493 = vunpack.c.0.s8 %v1492
        %v1494 = vperm.slane %v1489, %v1493
        %1496 = vset.pattern.permute.xlu0 0
        %1497 = vperm.xlu0 %1496, %v1075
        %v1498 = vpop.permute.xlu0 %1497
        %v1501 = vunpack.c.l.s4 839922192
        %v1502 = vunpack.c.0.s8 %v1501
        %v1503 = vperm.slane %v1498, %v1502
        %1505 = vset.pattern.permute.xlu0 0
        %1506 = vperm.xlu0 %1505, %v1076
        %v1507 = vpop.permute.xlu0 %1506
        %v1510 = vunpack.c.l.s4 839922192
        %v1511 = vunpack.c.0.s8 %v1510
        %v1512 = vperm.slane %v1507, %v1511
        %1514 = vset.pattern.permute.xlu0 0
        %1515 = vperm.xlu0 %1514, %v1077
        %v1516 = vpop.permute.xlu0 %1515
        %v1519 = vunpack.c.l.s4 839922192
        %v1520 = vunpack.c.0.s8 %v1519
        %v1521 = vperm.slane %v1516, %v1520
        %1523 = vset.pattern.permute.xlu0 0
        %1524 = vperm.xlu0 %1523, %v1078
        %v1525 = vpop.permute.xlu0 %1524
        %v1528 = vunpack.c.l.s4 839922192
        %v1529 = vunpack.c.0.s8 %v1528
        %v1530 = vperm.slane %v1525, %v1529
        %1532 = vset.pattern.permute.xlu0 0
        %1533 = vperm.xlu0 %1532, %v1079
        %v1534 = vpop.permute.xlu0 %1533
        %v1537 = vunpack.c.l.s4 839922192
        %v1538 = vunpack.c.0.s8 %v1537
        %v1539 = vperm.slane %v1534, %v1538
        %1541 = vset.pattern.permute.xlu0 0
        %1542 = vperm.xlu0 %1541, %v1080
        %v1543 = vpop.permute.xlu0 %1542
        %v1546 = vunpack.c.l.s4 839922192
        %v1547 = vunpack.c.0.s8 %v1546
        %v1548 = vperm.slane %v1543, %v1547
        %1550 = vset.pattern.permute.xlu0 0
        %1551 = vperm.xlu0 %1550, %v1081
        %v1552 = vpop.permute.xlu0 %1551
        %v1555 = vunpack.c.l.s4 839922192
        %v1556 = vunpack.c.0.s8 %v1555
        %v1557 = vperm.slane %v1552, %v1556
        %1559 = vset.pattern.permute.xlu0 0
        %1560 = vperm.xlu0 %1559, %v1082
        %v1561 = vpop.permute.xlu0 %1560
        %v1564 = vunpack.c.l.s4 839922192
        %v1565 = vunpack.c.0.s8 %v1564
        %v1566 = vperm.slane %v1561, %v1565
        %1568 = vset.pattern.permute.xlu0 0
        %1569 = vperm.xlu0 %1568, %v1083
        %v1570 = vpop.permute.xlu0 %1569
        %v1573 = vunpack.c.l.s4 839922192
        %v1574 = vunpack.c.0.s8 %v1573
        %v1575 = vperm.slane %v1570, %v1574
        %1577 = vset.pattern.permute.xlu0 0
        %1578 = vperm.xlu0 %1577, %v1084
        %v1579 = vpop.permute.xlu0 %1578
        %v1582 = vunpack.c.l.s4 839922192
        %v1583 = vunpack.c.0.s8 %v1582
        %v1584 = vperm.slane %v1579, %v1583
        %1586 = vset.pattern.permute.xlu0 0
        %1587 = vperm.xlu0 %1586, %v1085
        %v1588 = vpop.permute.xlu0 %1587
        %v1591 = vunpack.c.l.s4 839922192
        %v1592 = vunpack.c.0.s8 %v1591
        %v1593 = vperm.slane %v1588, %v1592
        %1595 = vset.pattern.permute.xlu0 0
        %1596 = vperm.xlu0 %1595, %v1086
        %v1597 = vpop.permute.xlu0 %1596
        %v1600 = vunpack.c.l.s4 839922192
        %v1601 = vunpack.c.0.s8 %v1600
        %v1602 = vperm.slane %v1597, %v1601
        %1604 = vset.pattern.permute.xlu0 0
        %1605 = vperm.xlu0 %1604, %v1087
        %v1606 = vpop.permute.xlu0 %1605
        %v1609 = vunpack.c.l.s4 839922192
        %v1610 = vunpack.c.0.s8 %v1609
        %v1611 = vperm.slane %v1606, %v1610
        %1613 = vset.pattern.permute.xlu0 0
        %1614 = vperm.xlu0 %1613, %v1088
        %v1615 = vpop.permute.xlu0 %1614
        %v1618 = vunpack.c.l.s4 839922192
        %v1619 = vunpack.c.0.s8 %v1618
        %v1620 = vperm.slane %v1615, %v1619
        %1622 = vset.pattern.permute.xlu0 0
        %1623 = vperm.xlu0 %1622, %v1089
        %v1624 = vpop.permute.xlu0 %1623
        %v1627 = vunpack.c.l.s4 839922192
        %v1628 = vunpack.c.0.s8 %v1627
        %v1629 = vperm.slane %v1624, %v1628
        %1631 = vset.pattern.permute.xlu0 0
        %1632 = vperm.xlu0 %1631, %v1090
        %v1633 = vpop.permute.xlu0 %1632
        %v1636 = vunpack.c.l.s4 839922192
        %v1637 = vunpack.c.0.s8 %v1636
        %v1638 = vperm.slane %v1633, %v1637
        %v1639 = vunpack.c.l.bf16 %v1350
        %v1640 = vunpack.c.h.bf16 %v1350
        %v1641 = vunpack.c.l.bf16 %v1219
        %v1642 = vunpack.c.h.bf16 %v1219
        %v1643 = vunpack.c.l.bf16 %v1227
        %v1644 = vunpack.c.h.bf16 %v1227
        %v1645 = vunpack.c.l.bf16 %v1235
        %v1646 = vunpack.c.h.bf16 %v1235
        %v1647 = vunpack.c.l.bf16 %v1243
        %v1648 = vunpack.c.h.bf16 %v1243
        %v1649 = vunpack.c.l.bf16 %v1251
        %v1650 = vunpack.c.h.bf16 %v1251
        %v1651 = vunpack.c.l.bf16 %v1259
        %v1652 = vunpack.c.h.bf16 %v1259
        %v1653 = vunpack.c.l.bf16 %v1267
        %v1654 = vunpack.c.h.bf16 %v1267
        %v1655 = vunpack.c.l.bf16 %v1275
        %v1656 = vunpack.c.h.bf16 %v1275
        %v1657 = vunpack.c.l.bf16 %v1283
        %v1658 = vunpack.c.h.bf16 %v1283
        %v1659 = vunpack.c.l.bf16 %v1291
        %v1660 = vunpack.c.h.bf16 %v1291
        %v1661 = vunpack.c.l.bf16 %v1299
        %v1662 = vunpack.c.h.bf16 %v1299
        %v1663 = vunpack.c.l.bf16 %v1307
        %v1664 = vunpack.c.h.bf16 %v1307
        %v1665 = vunpack.c.l.bf16 %v1315
        %v1666 = vunpack.c.h.bf16 %v1315
        %v1667 = vunpack.c.l.bf16 %v1323
        %v1668 = vunpack.c.h.bf16 %v1323
        %v1669 = vunpack.c.l.bf16 %v1331
        %v1670 = vunpack.c.h.bf16 %v1331
        %v1671 = vunpack.c.l.bf16 %v1359
        %v1672 = vunpack.c.l.bf16 %v1368
        %v1673 = vunpack.c.l.bf16 %v1377
        %v1674 = vunpack.c.l.bf16 %v1386
        %v1675 = vunpack.c.l.bf16 %v1395
        %v1676 = vunpack.c.l.bf16 %v1404
        %v1677 = vunpack.c.l.bf16 %v1413
        %v1678 = vunpack.c.l.bf16 %v1422
        %v1679 = vunpack.c.l.bf16 %v1431
        %v1680 = vunpack.c.l.bf16 %v1440
        %v1681 = vunpack.c.l.bf16 %v1449
        %v1682 = vunpack.c.l.bf16 %v1458
        %v1683 = vunpack.c.l.bf16 %v1467
        %v1684 = vunpack.c.l.bf16 %v1476
        %v1685 = vunpack.c.l.bf16 %v1485
        %v1686 = vunpack.c.l.bf16 %v1494
        %v1687 = vunpack.c.l.bf16 %v1503
        %v1688 = vunpack.c.l.bf16 %v1512
        %v1689 = vunpack.c.l.bf16 %v1521
        %v1690 = vunpack.c.l.bf16 %v1530
        %v1691 = vunpack.c.l.bf16 %v1539
        %v1692 = vunpack.c.l.bf16 %v1548
        %v1693 = vunpack.c.l.bf16 %v1557
        %v1694 = vunpack.c.l.bf16 %v1566
        %v1695 = vunpack.c.l.bf16 %v1575
        %v1696 = vunpack.c.l.bf16 %v1584
        %v1697 = vunpack.c.l.bf16 %v1593
        %v1698 = vunpack.c.l.bf16 %v1602
        %v1699 = vunpack.c.l.bf16 %v1611
        %v1700 = vunpack.c.l.bf16 %v1620
        %v1701 = vunpack.c.l.bf16 %v1629
        %v1702 = vunpack.c.l.bf16 %v1638
        %v1703 = vmul.f32 %v1639, %v1671
        %v1704 = vmul.f32 %v1640, %v1672
        %v1705 = vmul.f32 %v1641, %v1673
        %v1706 = vmul.f32 %v1642, %v1674
        %v1707 = vmul.f32 %v1643, %v1675
        %v1708 = vmul.f32 %v1644, %v1676
        %v1709 = vmul.f32 %v1645, %v1677
        %v1710 = vmul.f32 %v1646, %v1678
        %v1711 = vmul.f32 %v1647, %v1679
        %v1712 = vmul.f32 %v1648, %v1680
        %v1713 = vmul.f32 %v1649, %v1681
        %v1714 = vmul.f32 %v1650, %v1682
        %v1715 = vmul.f32 %v1651, %v1683
        %v1716 = vmul.f32 %v1652, %v1684
        %v1717 = vmul.f32 %v1653, %v1685
        %v1718 = vmul.f32 %v1654, %v1686
        %v1719 = vmul.f32 %v1655, %v1687
        %v1720 = vmul.f32 %v1656, %v1688
        %v1721 = vmul.f32 %v1657, %v1689
        %v1722 = vmul.f32 %v1658, %v1690
        %v1723 = vmul.f32 %v1659, %v1691
        %v1724 = vmul.f32 %v1660, %v1692
        %v1725 = vmul.f32 %v1661, %v1693
        %v1726 = vmul.f32 %v1662, %v1694
        %v1727 = vmul.f32 %v1663, %v1695
        %v1728 = vmul.f32 %v1664, %v1696
        %v1729 = vmul.f32 %v1665, %v1697
        %v1730 = vmul.f32 %v1666, %v1698
        %v1731 = vmul.f32 %v1667, %v1699
        %v1732 = vmul.f32 %v1668, %v1700
        %v1733 = vmul.f32 %v1669, %v1701
        %v1734 = vmul.f32 %v1670, %v1702
        %v1735 = vpack.c.bf16 %v1703, %v1703
        %v1736 = vpack.c.bf16 %v1704, %v1704
        %v1737 = vpack.c.bf16 %v1705, %v1705
        %v1738 = vpack.c.bf16 %v1706, %v1706
        %v1739 = vpack.c.bf16 %v1707, %v1707
        %v1740 = vpack.c.bf16 %v1708, %v1708
        %v1741 = vpack.c.bf16 %v1709, %v1709
        %v1742 = vpack.c.bf16 %v1710, %v1710
        %v1743 = vpack.c.bf16 %v1711, %v1711
        %v1744 = vpack.c.bf16 %v1712, %v1712
        %v1745 = vpack.c.bf16 %v1713, %v1713
        %v1746 = vpack.c.bf16 %v1714, %v1714
        %v1747 = vpack.c.bf16 %v1715, %v1715
        %v1748 = vpack.c.bf16 %v1716, %v1716
        %v1749 = vpack.c.bf16 %v1717, %v1717
        %v1750 = vpack.c.bf16 %v1718, %v1718
        %v1751 = vpack.c.bf16 %v1719, %v1719
        %v1752 = vpack.c.bf16 %v1720, %v1720
        %v1753 = vpack.c.bf16 %v1721, %v1721
        %v1754 = vpack.c.bf16 %v1722, %v1722
        %v1755 = vpack.c.bf16 %v1723, %v1723
        %v1756 = vpack.c.bf16 %v1724, %v1724
        %v1757 = vpack.c.bf16 %v1725, %v1725
        %v1758 = vpack.c.bf16 %v1726, %v1726
        %v1759 = vpack.c.bf16 %v1727, %v1727
        %v1760 = vpack.c.bf16 %v1728, %v1728
        %v1761 = vpack.c.bf16 %v1729, %v1729
        %v1762 = vpack.c.bf16 %v1730, %v1730
        %v1763 = vpack.c.bf16 %v1731, %v1731
        %v1764 = vpack.c.bf16 %v1732, %v1732
        %v1765 = vpack.c.bf16 %v1733, %v1733
        %v1766 = vpack.c.bf16 %v1734, %v1734
        %vm1767 = vsmask.f32 7424
        %v1768 = vrot.slane %v1209, 1
        %v1769 = vor.u32 %v1206, %v1768
        %v1770 = vrot.slane %v1216, 1
        %v1771 = vsel %vm1767, %v1769, %v1770
        %v1772 = vor.u32 %v1213, %v1770
        %v1773 = vrot.slane %v1224, 1
        %v1774 = vsel %vm1767, %v1772, %v1773
        %v1775 = vor.u32 %v1221, %v1773
        %v1776 = vrot.slane %v1232, 1
        %v1777 = vsel %vm1767, %v1775, %v1776
        %v1778 = vor.u32 %v1229, %v1776
        %v1779 = vrot.slane %v1240, 1
        %v1780 = vsel %vm1767, %v1778, %v1779
        %v1781 = vor.u32 %v1237, %v1779
        %v1782 = vrot.slane %v1248, 1
        %v1783 = vsel %vm1767, %v1781, %v1782
        %v1784 = vor.u32 %v1245, %v1782
        %v1785 = vrot.slane %v1256, 1
        %v1786 = vsel %vm1767, %v1784, %v1785
        %v1787 = vor.u32 %v1253, %v1785
        %v1788 = vrot.slane %v1264, 1
        %v1789 = vsel %vm1767, %v1787, %v1788
        %v1790 = vor.u32 %v1261, %v1788
        %v1791 = vrot.slane %v1272, 1
        %v1792 = vsel %vm1767, %v1790, %v1791
        %v1793 = vor.u32 %v1269, %v1791
        %v1794 = vrot.slane %v1280, 1
        %v1795 = vsel %vm1767, %v1793, %v1794
        %v1796 = vor.u32 %v1277, %v1794
        %v1797 = vrot.slane %v1288, 1
        %v1798 = vsel %vm1767, %v1796, %v1797
        %v1799 = vor.u32 %v1285, %v1797
        %v1800 = vrot.slane %v1296, 1
        %v1801 = vsel %vm1767, %v1799, %v1800
        %v1802 = vor.u32 %v1293, %v1800
        %v1803 = vrot.slane %v1304, 1
        %v1804 = vsel %vm1767, %v1802, %v1803
        %v1805 = vor.u32 %v1301, %v1803
        %v1806 = vrot.slane %v1312, 1
        %v1807 = vsel %vm1767, %v1805, %v1806
        %v1808 = vor.u32 %v1309, %v1806
        %v1809 = vrot.slane %v1320, 1
        %v1810 = vsel %vm1767, %v1808, %v1809
        %v1811 = vor.u32 %v1317, %v1809
        %v1812 = vrot.slane %v1328, 1
        %v1813 = vsel %vm1767, %v1811, %v1812
        %v1814 = vor.u32 %v1325, %v1812
        %vm1831 = vcmask 1047552
        %vm1832 = vmand %vm1831, %vm1767
        %v1833 = vsel %vm1832, %v1814, 0
        %1835 = vset.pattern.permute.xlu0 0
        %1836 = vperm.xlu0 %1835, %v1092
        %v1837 = vpop.permute.xlu0 %1836
        %v1840 = vunpack.c.l.s4 839922192
        %v1841 = vunpack.c.0.s8 %v1840
        %v1842 = vperm.slane %v1837, %v1841
        %1844 = vset.pattern.permute.xlu0 0
        %1845 = vperm.xlu0 %1844, %v1093
        %v1846 = vpop.permute.xlu0 %1845
        %v1849 = vunpack.c.l.s4 839922192
        %v1850 = vunpack.c.0.s8 %v1849
        %v1851 = vperm.slane %v1846, %v1850
        %1853 = vset.pattern.permute.xlu0 0
        %1854 = vperm.xlu0 %1853, %v1094
        %v1855 = vpop.permute.xlu0 %1854
        %v1858 = vunpack.c.l.s4 839922192
        %v1859 = vunpack.c.0.s8 %v1858
        %v1860 = vperm.slane %v1855, %v1859
        %1862 = vset.pattern.permute.xlu0 0
        %1863 = vperm.xlu0 %1862, %v1095
        %v1864 = vpop.permute.xlu0 %1863
        %v1867 = vunpack.c.l.s4 839922192
        %v1868 = vunpack.c.0.s8 %v1867
        %v1869 = vperm.slane %v1864, %v1868
        %1871 = vset.pattern.permute.xlu0 0
        %1872 = vperm.xlu0 %1871, %v1096
        %v1873 = vpop.permute.xlu0 %1872
        %v1876 = vunpack.c.l.s4 839922192
        %v1877 = vunpack.c.0.s8 %v1876
        %v1878 = vperm.slane %v1873, %v1877
        %1880 = vset.pattern.permute.xlu0 0
        %1881 = vperm.xlu0 %1880, %v1097
        %v1882 = vpop.permute.xlu0 %1881
        %v1885 = vunpack.c.l.s4 839922192
        %v1886 = vunpack.c.0.s8 %v1885
        %v1887 = vperm.slane %v1882, %v1886
        %1889 = vset.pattern.permute.xlu0 0
        %1890 = vperm.xlu0 %1889, %v1098
        %v1891 = vpop.permute.xlu0 %1890
        %v1894 = vunpack.c.l.s4 839922192
        %v1895 = vunpack.c.0.s8 %v1894
        %v1896 = vperm.slane %v1891, %v1895
        %1898 = vset.pattern.permute.xlu0 0
        %1899 = vperm.xlu0 %1898, %v1099
        %v1900 = vpop.permute.xlu0 %1899
        %v1903 = vunpack.c.l.s4 839922192
        %v1904 = vunpack.c.0.s8 %v1903
        %v1905 = vperm.slane %v1900, %v1904
        %1907 = vset.pattern.permute.xlu0 0
        %1908 = vperm.xlu0 %1907, %v1100
        %v1909 = vpop.permute.xlu0 %1908
        %v1912 = vunpack.c.l.s4 839922192
        %v1913 = vunpack.c.0.s8 %v1912
        %v1914 = vperm.slane %v1909, %v1913
        %1916 = vset.pattern.permute.xlu0 0
        %1917 = vperm.xlu0 %1916, %v1101
        %v1918 = vpop.permute.xlu0 %1917
        %v1921 = vunpack.c.l.s4 839922192
        %v1922 = vunpack.c.0.s8 %v1921
        %v1923 = vperm.slane %v1918, %v1922
        %1925 = vset.pattern.permute.xlu0 0
        %1926 = vperm.xlu0 %1925, %v1102
        %v1927 = vpop.permute.xlu0 %1926
        %v1930 = vunpack.c.l.s4 839922192
        %v1931 = vunpack.c.0.s8 %v1930
        %v1932 = vperm.slane %v1927, %v1931
        %1934 = vset.pattern.permute.xlu0 0
        %1935 = vperm.xlu0 %1934, %v1103
        %v1936 = vpop.permute.xlu0 %1935
        %v1939 = vunpack.c.l.s4 839922192
        %v1940 = vunpack.c.0.s8 %v1939
        %v1941 = vperm.slane %v1936, %v1940
        %1943 = vset.pattern.permute.xlu0 0
        %1944 = vperm.xlu0 %1943, %v1104
        %v1945 = vpop.permute.xlu0 %1944
        %v1948 = vunpack.c.l.s4 839922192
        %v1949 = vunpack.c.0.s8 %v1948
        %v1950 = vperm.slane %v1945, %v1949
        %1952 = vset.pattern.permute.xlu0 0
        %1953 = vperm.xlu0 %1952, %v1105
        %v1954 = vpop.permute.xlu0 %1953
        %v1957 = vunpack.c.l.s4 839922192
        %v1958 = vunpack.c.0.s8 %v1957
        %v1959 = vperm.slane %v1954, %v1958
        %1961 = vset.pattern.permute.xlu0 0
        %1962 = vperm.xlu0 %1961, %v1106
        %v1963 = vpop.permute.xlu0 %1962
        %v1966 = vunpack.c.l.s4 839922192
        %v1967 = vunpack.c.0.s8 %v1966
        %v1968 = vperm.slane %v1963, %v1967
        %1970 = vset.pattern.permute.xlu0 0
        %1971 = vperm.xlu0 %1970, %v1107
        %v1972 = vpop.permute.xlu0 %1971
        %v1975 = vunpack.c.l.s4 839922192
        %v1976 = vunpack.c.0.s8 %v1975
        %v1977 = vperm.slane %v1972, %v1976
        %1979 = vset.pattern.permute.xlu0 0
        %1980 = vperm.xlu0 %1979, %v1108
        %v1981 = vpop.permute.xlu0 %1980
        %v1984 = vunpack.c.l.s4 839922192
        %v1985 = vunpack.c.0.s8 %v1984
        %v1986 = vperm.slane %v1981, %v1985
        %1988 = vset.pattern.permute.xlu0 0
        %1989 = vperm.xlu0 %1988, %v1109
        %v1990 = vpop.permute.xlu0 %1989
        %v1993 = vunpack.c.l.s4 839922192
        %v1994 = vunpack.c.0.s8 %v1993
        %v1995 = vperm.slane %v1990, %v1994
        %1997 = vset.pattern.permute.xlu0 0
        %1998 = vperm.xlu0 %1997, %v1110
        %v1999 = vpop.permute.xlu0 %1998
        %v2002 = vunpack.c.l.s4 839922192
        %v2003 = vunpack.c.0.s8 %v2002
        %v2004 = vperm.slane %v1999, %v2003
        %2006 = vset.pattern.permute.xlu0 0
        %2007 = vperm.xlu0 %2006, %v1111
        %v2008 = vpop.permute.xlu0 %2007
        %v2011 = vunpack.c.l.s4 839922192
        %v2012 = vunpack.c.0.s8 %v2011
        %v2013 = vperm.slane %v2008, %v2012
        %2015 = vset.pattern.permute.xlu0 0
        %2016 = vperm.xlu0 %2015, %v1112
        %v2017 = vpop.permute.xlu0 %2016
        %v2020 = vunpack.c.l.s4 839922192
        %v2021 = vunpack.c.0.s8 %v2020
        %v2022 = vperm.slane %v2017, %v2021
        %2024 = vset.pattern.permute.xlu0 0
        %2025 = vperm.xlu0 %2024, %v1113
        %v2026 = vpop.permute.xlu0 %2025
        %v2029 = vunpack.c.l.s4 839922192
        %v2030 = vunpack.c.0.s8 %v2029
        %v2031 = vperm.slane %v2026, %v2030
        %2033 = vset.pattern.permute.xlu0 0
        %2034 = vperm.xlu0 %2033, %v1114
        %v2035 = vpop.permute.xlu0 %2034
        %v2038 = vunpack.c.l.s4 839922192
        %v2039 = vunpack.c.0.s8 %v2038
        %v2040 = vperm.slane %v2035, %v2039
        %2042 = vset.pattern.permute.xlu0 0
        %2043 = vperm.xlu0 %2042, %v1115
        %v2044 = vpop.permute.xlu0 %2043
        %v2047 = vunpack.c.l.s4 839922192
        %v2048 = vunpack.c.0.s8 %v2047
        %v2049 = vperm.slane %v2044, %v2048
        %2051 = vset.pattern.permute.xlu0 0
        %2052 = vperm.xlu0 %2051, %v1116
        %v2053 = vpop.permute.xlu0 %2052
        %v2056 = vunpack.c.l.s4 839922192
        %v2057 = vunpack.c.0.s8 %v2056
        %v2058 = vperm.slane %v2053, %v2057
        %2060 = vset.pattern.permute.xlu0 0
        %2061 = vperm.xlu0 %2060, %v1117
        %v2062 = vpop.permute.xlu0 %2061
        %v2065 = vunpack.c.l.s4 839922192
        %v2066 = vunpack.c.0.s8 %v2065
        %v2067 = vperm.slane %v2062, %v2066
        %2069 = vset.pattern.permute.xlu0 0
        %2070 = vperm.xlu0 %2069, %v1118
        %v2071 = vpop.permute.xlu0 %2070
        %v2074 = vunpack.c.l.s4 839922192
        %v2075 = vunpack.c.0.s8 %v2074
        %v2076 = vperm.slane %v2071, %v2075
        %2078 = vset.pattern.permute.xlu0 0
        %2079 = vperm.xlu0 %2078, %v1119
        %v2080 = vpop.permute.xlu0 %2079
        %v2083 = vunpack.c.l.s4 839922192
        %v2084 = vunpack.c.0.s8 %v2083
        %v2085 = vperm.slane %v2080, %v2084
        %2087 = vset.pattern.permute.xlu0 0
        %2088 = vperm.xlu0 %2087, %v1120
        %v2089 = vpop.permute.xlu0 %2088
        %v2092 = vunpack.c.l.s4 839922192
        %v2093 = vunpack.c.0.s8 %v2092
        %v2094 = vperm.slane %v2089, %v2093
        %2096 = vset.pattern.permute.xlu0 0
        %2097 = vperm.xlu0 %2096, %v1121
        %v2098 = vpop.permute.xlu0 %2097
        %v2101 = vunpack.c.l.s4 839922192
        %v2102 = vunpack.c.0.s8 %v2101
        %v2103 = vperm.slane %v2098, %v2102
        %2105 = vset.pattern.permute.xlu0 0
        %2106 = vperm.xlu0 %2105, %v1122
        %v2107 = vpop.permute.xlu0 %2106
        %v2110 = vunpack.c.l.s4 839922192
        %v2111 = vunpack.c.0.s8 %v2110
        %v2112 = vperm.slane %v2107, %v2111
        %2114 = vset.pattern.permute.xlu0 0
        %2115 = vperm.xlu0 %2114, %v1123
        %v2116 = vpop.permute.xlu0 %2115
        %v2119 = vunpack.c.l.s4 839922192
        %v2120 = vunpack.c.0.s8 %v2119
        %v2121 = vperm.slane %v2116, %v2120
        %v2122 = vunpack.c.l.bf16 %v1771
        %v2123 = vunpack.c.h.bf16 %v1771
        %v2124 = vunpack.c.l.bf16 %v1774
        %v2125 = vunpack.c.h.bf16 %v1774
        %v2126 = vunpack.c.l.bf16 %v1777
        %v2127 = vunpack.c.h.bf16 %v1777
        %v2128 = vunpack.c.l.bf16 %v1780
        %v2129 = vunpack.c.h.bf16 %v1780
        %v2130 = vunpack.c.l.bf16 %v1783
        %v2131 = vunpack.c.h.bf16 %v1783
        %v2132 = vunpack.c.l.bf16 %v1786
        %v2133 = vunpack.c.h.bf16 %v1786
        %v2134 = vunpack.c.l.bf16 %v1789
        %v2135 = vunpack.c.h.bf16 %v1789
        %v2136 = vunpack.c.l.bf16 %v1792
        %v2137 = vunpack.c.h.bf16 %v1792
        %v2138 = vunpack.c.l.bf16 %v1795
        %v2139 = vunpack.c.h.bf16 %v1795
        %v2140 = vunpack.c.l.bf16 %v1798
        %v2141 = vunpack.c.h.bf16 %v1798
        %v2142 = vunpack.c.l.bf16 %v1801
        %v2143 = vunpack.c.h.bf16 %v1801
        %v2144 = vunpack.c.l.bf16 %v1804
        %v2145 = vunpack.c.h.bf16 %v1804
        %v2146 = vunpack.c.l.bf16 %v1807
        %v2147 = vunpack.c.h.bf16 %v1807
        %v2148 = vunpack.c.l.bf16 %v1810
        %v2149 = vunpack.c.h.bf16 %v1810
        %v2150 = vunpack.c.l.bf16 %v1813
        %v2151 = vunpack.c.h.bf16 %v1813
        %v2152 = vunpack.c.l.bf16 %v1833
        %v2153 = vunpack.c.h.bf16 %v1833
        %v2154 = vunpack.c.l.bf16 %v1842
        %v2155 = vunpack.c.l.bf16 %v1851
        %v2156 = vunpack.c.l.bf16 %v1860
        %v2157 = vunpack.c.l.bf16 %v1869
        %v2158 = vunpack.c.l.bf16 %v1878
        %v2159 = vunpack.c.l.bf16 %v1887
        %v2160 = vunpack.c.l.bf16 %v1896
        %v2161 = vunpack.c.l.bf16 %v1905
        %v2162 = vunpack.c.l.bf16 %v1914
        %v2163 = vunpack.c.l.bf16 %v1923
        %v2164 = vunpack.c.l.bf16 %v1932
        %v2165 = vunpack.c.l.bf16 %v1941
        %v2166 = vunpack.c.l.bf16 %v1950
        %v2167 = vunpack.c.l.bf16 %v1959
        %v2168 = vunpack.c.l.bf16 %v1968
        %v2169 = vunpack.c.l.bf16 %v1977
        %v2170 = vunpack.c.l.bf16 %v1986
        %v2171 = vunpack.c.l.bf16 %v1995
        %v2172 = vunpack.c.l.bf16 %v2004
        %v2173 = vunpack.c.l.bf16 %v2013
        %v2174 = vunpack.c.l.bf16 %v2022
        %v2175 = vunpack.c.l.bf16 %v2031
        %v2176 = vunpack.c.l.bf16 %v2040
        %v2177 = vunpack.c.l.bf16 %v2049
        %v2178 = vunpack.c.l.bf16 %v2058
        %v2179 = vunpack.c.l.bf16 %v2067
        %v2180 = vunpack.c.l.bf16 %v2076
        %v2181 = vunpack.c.l.bf16 %v2085
        %v2182 = vunpack.c.l.bf16 %v2094
        %v2183 = vunpack.c.l.bf16 %v2103
        %v2184 = vunpack.c.l.bf16 %v2112
        %v2185 = vunpack.c.l.bf16 %v2121
        %v2186 = vmul.f32 %v2122, %v2154
        %v2187 = vmul.f32 %v2123, %v2155
        %v2188 = vmul.f32 %v2124, %v2156
        %v2189 = vmul.f32 %v2125, %v2157
        %v2190 = vmul.f32 %v2126, %v2158
        %v2191 = vmul.f32 %v2127, %v2159
        %v2192 = vmul.f32 %v2128, %v2160
        %v2193 = vmul.f32 %v2129, %v2161
        %v2194 = vmul.f32 %v2130, %v2162
        %v2195 = vmul.f32 %v2131, %v2163
        %v2196 = vmul.f32 %v2132, %v2164
        %v2197 = vmul.f32 %v2133, %v2165
        %v2198 = vmul.f32 %v2134, %v2166
        %v2199 = vmul.f32 %v2135, %v2167
        %v2200 = vmul.f32 %v2136, %v2168
        %v2201 = vmul.f32 %v2137, %v2169
        %v2202 = vmul.f32 %v2138, %v2170
        %v2203 = vmul.f32 %v2139, %v2171
        %v2204 = vmul.f32 %v2140, %v2172
        %v2205 = vmul.f32 %v2141, %v2173
        %v2206 = vmul.f32 %v2142, %v2174
        %v2207 = vmul.f32 %v2143, %v2175
        %v2208 = vmul.f32 %v2144, %v2176
        %v2209 = vmul.f32 %v2145, %v2177
        %v2210 = vmul.f32 %v2146, %v2178
        %v2211 = vmul.f32 %v2147, %v2179
        %v2212 = vmul.f32 %v2148, %v2180
        %v2213 = vmul.f32 %v2149, %v2181
        %v2214 = vmul.f32 %v2150, %v2182
        %v2215 = vmul.f32 %v2151, %v2183
        %v2216 = vmul.f32 %v2152, %v2184
        %v2217 = vmul.f32 %v2153, %v2185
        %v2218 = vpack.c.bf16 %v2186, %v2186
        %v2219 = vpack.c.bf16 %v2187, %v2187
        %v2220 = vpack.c.bf16 %v2188, %v2188
        %v2221 = vpack.c.bf16 %v2189, %v2189
        %v2222 = vpack.c.bf16 %v2190, %v2190
        %v2223 = vpack.c.bf16 %v2191, %v2191
        %v2224 = vpack.c.bf16 %v2192, %v2192
        %v2225 = vpack.c.bf16 %v2193, %v2193
        %v2226 = vpack.c.bf16 %v2194, %v2194
        %v2227 = vpack.c.bf16 %v2195, %v2195
        %v2228 = vpack.c.bf16 %v2196, %v2196
        %v2229 = vpack.c.bf16 %v2197, %v2197
        %v2230 = vpack.c.bf16 %v2198, %v2198
        %v2231 = vpack.c.bf16 %v2199, %v2199
        %v2232 = vpack.c.bf16 %v2200, %v2200
        %v2233 = vpack.c.bf16 %v2201, %v2201
        %v2234 = vpack.c.bf16 %v2202, %v2202
        %v2235 = vpack.c.bf16 %v2203, %v2203
        %v2236 = vpack.c.bf16 %v2204, %v2204
        %v2237 = vpack.c.bf16 %v2205, %v2205
        %v2238 = vpack.c.bf16 %v2206, %v2206
        %v2239 = vpack.c.bf16 %v2207, %v2207
        %v2240 = vpack.c.bf16 %v2208, %v2208
        %v2241 = vpack.c.bf16 %v2209, %v2209
        %v2242 = vpack.c.bf16 %v2210, %v2210
        %v2243 = vpack.c.bf16 %v2211, %v2211
        %v2244 = vpack.c.bf16 %v2212, %v2212
        %v2245 = vpack.c.bf16 %v2213, %v2213
        %v2246 = vpack.c.bf16 %v2214, %v2214
        %v2247 = vpack.c.bf16 %v2215, %v2215
        %v2248 = vpack.c.bf16 %v2216, %v2216
        %v2249 = vpack.c.bf16 %v2217, %v2217
        %v2282 = vunpack.c.l.b16 %v1735
        %v2283 = vunpack.c.l.b16 %v1736
        %v2284 = vunpack.c.l.b16 %v1737
        %v2285 = vunpack.c.l.b16 %v1738
        %v2286 = vunpack.c.l.b16 %v1739
        %v2287 = vunpack.c.l.b16 %v1740
        %v2288 = vunpack.c.l.b16 %v1741
        %v2289 = vunpack.c.l.b16 %v1742
        %v2290 = vunpack.c.l.b16 %v1743
        %v2291 = vunpack.c.l.b16 %v1744
        %v2292 = vunpack.c.l.b16 %v1745
        %v2293 = vunpack.c.l.b16 %v1746
        %v2294 = vunpack.c.l.b16 %v1747
        %v2295 = vunpack.c.l.b16 %v1748
        %v2296 = vunpack.c.l.b16 %v1749
        %v2297 = vunpack.c.l.b16 %v1750
        %v2298 = vunpack.c.l.b16 %v1751
        %v2299 = vunpack.c.l.b16 %v1752
        %v2300 = vunpack.c.l.b16 %v1753
        %v2301 = vunpack.c.l.b16 %v1754
        %v2302 = vunpack.c.l.b16 %v1755
        %v2303 = vunpack.c.l.b16 %v1756
        %v2304 = vunpack.c.l.b16 %v1757
        %v2305 = vunpack.c.l.b16 %v1758
        %v2306 = vunpack.c.l.b16 %v1759
        %v2307 = vunpack.c.l.b16 %v1760
        %v2308 = vunpack.c.l.b16 %v1761
        %v2309 = vunpack.c.l.b16 %v1762
        %v2310 = vunpack.c.l.b16 %v1763
        %v2311 = vunpack.c.l.b16 %v1764
        %v2312 = vunpack.c.l.b16 %v1765
        %v2313 = vunpack.c.l.b16 %v1766
        %v2314 = vpack.c.b16 %v2283, %v2282
        %v2315 = vpack.c.b16 %v2285, %v2284
        %v2316 = vpack.c.b16 %v2287, %v2286
        %v2317 = vpack.c.b16 %v2289, %v2288
        %v2318 = vpack.c.b16 %v2291, %v2290
        %v2319 = vpack.c.b16 %v2293, %v2292
        %v2320 = vpack.c.b16 %v2295, %v2294
        %v2321 = vpack.c.b16 %v2297, %v2296
        %v2322 = vpack.c.b16 %v2299, %v2298
        %v2323 = vpack.c.b16 %v2301, %v2300
        %v2324 = vpack.c.b16 %v2303, %v2302
        %v2325 = vpack.c.b16 %v2305, %v2304
        %v2326 = vpack.c.b16 %v2307, %v2306
        %v2327 = vpack.c.b16 %v2309, %v2308
        %v2328 = vpack.c.b16 %v2311, %v2310
        %v2329 = vpack.c.b16 %v2313, %v2312
        %2330 = vrot.lane.b32.xlu0 %v1188, 16
        %v2331 = vpop.permute.xlu0 %2330
        %2332 = vrot.lane.b32.xlu0 %v1189, 16
        %v2333 = vpop.permute.xlu0 %2332
        %2334 = vrot.lane.b32.xlu0 %v1190, 16
        %v2335 = vpop.permute.xlu0 %2334
        %2336 = vrot.lane.b32.xlu0 %v1191, 16
        %v2337 = vpop.permute.xlu0 %2336
        %2338 = vrot.lane.b32.xlu0 %v1192, 16
        %v2339 = vpop.permute.xlu0 %2338
        %2340 = vrot.lane.b32.xlu0 %v1193, 16
        %v2341 = vpop.permute.xlu0 %2340
        %2342 = vrot.lane.b32.xlu0 %v1194, 16
        %v2343 = vpop.permute.xlu0 %2342
        %2344 = vrot.lane.b32.xlu0 %v1195, 16
        %v2345 = vpop.permute.xlu0 %2344
        %2346 = vrot.lane.b32.xlu0 %v1196, 16
        %v2347 = vpop.permute.xlu0 %2346
        %2348 = vrot.lane.b32.xlu0 %v1197, 16
        %v2349 = vpop.permute.xlu0 %2348
        %2350 = vrot.lane.b32.xlu0 %v1198, 16
        %v2351 = vpop.permute.xlu0 %2350
        %2352 = vrot.lane.b32.xlu0 %v1199, 16
        %v2353 = vpop.permute.xlu0 %2352
        %2354 = vrot.lane.b32.xlu0 %v1200, 16
        %v2355 = vpop.permute.xlu0 %2354
        %2356 = vrot.lane.b32.xlu0 %v1201, 16
        %v2357 = vpop.permute.xlu0 %2356
        %2358 = vrot.lane.b32.xlu0 %v1202, 16
        %v2359 = vpop.permute.xlu0 %2358
        %2360 = vrot.lane.b32.xlu0 %v1203, 16
        %v2361 = vpop.permute.xlu0 %2360
        %v2394 = vunpack.c.l.b16 %v2218
        %v2395 = vunpack.c.l.b16 %v2219
        %v2396 = vunpack.c.l.b16 %v2220
        %v2397 = vunpack.c.l.b16 %v2221
        %v2398 = vunpack.c.l.b16 %v2222
        %v2399 = vunpack.c.l.b16 %v2223
        %v2400 = vunpack.c.l.b16 %v2224
        %v2401 = vunpack.c.l.b16 %v2225
        %v2402 = vunpack.c.l.b16 %v2226
        %v2403 = vunpack.c.l.b16 %v2227
        %v2404 = vunpack.c.l.b16 %v2228
        %v2405 = vunpack.c.l.b16 %v2229
        %v2406 = vunpack.c.l.b16 %v2230
        %v2407 = vunpack.c.l.b16 %v2231
        %v2408 = vunpack.c.l.b16 %v2232
        %v2409 = vunpack.c.l.b16 %v2233
        %v2410 = vunpack.c.l.b16 %v2234
        %v2411 = vunpack.c.l.b16 %v2235
        %v2412 = vunpack.c.l.b16 %v2236
        %v2413 = vunpack.c.l.b16 %v2237
        %v2414 = vunpack.c.l.b16 %v2238
        %v2415 = vunpack.c.l.b16 %v2239
        %v2416 = vunpack.c.l.b16 %v2240
        %v2417 = vunpack.c.l.b16 %v2241
        %v2418 = vunpack.c.l.b16 %v2242
        %v2419 = vunpack.c.l.b16 %v2243
        %v2420 = vunpack.c.l.b16 %v2244
        %v2421 = vunpack.c.l.b16 %v2245
        %v2422 = vunpack.c.l.b16 %v2246
        %v2423 = vunpack.c.l.b16 %v2247
        %v2424 = vunpack.c.l.b16 %v2248
        %v2425 = vunpack.c.l.b16 %v2249
        %v2426 = vpack.c.b16 %v2395, %v2394
        %v2427 = vpack.c.b16 %v2397, %v2396
        %v2428 = vpack.c.b16 %v2399, %v2398
        %v2429 = vpack.c.b16 %v2401, %v2400
        %v2430 = vpack.c.b16 %v2403, %v2402
        %v2431 = vpack.c.b16 %v2405, %v2404
        %v2432 = vpack.c.b16 %v2407, %v2406
        %v2433 = vpack.c.b16 %v2409, %v2408
        %v2434 = vpack.c.b16 %v2411, %v2410
        %v2435 = vpack.c.b16 %v2413, %v2412
        %v2436 = vpack.c.b16 %v2415, %v2414
        %v2437 = vpack.c.b16 %v2417, %v2416
        %v2438 = vpack.c.b16 %v2419, %v2418
        %v2439 = vpack.c.b16 %v2421, %v2420
        %v2440 = vpack.c.b16 %v2423, %v2422
        %v2441 = vpack.c.b16 %v2425, %v2424
        %2442 = vrot.lane.b32.xlu0 %v2426, 32
        %v2443 = vpop.permute.xlu0 %2442
        %2444 = vrot.lane.b32.xlu0 %v2427, 32
        %v2445 = vpop.permute.xlu0 %2444
        %2446 = vrot.lane.b32.xlu0 %v2428, 32
        %v2447 = vpop.permute.xlu0 %2446
        %2448 = vrot.lane.b32.xlu0 %v2429, 32
        %v2449 = vpop.permute.xlu0 %2448
        %2450 = vrot.lane.b32.xlu0 %v2430, 32
        %v2451 = vpop.permute.xlu0 %2450
        %2452 = vrot.lane.b32.xlu0 %v2431, 32
        %v2453 = vpop.permute.xlu0 %2452
        %2454 = vrot.lane.b32.xlu0 %v2432, 32
        %v2455 = vpop.permute.xlu0 %2454
        %2456 = vrot.lane.b32.xlu0 %v2433, 32
        %v2457 = vpop.permute.xlu0 %2456
        %2458 = vrot.lane.b32.xlu0 %v2434, 32
        %v2459 = vpop.permute.xlu0 %2458
        %2460 = vrot.lane.b32.xlu0 %v2435, 32
        %v2461 = vpop.permute.xlu0 %2460
        %2462 = vrot.lane.b32.xlu0 %v2436, 32
        %v2463 = vpop.permute.xlu0 %2462
        %2464 = vrot.lane.b32.xlu0 %v2437, 32
        %v2465 = vpop.permute.xlu0 %2464
        %2466 = vrot.lane.b32.xlu0 %v2438, 32
        %v2467 = vpop.permute.xlu0 %2466
        %2468 = vrot.lane.b32.xlu0 %v2439, 32
        %v2469 = vpop.permute.xlu0 %2468
        %2470 = vrot.lane.b32.xlu0 %v2440, 32
        %v2471 = vpop.permute.xlu0 %2470
        %2472 = vrot.lane.b32.xlu0 %v2441, 32
        %v2473 = vpop.permute.xlu0 %2472
        %v2476 = vsel %vm735, %v2314, %v2331
        %v2479 = vsel %vm735, %v2315, %v2333
        %v2482 = vsel %vm735, %v2316, %v2335
        %v2485 = vsel %vm735, %v2317, %v2337
        %v2488 = vsel %vm735, %v2318, %v2339
        %v2491 = vsel %vm735, %v2319, %v2341
        %v2494 = vsel %vm735, %v2320, %v2343
        %v2497 = vsel %vm735, %v2321, %v2345
        %v2500 = vsel %vm735, %v2322, %v2347
        %v2503 = vsel %vm735, %v2323, %v2349
        %v2506 = vsel %vm735, %v2324, %v2351
        %v2509 = vsel %vm735, %v2325, %v2353
        %v2512 = vsel %vm735, %v2326, %v2355
        %v2515 = vsel %vm735, %v2327, %v2357
        %v2518 = vsel %vm735, %v2328, %v2359
        %v2521 = vsel %vm735, %v2329, %v2361
        %v2523 = vsel %vm595, %v2476, %v2443
        %v2525 = vsel %vm595, %v2479, %v2445
        %v2527 = vsel %vm595, %v2482, %v2447
        %v2529 = vsel %vm595, %v2485, %v2449
        %v2531 = vsel %vm595, %v2488, %v2451
        %v2533 = vsel %vm595, %v2491, %v2453
        %v2535 = vsel %vm595, %v2494, %v2455
        %v2537 = vsel %vm595, %v2497, %v2457
        %v2539 = vsel %vm595, %v2500, %v2459
        %v2541 = vsel %vm595, %v2503, %v2461
        %v2543 = vsel %vm595, %v2506, %v2463
        %v2545 = vsel %vm595, %v2509, %v2465
        %v2547 = vsel %vm595, %v2512, %v2467
        %v2549 = vsel %vm595, %v2515, %v2469
        %v2551 = vsel %vm595, %v2518, %v2471
        %v2553 = vsel %vm595, %v2521, %v2473
        %vm2554 = vcmask 388096
        %2555 = vst.msk [vmem:[#allocation2] sm:$0xf] %vm2554, 0
        %2556 = vst.msk [vmem:[#allocation2 + $0x4] sm:$0xf] %vm2554, 0
        %2557 = vst.msk [vmem:[#allocation2 + $0x88] sm:$0xf] %vm2554, 0
        %2558 = vst.msk [vmem:[#allocation2 + $0x8c] sm:$0xf] %vm2554, 0
        %v2575 = vunpack.c.l.b16 %v2523
        %v2576 = vunpack.c.h.b16 %v2523
        %v2577 = vunpack.c.l.b16 %v2525
        %v2578 = vunpack.c.h.b16 %v2525
        %v2579 = vunpack.c.l.b16 %v2527
        %v2580 = vunpack.c.h.b16 %v2527
        %v2581 = vunpack.c.l.b16 %v2529
        %v2582 = vunpack.c.h.b16 %v2529
        %v2583 = vunpack.c.l.b16 %v2531
        %v2584 = vunpack.c.h.b16 %v2531
        %v2585 = vunpack.c.l.b16 %v2533
        %v2586 = vunpack.c.h.b16 %v2533
        %v2587 = vunpack.c.l.b16 %v2535
        %v2588 = vunpack.c.h.b16 %v2535
        %v2589 = vunpack.c.l.b16 %v2537
        %v2590 = vunpack.c.h.b16 %v2537
        %v2591 = vunpack.c.l.b16 %v2539
        %v2592 = vunpack.c.h.b16 %v2539
        %v2593 = vunpack.c.l.b16 %v2541
        %v2594 = vunpack.c.h.b16 %v2541
        %v2595 = vunpack.c.l.b16 %v2543
        %v2596 = vunpack.c.h.b16 %v2543
        %v2597 = vunpack.c.l.b16 %v2545
        %v2598 = vunpack.c.h.b16 %v2545
        %v2599 = vunpack.c.l.b16 %v2547
        %v2600 = vunpack.c.h.b16 %v2547
        %v2601 = vunpack.c.l.b16 %v2549
        %v2602 = vunpack.c.h.b16 %v2549
        %v2603 = vunpack.c.l.b16 %v2551
        %v2604 = vunpack.c.h.b16 %v2551
        %v2605 = vunpack.c.l.b16 %v2553
        %v2606 = vunpack.c.h.b16 %v2553
        %v2607 = vpack.c.b16 %v2575, %v2575
        %v2608 = vpack.c.b16 %v2576, %v2576
        %v2609 = vpack.c.b16 %v2577, %v2577
        %v2610 = vpack.c.b16 %v2578, %v2578
        %v2611 = vpack.c.b16 %v2579, %v2579
        %v2612 = vpack.c.b16 %v2580, %v2580
        %v2613 = vpack.c.b16 %v2581, %v2581
        %v2614 = vpack.c.b16 %v2582, %v2582
        %v2615 = vpack.c.b16 %v2583, %v2583
        %v2616 = vpack.c.b16 %v2584, %v2584
        %v2617 = vpack.c.b16 %v2585, %v2585
        %v2618 = vpack.c.b16 %v2586, %v2586
        %v2619 = vpack.c.b16 %v2587, %v2587
        %v2620 = vpack.c.b16 %v2588, %v2588
        %v2621 = vpack.c.b16 %v2589, %v2589
        %v2622 = vpack.c.b16 %v2590, %v2590
        %v2623 = vpack.c.b16 %v2591, %v2591
        %v2624 = vpack.c.b16 %v2592, %v2592
        %v2625 = vpack.c.b16 %v2593, %v2593
        %v2626 = vpack.c.b16 %v2594, %v2594
        %v2627 = vpack.c.b16 %v2595, %v2595
        %v2628 = vpack.c.b16 %v2596, %v2596
        %v2629 = vpack.c.b16 %v2597, %v2597
        %v2630 = vpack.c.b16 %v2598, %v2598
        %v2631 = vpack.c.b16 %v2599, %v2599
        %v2632 = vpack.c.b16 %v2600, %v2600
        %v2633 = vpack.c.b16 %v2601, %v2601
        %v2634 = vpack.c.b16 %v2602, %v2602
        %v2635 = vpack.c.b16 %v2603, %v2603
        %v2636 = vpack.c.b16 %v2604, %v2604
        %v2637 = vpack.c.b16 %v2605, %v2605
        %v2638 = vpack.c.b16 %v2606, %v2606
        %2671 = vst.msk [vmem:[#allocation2 + $0x8] sm:$0xf] %vm2554, %v2607
        %2672 = vst.msk [vmem:[#allocation2 + $0xc] sm:$0xf] %vm2554, %v2608
        %2673 = vst.msk [vmem:[#allocation2 + $0x10] sm:$0xf] %vm2554, %v2609
        %2674 = vst.msk [vmem:[#allocation2 + $0x14] sm:$0xf] %vm2554, %v2610
        %2675 = vst.msk [vmem:[#allocation2 + $0x18] sm:$0xf] %vm2554, %v2611
        %2676 = vst.msk [vmem:[#allocation2 + $0x1c] sm:$0xf] %vm2554, %v2612
        %2677 = vst.msk [vmem:[#allocation2 + $0x20] sm:$0xf] %vm2554, %v2613
        %2678 = vst.msk [vmem:[#allocation2 + $0x24] sm:$0xf] %vm2554, %v2614
        %2679 = vst.msk [vmem:[#allocation2 + $0x28] sm:$0xf] %vm2554, %v2615
        %2680 = vst.msk [vmem:[#allocation2 + $0x2c] sm:$0xf] %vm2554, %v2616
        %2681 = vst.msk [vmem:[#allocation2 + $0x30] sm:$0xf] %vm2554, %v2617
        %2682 = vst.msk [vmem:[#allocation2 + $0x34] sm:$0xf] %vm2554, %v2618
        %2683 = vst.msk [vmem:[#allocation2 + $0x38] sm:$0xf] %vm2554, %v2619
        %2684 = vst.msk [vmem:[#allocation2 + $0x3c] sm:$0xf] %vm2554, %v2620
        %2685 = vst.msk [vmem:[#allocation2 + $0x40] sm:$0xf] %vm2554, %v2621
        %2686 = vst.msk [vmem:[#allocation2 + $0x44] sm:$0xf] %vm2554, %v2622
        %2687 = vst.msk [vmem:[#allocation2 + $0x48] sm:$0xf] %vm2554, %v2623
        %2688 = vst.msk [vmem:[#allocation2 + $0x4c] sm:$0xf] %vm2554, %v2624
        %2689 = vst.msk [vmem:[#allocation2 + $0x50] sm:$0xf] %vm2554, %v2625
        %2690 = vst.msk [vmem:[#allocation2 + $0x54] sm:$0xf] %vm2554, %v2626
        %2691 = vst.msk [vmem:[#allocation2 + $0x58] sm:$0xf] %vm2554, %v2627
        %2692 = vst.msk [vmem:[#allocation2 + $0x5c] sm:$0xf] %vm2554, %v2628
        %2693 = vst.msk [vmem:[#allocation2 + $0x60] sm:$0xf] %vm2554, %v2629
        %2694 = vst.msk [vmem:[#allocation2 + $0x64] sm:$0xf] %vm2554, %v2630
        %2695 = vst.msk [vmem:[#allocation2 + $0x68] sm:$0xf] %vm2554, %v2631
        %2696 = vst.msk [vmem:[#allocation2 + $0x6c] sm:$0xf] %vm2554, %v2632
        %2697 = vst.msk [vmem:[#allocation2 + $0x70] sm:$0xf] %vm2554, %v2633
        %2698 = vst.msk [vmem:[#allocation2 + $0x74] sm:$0xf] %vm2554, %v2634
        %2699 = vst.msk [vmem:[#allocation2 + $0x78] sm:$0xf] %vm2554, %v2635
        %2700 = vst.msk [vmem:[#allocation2 + $0x7c] sm:$0xf] %vm2554, %v2636
        %2701 = vst.msk [vmem:[#allocation2 + $0x80] sm:$0xf] %vm2554, %v2637
        %2702 = vst.msk [vmem:[#allocation2 + $0x84] sm:$0xf] %vm2554, %v2638
        %v2703 = vld [vmem:[#allocation2] sm:$0xf]
        %v2704 = vld [vmem:[#allocation2 + $0x4] sm:$0xf]
        %v2705 = vld [vmem:[#allocation2 + $0x8] sm:$0xf]
        %v2706 = vld [vmem:[#allocation2 + $0xc] sm:$0xf]
        %v2707 = vld [vmem:[#allocation2 + $0x10] sm:$0xf]
        %v2708 = vld [vmem:[#allocation2 + $0x14] sm:$0xf]
        %v2709 = vld [vmem:[#allocation2 + $0x18] sm:$0xf]
        %v2710 = vld [vmem:[#allocation2 + $0x1c] sm:$0xf]
        %v2711 = vld [vmem:[#allocation2 + $0x20] sm:$0xf]
        %v2712 = vld [vmem:[#allocation2 + $0x24] sm:$0xf]
        %v2713 = vld [vmem:[#allocation2 + $0x28] sm:$0xf]
        %v2714 = vld [vmem:[#allocation2 + $0x2c] sm:$0xf]
        %v2715 = vld [vmem:[#allocation2 + $0x30] sm:$0xf]
        %v2716 = vld [vmem:[#allocation2 + $0x34] sm:$0xf]
        %v2717 = vld [vmem:[#allocation2 + $0x38] sm:$0xf]
        %v2718 = vld [vmem:[#allocation2 + $0x3c] sm:$0xf]
        %v2719 = vld [vmem:[#allocation2 + $0x40] sm:$0xf]
        %v2720 = vld [vmem:[#allocation2 + $0x44] sm:$0xf]
        %v2721 = vld [vmem:[#allocation2 + $0x48] sm:$0xf]
        %v2722 = vld [vmem:[#allocation2 + $0x4c] sm:$0xf]
        %v2723 = vld [vmem:[#allocation2 + $0x50] sm:$0xf]
        %v2724 = vld [vmem:[#allocation2 + $0x54] sm:$0xf]
        %v2725 = vld [vmem:[#allocation2 + $0x58] sm:$0xf]
        %v2726 = vld [vmem:[#allocation2 + $0x5c] sm:$0xf]
        %v2727 = vld [vmem:[#allocation2 + $0x60] sm:$0xf]
        %v2728 = vld [vmem:[#allocation2 + $0x64] sm:$0xf]
        %v2729 = vld [vmem:[#allocation2 + $0x68] sm:$0xf]
        %v2730 = vld [vmem:[#allocation2 + $0x6c] sm:$0xf]
        %v2731 = vld [vmem:[#allocation2 + $0x70] sm:$0xf]
        %v2732 = vld [vmem:[#allocation2 + $0x74] sm:$0xf]
        %v2733 = vld [vmem:[#allocation2 + $0x78] sm:$0xf]
        %v2734 = vld [vmem:[#allocation2 + $0x7c] sm:$0xf]
        %v2735 = vld [vmem:[%s5] sm:$0xf]
        %v2736 = vld [vmem:[%s5 + $0x4] sm:$0xf]
        %v2737 = vld [vmem:[%s5 + $0x8] sm:$0xf]
        %v2738 = vld [vmem:[%s5 + $0xc] sm:$0xf]
        %v2739 = vld [vmem:[%s5 + $0x10] sm:$0xf]
        %v2740 = vld [vmem:[%s5 + $0x14] sm:$0xf]
        %v2741 = vld [vmem:[#allocation2 + $0x80] sm:$0xf]
        %v2742 = vld [vmem:[#allocation2 + $0x84] sm:$0xf]
        %s2743 = scalar_lea.vmem %s5, 24
        %v2744 = vld [vmem:[%s2743] sm:$0xf]
        %v2745 = vld [vmem:[%s2743 + $0x4] sm:$0xf]
        %v2746 = vld [vmem:[%s2743 + $0x8] sm:$0xf]
        %v2747 = vld [vmem:[%s2743 + $0xc] sm:$0xf]
        %v2748 = vld [vmem:[%s2743 + $0x10] sm:$0xf]
        %v2749 = vld [vmem:[%s2743 + $0x14] sm:$0xf]
        %v2782 = vunpack.c.l.b16 %v2705
        %v2783 = vunpack.c.l.b16 %v2706
        %v2784 = vunpack.c.l.b16 %v2707
        %v2785 = vunpack.c.l.b16 %v2708
        %v2786 = vunpack.c.l.b16 %v2709
        %v2787 = vunpack.c.l.b16 %v2710
        %v2788 = vunpack.c.l.b16 %v2711
        %v2789 = vunpack.c.l.b16 %v2712
        %v2790 = vunpack.c.l.b16 %v2713
        %v2791 = vunpack.c.l.b16 %v2714
        %v2792 = vunpack.c.l.b16 %v2715
        %v2793 = vunpack.c.l.b16 %v2716
        %v2794 = vunpack.c.l.b16 %v2717
        %v2795 = vunpack.c.l.b16 %v2718
        %v2796 = vunpack.c.l.b16 %v2719
        %v2797 = vunpack.c.l.b16 %v2720
        %v2798 = vunpack.c.l.b16 %v2721
        %v2799 = vunpack.c.l.b16 %v2722
        %v2800 = vunpack.c.l.b16 %v2723
        %v2801 = vunpack.c.l.b16 %v2724
        %v2802 = vunpack.c.l.b16 %v2725
        %v2803 = vunpack.c.l.b16 %v2726
        %v2804 = vunpack.c.l.b16 %v2727
        %v2805 = vunpack.c.l.b16 %v2728
        %v2806 = vunpack.c.l.b16 %v2729
        %v2807 = vunpack.c.l.b16 %v2730
        %v2808 = vunpack.c.l.b16 %v2731
        %v2809 = vunpack.c.l.b16 %v2732
        %v2810 = vunpack.c.l.b16 %v2733
        %v2811 = vunpack.c.l.b16 %v2734
        %v2812 = vunpack.c.l.b16 %v2741
        %v2813 = vunpack.c.l.b16 %v2742
        %v2814 = vpack.c.b16 %v2783, %v2782
        %v2815 = vpack.c.b16 %v2785, %v2784
        %v2816 = vpack.c.b16 %v2787, %v2786
        %v2817 = vpack.c.b16 %v2789, %v2788
        %v2818 = vpack.c.b16 %v2791, %v2790
        %v2819 = vpack.c.b16 %v2793, %v2792
        %v2820 = vpack.c.b16 %v2795, %v2794
        %v2821 = vpack.c.b16 %v2797, %v2796
        %v2822 = vpack.c.b16 %v2799, %v2798
        %v2823 = vpack.c.b16 %v2801, %v2800
        %v2824 = vpack.c.b16 %v2803, %v2802
        %v2825 = vpack.c.b16 %v2805, %v2804
        %v2826 = vpack.c.b16 %v2807, %v2806
        %v2827 = vpack.c.b16 %v2809, %v2808
        %v2828 = vpack.c.b16 %v2811, %v2810
        %v2829 = vpack.c.b16 %v2813, %v2812
        %v2836 = vunpack.c.l.b16 %v2744
        %v2837 = vunpack.c.l.b16 %v2745
        %v2838 = vunpack.c.l.b16 %v2746
        %v2839 = vunpack.c.l.b16 %v2747
        %v2840 = vunpack.c.l.b16 %v2748
        %v2841 = vunpack.c.l.b16 %v2749
        %v2842 = vpack.c.b16 %v2837, %v2836
        %v2843 = vpack.c.b16 %v2839, %v2838
        %v2844 = vpack.c.b16 %v2841, %v2840
        %vm2848 = vcmask 392192
        %v2850 = vsel %vm2848, %v2814, 0
        %v2853 = vsel %vm2848, %v2815, 0
        %v2856 = vsel %vm2848, %v2816, 0
        %v2859 = vsel %vm2848, %v2817, 0
        %v2862 = vsel %vm2848, %v2818, 0
        %v2865 = vsel %vm2848, %v2819, 0
        %v2868 = vsel %vm2848, %v2820, 0
        %v2871 = vsel %vm2848, %v2821, 0
        %v2874 = vsel %vm2848, %v2822, 0
        %v2877 = vsel %vm2848, %v2823, 0
        %v2880 = vsel %vm2848, %v2824, 0
        %v2883 = vsel %vm2848, %v2825, 0
        %v2886 = vsel %vm2848, %v2826, 0
        %v2889 = vsel %vm2848, %v2827, 0
        %v2892 = vsel %vm2848, %v2828, 0
        %v2895 = vsel %vm2848, %v2829, 0
        %2897 = vmatpush.bf16.msra.mxu0 0
        %2898 = vmatpush.bf16.msra.mxu0 0
        %2899 = vmatpush.bf16.msra.mxu0 0
        %2900 = vmatpush.bf16.msra.mxu0 0
        %2901 = vmatpush.bf16.msra.mxu0 0
        %2902 = vmatpush.bf16.msra.mxu0 %v2844
        %2903 = vmatpush.bf16.msra.mxu0 %v2843
        %2904 = vmatpush.bf16.msra.mxu0 %v2842
        %2905 = vmatmul.bf16.gmra.mxu0 %v2850
        %v2906 = vpop.f32.mrf.mxu0
        %v2907 = vadd.f32 0.0, %v2906
        %v2908 = vpop.f32.mrf.mxu0
        %v2909 = vadd.f32 0.0, %v2908
        %2910 = vmatmul.bf16.gmra.mxu0 %v2853
        %v2911 = vpop.f32.mrf.mxu0
        %v2912 = vadd.f32 0.0, %v2911
        %v2913 = vpop.f32.mrf.mxu0
        %v2914 = vadd.f32 0.0, %v2913
        %2915 = vmatmul.bf16.gmra.mxu0 %v2856
        %v2916 = vpop.f32.mrf.mxu0
        %v2917 = vadd.f32 0.0, %v2916
        %v2918 = vpop.f32.mrf.mxu0
        %v2919 = vadd.f32 0.0, %v2918
        %2920 = vmatmul.bf16.gmra.mxu0 %v2859
        %v2921 = vpop.f32.mrf.mxu0
        %v2922 = vadd.f32 0.0, %v2921
        %v2923 = vpop.f32.mrf.mxu0
        %v2924 = vadd.f32 0.0, %v2923
        %2925 = vmatmul.bf16.gmra.mxu0 %v2862
        %v2926 = vpop.f32.mrf.mxu0
        %v2927 = vadd.f32 0.0, %v2926
        %v2928 = vpop.f32.mrf.mxu0
        %v2929 = vadd.f32 0.0, %v2928
        %2930 = vmatmul.bf16.gmra.mxu0 %v2865
        %v2931 = vpop.f32.mrf.mxu0
        %v2932 = vadd.f32 0.0, %v2931
        %v2933 = vpop.f32.mrf.mxu0
        %v2934 = vadd.f32 0.0, %v2933
        %2935 = vmatmul.bf16.gmra.mxu0 %v2868
        %v2936 = vpop.f32.mrf.mxu0
        %v2937 = vadd.f32 0.0, %v2936
        %v2938 = vpop.f32.mrf.mxu0
        %v2939 = vadd.f32 0.0, %v2938
        %2940 = vmatmul.bf16.gmra.mxu0 %v2871
        %v2941 = vpop.f32.mrf.mxu0
        %v2942 = vadd.f32 0.0, %v2941
        %v2943 = vpop.f32.mrf.mxu0
        %v2944 = vadd.f32 0.0, %v2943
        %2945 = vmatmul.bf16.gmra.mxu0 %v2874
        %v2946 = vpop.f32.mrf.mxu0
        %v2947 = vadd.f32 0.0, %v2946
        %v2948 = vpop.f32.mrf.mxu0
        %v2949 = vadd.f32 0.0, %v2948
        %2950 = vmatmul.bf16.gmra.mxu0 %v2877
        %v2951 = vpop.f32.mrf.mxu0
        %v2952 = vadd.f32 0.0, %v2951
        %v2953 = vpop.f32.mrf.mxu0
        %v2954 = vadd.f32 0.0, %v2953
        %2955 = vmatmul.bf16.gmra.mxu0 %v2880
        %v2956 = vpop.f32.mrf.mxu0
        %v2957 = vadd.f32 0.0, %v2956
        %v2958 = vpop.f32.mrf.mxu0
        %v2959 = vadd.f32 0.0, %v2958
        %2960 = vmatmul.bf16.gmra.mxu0 %v2883
        %v2961 = vpop.f32.mrf.mxu0
        %v2962 = vadd.f32 0.0, %v2961
        %v2963 = vpop.f32.mrf.mxu0
        %v2964 = vadd.f32 0.0, %v2963
        %2965 = vmatmul.bf16.gmra.mxu0 %v2886
        %v2966 = vpop.f32.mrf.mxu0
        %v2967 = vadd.f32 0.0, %v2966
        %v2968 = vpop.f32.mrf.mxu0
        %v2969 = vadd.f32 0.0, %v2968
        %2970 = vmatmul.bf16.gmra.mxu0 %v2889
        %v2971 = vpop.f32.mrf.mxu0
        %v2972 = vadd.f32 0.0, %v2971
        %v2973 = vpop.f32.mrf.mxu0
        %v2974 = vadd.f32 0.0, %v2973
        %2975 = vmatmul.bf16.gmra.mxu0 %v2892
        %v2976 = vpop.f32.mrf.mxu0
        %v2977 = vadd.f32 0.0, %v2976
        %v2978 = vpop.f32.mrf.mxu0
        %v2979 = vadd.f32 0.0, %v2978
        %2980 = vmatmul.bf16.gmra.mxu0 %v2895
        %v2981 = vpop.f32.mrf.mxu0
        %v2982 = vadd.f32 0.0, %v2981
        %v2983 = vpop.f32.mrf.mxu0
        %v2984 = vadd.f32 0.0, %v2983
        %2985 = vdwg.mxu0
        %v2988 = vunpack.c.l.b16 %v2703
        %v2989 = vunpack.c.l.b16 %v2704
        %v2990 = vpack.c.b16 %v2989, %v2988
        %v2997 = vunpack.c.l.b16 %v2735
        %v2998 = vunpack.c.l.b16 %v2736
        %v2999 = vunpack.c.l.b16 %v2737
        %v3000 = vunpack.c.l.b16 %v2738
        %v3001 = vunpack.c.l.b16 %v2739
        %v3002 = vunpack.c.l.b16 %v2740
        %v3003 = vpack.c.b16 %v2998, %v2997
        %v3004 = vpack.c.b16 %v3000, %v2999
        %v3005 = vpack.c.b16 %v3002, %v3001
        %v3010 = vsel %vm2848, %v2990, 0
        %3012 = vmatpush.bf16.msra.mxu0 0
        %3013 = vmatpush.bf16.msra.mxu0 0
        %3014 = vmatpush.bf16.msra.mxu0 0
        %3015 = vmatpush.bf16.msra.mxu0 0
        %3016 = vmatpush.bf16.msra.mxu0 0
        %3017 = vmatpush.bf16.msra.mxu0 %v3005
        %3018 = vmatpush.bf16.msra.mxu0 %v3004
        %3019 = vmatpush.bf16.msra.mxu0 %v3003
        %3020 = vmatmul.bf16.gmra.mxu0 %v3010
        %v3021 = vpop.f32.mrf.mxu0
        %v3022 = vadd.f32 %v2907, %v3021
        %v3023 = vpop.f32.mrf.mxu0
        %v3024 = vadd.f32 %v2909, %v3023
        %3025 = vmatmul.bf16.gmra.mxu0 %v2850
        %v3026 = vpop.f32.mrf.mxu0
        %v3027 = vadd.f32 %v2912, %v3026
        %v3028 = vpop.f32.mrf.mxu0
        %v3029 = vadd.f32 %v2914, %v3028
        %3030 = vmatmul.bf16.gmra.mxu0 %v2853
        %v3031 = vpop.f32.mrf.mxu0
        %v3032 = vadd.f32 %v2917, %v3031
        %v3033 = vpop.f32.mrf.mxu0
        %v3034 = vadd.f32 %v2919, %v3033
        %3035 = vmatmul.bf16.gmra.mxu0 %v2856
        %v3036 = vpop.f32.mrf.mxu0
        %v3037 = vadd.f32 %v2922, %v3036
        %v3038 = vpop.f32.mrf.mxu0
        %v3039 = vadd.f32 %v2924, %v3038
        %3040 = vmatmul.bf16.gmra.mxu0 %v2859
        %v3041 = vpop.f32.mrf.mxu0
        %v3042 = vadd.f32 %v2927, %v3041
        %v3043 = vpop.f32.mrf.mxu0
        %v3044 = vadd.f32 %v2929, %v3043
        %3045 = vmatmul.bf16.gmra.mxu0 %v2862
        %v3046 = vpop.f32.mrf.mxu0
        %v3047 = vadd.f32 %v2932, %v3046
        %v3048 = vpop.f32.mrf.mxu0
        %v3049 = vadd.f32 %v2934, %v3048
        %3050 = vmatmul.bf16.gmra.mxu0 %v2865
        %v3051 = vpop.f32.mrf.mxu0
        %v3052 = vadd.f32 %v2937, %v3051
        %v3053 = vpop.f32.mrf.mxu0
        %v3054 = vadd.f32 %v2939, %v3053
        %3055 = vmatmul.bf16.gmra.mxu0 %v2868
        %v3056 = vpop.f32.mrf.mxu0
        %v3057 = vadd.f32 %v2942, %v3056
        %v3058 = vpop.f32.mrf.mxu0
        %v3059 = vadd.f32 %v2944, %v3058
        %3060 = vmatmul.bf16.gmra.mxu0 %v2871
        %v3061 = vpop.f32.mrf.mxu0
        %v3062 = vadd.f32 %v2947, %v3061
        %v3063 = vpop.f32.mrf.mxu0
        %v3064 = vadd.f32 %v2949, %v3063
        %3065 = vmatmul.bf16.gmra.mxu0 %v2874
        %v3066 = vpop.f32.mrf.mxu0
        %v3067 = vadd.f32 %v2952, %v3066
        %v3068 = vpop.f32.mrf.mxu0
        %v3069 = vadd.f32 %v2954, %v3068
        %3070 = vmatmul.bf16.gmra.mxu0 %v2877
        %v3071 = vpop.f32.mrf.mxu0
        %v3072 = vadd.f32 %v2957, %v3071
        %v3073 = vpop.f32.mrf.mxu0
        %v3074 = vadd.f32 %v2959, %v3073
        %3075 = vmatmul.bf16.gmra.mxu0 %v2880
        %v3076 = vpop.f32.mrf.mxu0
        %v3077 = vadd.f32 %v2962, %v3076
        %v3078 = vpop.f32.mrf.mxu0
        %v3079 = vadd.f32 %v2964, %v3078
        %3080 = vmatmul.bf16.gmra.mxu0 %v2883
        %v3081 = vpop.f32.mrf.mxu0
        %v3082 = vadd.f32 %v2967, %v3081
        %v3083 = vpop.f32.mrf.mxu0
        %v3084 = vadd.f32 %v2969, %v3083
        %3085 = vmatmul.bf16.gmra.mxu0 %v2886
        %v3086 = vpop.f32.mrf.mxu0
        %v3087 = vadd.f32 %v2972, %v3086
        %v3088 = vpop.f32.mrf.mxu0
        %v3089 = vadd.f32 %v2974, %v3088
        %3090 = vmatmul.bf16.gmra.mxu0 %v2889
        %v3091 = vpop.f32.mrf.mxu0
        %v3092 = vadd.f32 %v2977, %v3091
        %v3093 = vpop.f32.mrf.mxu0
        %v3094 = vadd.f32 %v2979, %v3093
        %3095 = vmatmul.bf16.gmra.mxu0 %v2892
        %v3096 = vpop.f32.mrf.mxu0
        %v3097 = vadd.f32 %v2982, %v3096
        %v3098 = vpop.f32.mrf.mxu0
        %v3099 = vadd.f32 %v2984, %v3098
        %3100 = vdwg.mxu0
        %v3101 = vld [vmem:[#allocation2 + $0x10] sm:$0xf]
        %v3102 = vld [vmem:[#allocation2 + $0x14] sm:$0xf]
        %v3103 = vld [vmem:[#allocation2 + $0x18] sm:$0xf]
        %v3104 = vld [vmem:[#allocation2 + $0x1c] sm:$0xf]
        %v3105 = vld [vmem:[#allocation2 + $0x20] sm:$0xf]
        %v3106 = vld [vmem:[#allocation2 + $0x24] sm:$0xf]
        %v3107 = vld [vmem:[#allocation2 + $0x28] sm:$0xf]
        %v3108 = vld [vmem:[#allocation2 + $0x2c] sm:$0xf]
        %v3109 = vld [vmem:[#allocation2 + $0x30] sm:$0xf]
        %v3110 = vld [vmem:[#allocation2 + $0x34] sm:$0xf]
        %v3111 = vld [vmem:[#allocation2 + $0x38] sm:$0xf]
        %v3112 = vld [vmem:[#allocation2 + $0x3c] sm:$0xf]
        %v3113 = vld [vmem:[#allocation2 + $0x40] sm:$0xf]
        %v3114 = vld [vmem:[#allocation2 + $0x44] sm:$0xf]
        %v3115 = vld [vmem:[#allocation2 + $0x48] sm:$0xf]
        %v3116 = vld [vmem:[#allocation2 + $0x4c] sm:$0xf]
        %v3117 = vld [vmem:[#allocation2 + $0x50] sm:$0xf]
        %v3118 = vld [vmem:[#allocation2 + $0x54] sm:$0xf]
        %v3119 = vld [vmem:[#allocation2 + $0x58] sm:$0xf]
        %v3120 = vld [vmem:[#allocation2 + $0x5c] sm:$0xf]
        %v3121 = vld [vmem:[#allocation2 + $0x60] sm:$0xf]
        %v3122 = vld [vmem:[#allocation2 + $0x64] sm:$0xf]
        %v3123 = vld [vmem:[#allocation2 + $0x68] sm:$0xf]
        %v3124 = vld [vmem:[#allocation2 + $0x6c] sm:$0xf]
        %v3125 = vld [vmem:[#allocation2 + $0x70] sm:$0xf]
        %v3126 = vld [vmem:[#allocation2 + $0x74] sm:$0xf]
        %v3127 = vld [vmem:[#allocation2 + $0x78] sm:$0xf]
        %v3128 = vld [vmem:[#allocation2 + $0x7c] sm:$0xf]
        %v3129 = vld [vmem:[#allocation2 + $0x80] sm:$0xf]
        %v3130 = vld [vmem:[#allocation2 + $0x84] sm:$0xf]
        %v3131 = vld [vmem:[#allocation2 + $0x88] sm:$0xf]
        %v3132 = vld [vmem:[#allocation2 + $0x8c] sm:$0xf]
        %s3133 = scalar_lea.vmem %s5, 48
        %v3134 = vld [vmem:[%s3133] sm:$0xf]
        %v3135 = vld [vmem:[%s3133 + $0x4] sm:$0xf]
        %v3136 = vld [vmem:[%s3133 + $0x8] sm:$0xf]
        %v3137 = vld [vmem:[%s3133 + $0xc] sm:$0xf]
        %v3138 = vld [vmem:[%s3133 + $0x10] sm:$0xf]
        %v3139 = vld [vmem:[%s3133 + $0x14] sm:$0xf]
        %v3172 = vunpack.c.l.b16 %v3101
        %v3173 = vunpack.c.l.b16 %v3102
        %v3174 = vunpack.c.l.b16 %v3103
        %v3175 = vunpack.c.l.b16 %v3104
        %v3176 = vunpack.c.l.b16 %v3105
        %v3177 = vunpack.c.l.b16 %v3106
        %v3178 = vunpack.c.l.b16 %v3107
        %v3179 = vunpack.c.l.b16 %v3108
        %v3180 = vunpack.c.l.b16 %v3109
        %v3181 = vunpack.c.l.b16 %v3110
        %v3182 = vunpack.c.l.b16 %v3111
        %v3183 = vunpack.c.l.b16 %v3112
        %v3184 = vunpack.c.l.b16 %v3113
        %v3185 = vunpack.c.l.b16 %v3114
        %v3186 = vunpack.c.l.b16 %v3115
        %v3187 = vunpack.c.l.b16 %v3116
        %v3188 = vunpack.c.l.b16 %v3117
        %v3189 = vunpack.c.l.b16 %v3118
        %v3190 = vunpack.c.l.b16 %v3119
        %v3191 = vunpack.c.l.b16 %v3120
        %v3192 = vunpack.c.l.b16 %v3121
        %v3193 = vunpack.c.l.b16 %v3122
        %v3194 = vunpack.c.l.b16 %v3123
        %v3195 = vunpack.c.l.b16 %v3124
        %v3196 = vunpack.c.l.b16 %v3125
        %v3197 = vunpack.c.l.b16 %v3126
        %v3198 = vunpack.c.l.b16 %v3127
        %v3199 = vunpack.c.l.b16 %v3128
        %v3200 = vunpack.c.l.b16 %v3129
        %v3201 = vunpack.c.l.b16 %v3130
        %v3202 = vunpack.c.l.b16 %v3131
        %v3203 = vunpack.c.l.b16 %v3132
        %v3204 = vpack.c.b16 %v3173, %v3172
        %v3205 = vpack.c.b16 %v3175, %v3174
        %v3206 = vpack.c.b16 %v3177, %v3176
        %v3207 = vpack.c.b16 %v3179, %v3178
        %v3208 = vpack.c.b16 %v3181, %v3180
        %v3209 = vpack.c.b16 %v3183, %v3182
        %v3210 = vpack.c.b16 %v3185, %v3184
        %v3211 = vpack.c.b16 %v3187, %v3186
        %v3212 = vpack.c.b16 %v3189, %v3188
        %v3213 = vpack.c.b16 %v3191, %v3190
        %v3214 = vpack.c.b16 %v3193, %v3192
        %v3215 = vpack.c.b16 %v3195, %v3194
        %v3216 = vpack.c.b16 %v3197, %v3196
        %v3217 = vpack.c.b16 %v3199, %v3198
        %v3218 = vpack.c.b16 %v3201, %v3200
        %v3219 = vpack.c.b16 %v3203, %v3202
        %v3226 = vunpack.c.l.b16 %v3134
        %v3227 = vunpack.c.l.b16 %v3135
        %v3228 = vunpack.c.l.b16 %v3136
        %v3229 = vunpack.c.l.b16 %v3137
        %v3230 = vunpack.c.l.b16 %v3138
        %v3231 = vunpack.c.l.b16 %v3139
        %v3232 = vpack.c.b16 %v3227, %v3226
        %v3233 = vpack.c.b16 %v3229, %v3228
        %v3234 = vpack.c.b16 %v3231, %v3230
        %v3239 = vsel %vm2848, %v3204, 0
        %v3242 = vsel %vm2848, %v3205, 0
        %v3245 = vsel %vm2848, %v3206, 0
        %v3248 = vsel %vm2848, %v3207, 0
        %v3251 = vsel %vm2848, %v3208, 0
        %v3254 = vsel %vm2848, %v3209, 0
        %v3257 = vsel %vm2848, %v3210, 0
        %v3260 = vsel %vm2848, %v3211, 0
        %v3263 = vsel %vm2848, %v3212, 0
        %v3266 = vsel %vm2848, %v3213, 0
        %v3269 = vsel %vm2848, %v3214, 0
        %v3272 = vsel %vm2848, %v3215, 0
        %v3275 = vsel %vm2848, %v3216, 0
        %v3278 = vsel %vm2848, %v3217, 0
        %v3281 = vsel %vm2848, %v3218, 0
        %v3284 = vsel %vm2848, %v3219, 0
        %3286 = vmatpush.bf16.msra.mxu0 0
        %3287 = vmatpush.bf16.msra.mxu0 0
        %3288 = vmatpush.bf16.msra.mxu0 0
        %3289 = vmatpush.bf16.msra.mxu0 0
        %3290 = vmatpush.bf16.msra.mxu0 0
        %3291 = vmatpush.bf16.msra.mxu0 %v3234
        %3292 = vmatpush.bf16.msra.mxu0 %v3233
        %3293 = vmatpush.bf16.msra.mxu0 %v3232
        %3294 = vmatmul.bf16.gmra.mxu0 %v3239
        %v3295 = vpop.f32.mrf.mxu0
        %v3296 = vadd.f32 0.0, %v3295
        %v3297 = vpop.f32.mrf.mxu0
        %v3298 = vadd.f32 0.0, %v3297
        %3299 = vmatmul.bf16.gmra.mxu0 %v3242
        %v3300 = vpop.f32.mrf.mxu0
        %v3301 = vadd.f32 0.0, %v3300
        %v3302 = vpop.f32.mrf.mxu0
        %v3303 = vadd.f32 0.0, %v3302
        %3304 = vmatmul.bf16.gmra.mxu0 %v3245
        %v3305 = vpop.f32.mrf.mxu0
        %v3306 = vadd.f32 0.0, %v3305
        %v3307 = vpop.f32.mrf.mxu0
        %v3308 = vadd.f32 0.0, %v3307
        %3309 = vmatmul.bf16.gmra.mxu0 %v3248
        %v3310 = vpop.f32.mrf.mxu0
        %v3311 = vadd.f32 0.0, %v3310
        %v3312 = vpop.f32.mrf.mxu0
        %v3313 = vadd.f32 0.0, %v3312
        %3314 = vmatmul.bf16.gmra.mxu0 %v3251
        %v3315 = vpop.f32.mrf.mxu0
        %v3316 = vadd.f32 0.0, %v3315
        %v3317 = vpop.f32.mrf.mxu0
        %v3318 = vadd.f32 0.0, %v3317
        %3319 = vmatmul.bf16.gmra.mxu0 %v3254
        %v3320 = vpop.f32.mrf.mxu0
        %v3321 = vadd.f32 0.0, %v3320
        %v3322 = vpop.f32.mrf.mxu0
        %v3323 = vadd.f32 0.0, %v3322
        %3324 = vmatmul.bf16.gmra.mxu0 %v3257
        %v3325 = vpop.f32.mrf.mxu0
        %v3326 = vadd.f32 0.0, %v3325
        %v3327 = vpop.f32.mrf.mxu0
        %v3328 = vadd.f32 0.0, %v3327
        %3329 = vmatmul.bf16.gmra.mxu0 %v3260
        %v3330 = vpop.f32.mrf.mxu0
        %v3331 = vadd.f32 0.0, %v3330
        %v3332 = vpop.f32.mrf.mxu0
        %v3333 = vadd.f32 0.0, %v3332
        %3334 = vmatmul.bf16.gmra.mxu0 %v3263
        %v3335 = vpop.f32.mrf.mxu0
        %v3336 = vadd.f32 0.0, %v3335
        %v3337 = vpop.f32.mrf.mxu0
        %v3338 = vadd.f32 0.0, %v3337
        %3339 = vmatmul.bf16.gmra.mxu0 %v3266
        %v3340 = vpop.f32.mrf.mxu0
        %v3341 = vadd.f32 0.0, %v3340
        %v3342 = vpop.f32.mrf.mxu0
        %v3343 = vadd.f32 0.0, %v3342
        %3344 = vmatmul.bf16.gmra.mxu0 %v3269
        %v3345 = vpop.f32.mrf.mxu0
        %v3346 = vadd.f32 0.0, %v3345
        %v3347 = vpop.f32.mrf.mxu0
        %v3348 = vadd.f32 0.0, %v3347
        %3349 = vmatmul.bf16.gmra.mxu0 %v3272
        %v3350 = vpop.f32.mrf.mxu0
        %v3351 = vadd.f32 0.0, %v3350
        %v3352 = vpop.f32.mrf.mxu0
        %v3353 = vadd.f32 0.0, %v3352
        %3354 = vmatmul.bf16.gmra.mxu0 %v3275
        %v3355 = vpop.f32.mrf.mxu0
        %v3356 = vadd.f32 0.0, %v3355
        %v3357 = vpop.f32.mrf.mxu0
        %v3358 = vadd.f32 0.0, %v3357
        %3359 = vmatmul.bf16.gmra.mxu0 %v3278
        %v3360 = vpop.f32.mrf.mxu0
        %v3361 = vadd.f32 0.0, %v3360
        %v3362 = vpop.f32.mrf.mxu0
        %v3363 = vadd.f32 0.0, %v3362
        %3364 = vmatmul.bf16.gmra.mxu0 %v3281
        %v3365 = vpop.f32.mrf.mxu0
        %v3366 = vadd.f32 0.0, %v3365
        %v3367 = vpop.f32.mrf.mxu0
        %v3368 = vadd.f32 0.0, %v3367
        %3369 = vmatmul.bf16.gmra.mxu0 %v3284
        %v3370 = vpop.f32.mrf.mxu0
        %v3371 = vadd.f32 0.0, %v3370
        %v3372 = vpop.f32.mrf.mxu0
        %v3373 = vadd.f32 0.0, %v3372
        %3374 = vdwg.mxu0
        %v3375 = vadd.f32 %v3022, %v3296
        %v3376 = vadd.f32 %v3024, %v3298
        %v3377 = vadd.f32 %v3027, %v3301
        %v3378 = vadd.f32 %v3029, %v3303
        %v3379 = vadd.f32 %v3032, %v3306
        %v3380 = vadd.f32 %v3034, %v3308
        %v3381 = vadd.f32 %v3037, %v3311
        %v3382 = vadd.f32 %v3039, %v3313
        %v3383 = vadd.f32 %v3042, %v3316
        %v3384 = vadd.f32 %v3044, %v3318
        %v3385 = vadd.f32 %v3047, %v3321
        %v3386 = vadd.f32 %v3049, %v3323
        %v3387 = vadd.f32 %v3052, %v3326
        %v3388 = vadd.f32 %v3054, %v3328
        %v3389 = vadd.f32 %v3057, %v3331
        %v3390 = vadd.f32 %v3059, %v3333
        %v3391 = vadd.f32 %v3062, %v3336
        %v3392 = vadd.f32 %v3064, %v3338
        %v3393 = vadd.f32 %v3067, %v3341
        %v3394 = vadd.f32 %v3069, %v3343
        %v3395 = vadd.f32 %v3072, %v3346
        %v3396 = vadd.f32 %v3074, %v3348
        %v3397 = vadd.f32 %v3077, %v3351
        %v3398 = vadd.f32 %v3079, %v3353
        %v3399 = vadd.f32 %v3082, %v3356
        %v3400 = vadd.f32 %v3084, %v3358
        %v3401 = vadd.f32 %v3087, %v3361
        %v3402 = vadd.f32 %v3089, %v3363
        %v3403 = vadd.f32 %v3092, %v3366
        %v3404 = vadd.f32 %v3094, %v3368
        %v3405 = vadd.f32 %v3097, %v3371
        %v3406 = vadd.f32 %v3099, %v3373
        %v3407 = vld [vmem:[%s6] sm:$0x1]
        %v3408 = vld [vmem:[%s7] sm:$0x1]
        %v3409 = vsel %vm735, %v3375, 0.0
        %v3410 = vsel %vm735, %v3376, 0.0
        %v3411 = vadd.f32 %v3409, %v3410
        %v3412 = vsel %vm735, %v3377, 0.0
        %v3413 = vadd.f32 %v3411, %v3412
        %v3414 = vsel %vm735, %v3378, 0.0
        %v3415 = vadd.f32 %v3413, %v3414
        %v3416 = vsel %vm735, %v3379, 0.0
        %v3417 = vadd.f32 %v3415, %v3416
        %v3418 = vsel %vm735, %v3380, 0.0
        %v3419 = vadd.f32 %v3417, %v3418
        %v3420 = vsel %vm735, %v3381, 0.0
        %v3421 = vadd.f32 %v3419, %v3420
        %v3422 = vsel %vm735, %v3382, 0.0
        %v3423 = vadd.f32 %v3421, %v3422
        %v3424 = vsel %vm735, %v3383, 0.0
        %v3425 = vadd.f32 %v3423, %v3424
        %v3426 = vsel %vm735, %v3384, 0.0
        %v3427 = vadd.f32 %v3425, %v3426
        %v3428 = vsel %vm735, %v3385, 0.0
        %v3429 = vadd.f32 %v3427, %v3428
        %v3430 = vsel %vm735, %v3386, 0.0
        %v3431 = vadd.f32 %v3429, %v3430
        %v3432 = vsel %vm735, %v3387, 0.0
        %v3433 = vadd.f32 %v3431, %v3432
        %v3434 = vsel %vm735, %v3388, 0.0
        %v3435 = vadd.f32 %v3433, %v3434
        %v3436 = vsel %vm735, %v3389, 0.0
        %v3437 = vadd.f32 %v3435, %v3436
        %v3438 = vsel %vm735, %v3390, 0.0
        %v3439 = vadd.f32 %v3437, %v3438
        %v3440 = vsel %vm735, %v3391, 0.0
        %v3441 = vadd.f32 %v3439, %v3440
        %v3442 = vsel %vm735, %v3392, 0.0
        %v3443 = vadd.f32 %v3441, %v3442
        %v3444 = vsel %vm735, %v3393, 0.0
        %v3445 = vadd.f32 %v3443, %v3444
        %v3446 = vsel %vm735, %v3394, 0.0
        %v3447 = vadd.f32 %v3445, %v3446
        %v3448 = vsel %vm735, %v3395, 0.0
        %v3449 = vadd.f32 %v3447, %v3448
        %v3450 = vsel %vm735, %v3396, 0.0
        %v3451 = vadd.f32 %v3449, %v3450
        %v3452 = vsel %vm735, %v3397, 0.0
        %v3453 = vadd.f32 %v3451, %v3452
        %v3454 = vsel %vm735, %v3398, 0.0
        %v3455 = vadd.f32 %v3453, %v3454
        %v3456 = vsel %vm735, %v3399, 0.0
        %v3457 = vadd.f32 %v3455, %v3456
        %v3458 = vsel %vm735, %v3400, 0.0
        %v3459 = vadd.f32 %v3457, %v3458
        %v3460 = vsel %vm735, %v3401, 0.0
        %v3461 = vadd.f32 %v3459, %v3460
        %v3462 = vsel %vm735, %v3402, 0.0
        %v3463 = vadd.f32 %v3461, %v3462
        %v3464 = vsel %vm735, %v3403, 0.0
        %v3465 = vadd.f32 %v3463, %v3464
        %v3466 = vsel %vm735, %v3404, 0.0
        %v3467 = vadd.f32 %v3465, %v3466
        %v3468 = vsel %vm735, %v3405, 0.0
        %v3469 = vadd.f32 %v3467, %v3468
        %v3470 = vsel %vm735, %v3406, 0.0
        %v3471 = vadd.f32 %v3469, %v3470
        %v3472 = vrot.slane %v3471, 4
        %v3473 = vadd.f32 %v3471, %v3472
        %v3474 = vrot.slane %v3473, 2
        %v3475 = vadd.f32 %v3473, %v3474
        %v3476 = vrot.slane %v3475, 1
        %v3477 = vadd.f32 %v3475, %v3476
        %v3478 = vmul.f32 %v3375, %v3375
        %v3479 = vmul.f32 %v3376, %v3376
        %v3480 = vmul.f32 %v3377, %v3377
        %v3481 = vmul.f32 %v3378, %v3378
        %v3482 = vmul.f32 %v3379, %v3379
        %v3483 = vmul.f32 %v3380, %v3380
        %v3484 = vmul.f32 %v3381, %v3381
        %v3485 = vmul.f32 %v3382, %v3382
        %v3486 = vmul.f32 %v3383, %v3383
        %v3487 = vmul.f32 %v3384, %v3384
        %v3488 = vmul.f32 %v3385, %v3385
        %v3489 = vmul.f32 %v3386, %v3386
        %v3490 = vmul.f32 %v3387, %v3387
        %v3491 = vmul.f32 %v3388, %v3388
        %v3492 = vmul.f32 %v3389, %v3389
        %v3493 = vmul.f32 %v3390, %v3390
        %v3494 = vmul.f32 %v3391, %v3391
        %v3495 = vmul.f32 %v3392, %v3392
        %v3496 = vmul.f32 %v3393, %v3393
        %v3497 = vmul.f32 %v3394, %v3394
        %v3498 = vmul.f32 %v3395, %v3395
        %v3499 = vmul.f32 %v3396, %v3396
        %v3500 = vmul.f32 %v3397, %v3397
        %v3501 = vmul.f32 %v3398, %v3398
        %v3502 = vmul.f32 %v3399, %v3399
        %v3503 = vmul.f32 %v3400, %v3400
        %v3504 = vmul.f32 %v3401, %v3401
        %v3505 = vmul.f32 %v3402, %v3402
        %v3506 = vmul.f32 %v3403, %v3403
        %v3507 = vmul.f32 %v3404, %v3404
        %v3508 = vmul.f32 %v3405, %v3405
        %v3509 = vmul.f32 %v3406, %v3406
        %v3510 = vsel %vm735, %v3478, 0.0
        %v3511 = vsel %vm735, %v3479, 0.0
        %v3512 = vadd.f32 %v3510, %v3511
        %v3513 = vsel %vm735, %v3480, 0.0
        %v3514 = vadd.f32 %v3512, %v3513
        %v3515 = vsel %vm735, %v3481, 0.0
        %v3516 = vadd.f32 %v3514, %v3515
        %v3517 = vsel %vm735, %v3482, 0.0
        %v3518 = vadd.f32 %v3516, %v3517
        %v3519 = vsel %vm735, %v3483, 0.0
        %v3520 = vadd.f32 %v3518, %v3519
        %v3521 = vsel %vm735, %v3484, 0.0
        %v3522 = vadd.f32 %v3520, %v3521
        %v3523 = vsel %vm735, %v3485, 0.0
        %v3524 = vadd.f32 %v3522, %v3523
        %v3525 = vsel %vm735, %v3486, 0.0
        %v3526 = vadd.f32 %v3524, %v3525
        %v3527 = vsel %vm735, %v3487, 0.0
        %v3528 = vadd.f32 %v3526, %v3527
        %v3529 = vsel %vm735, %v3488, 0.0
        %v3530 = vadd.f32 %v3528, %v3529
        %v3531 = vsel %vm735, %v3489, 0.0
        %v3532 = vadd.f32 %v3530, %v3531
        %v3533 = vsel %vm735, %v3490, 0.0
        %v3534 = vadd.f32 %v3532, %v3533
        %v3535 = vsel %vm735, %v3491, 0.0
        %v3536 = vadd.f32 %v3534, %v3535
        %v3537 = vsel %vm735, %v3492, 0.0
        %v3538 = vadd.f32 %v3536, %v3537
        %v3539 = vsel %vm735, %v3493, 0.0
        %v3540 = vadd.f32 %v3538, %v3539
        %v3541 = vsel %vm735, %v3494, 0.0
        %v3542 = vadd.f32 %v3540, %v3541
        %v3543 = vsel %vm735, %v3495, 0.0
        %v3544 = vadd.f32 %v3542, %v3543
        %v3545 = vsel %vm735, %v3496, 0.0
        %v3546 = vadd.f32 %v3544, %v3545
        %v3547 = vsel %vm735, %v3497, 0.0
        %v3548 = vadd.f32 %v3546, %v3547
        %v3549 = vsel %vm735, %v3498, 0.0
        %v3550 = vadd.f32 %v3548, %v3549
        %v3551 = vsel %vm735, %v3499, 0.0
        %v3552 = vadd.f32 %v3550, %v3551
        %v3553 = vsel %vm735, %v3500, 0.0
        %v3554 = vadd.f32 %v3552, %v3553
        %v3555 = vsel %vm735, %v3501, 0.0
        %v3556 = vadd.f32 %v3554, %v3555
        %v3557 = vsel %vm735, %v3502, 0.0
        %v3558 = vadd.f32 %v3556, %v3557
        %v3559 = vsel %vm735, %v3503, 0.0
        %v3560 = vadd.f32 %v3558, %v3559
        %v3561 = vsel %vm735, %v3504, 0.0
        %v3562 = vadd.f32 %v3560, %v3561
        %v3563 = vsel %vm735, %v3505, 0.0
        %v3564 = vadd.f32 %v3562, %v3563
        %v3565 = vsel %vm735, %v3506, 0.0
        %v3566 = vadd.f32 %v3564, %v3565
        %v3567 = vsel %vm735, %v3507, 0.0
        %v3568 = vadd.f32 %v3566, %v3567
        %v3569 = vsel %vm735, %v3508, 0.0
        %v3570 = vadd.f32 %v3568, %v3569
        %v3571 = vsel %vm735, %v3509, 0.0
        %v3572 = vadd.f32 %v3570, %v3571
        %v3573 = vrot.slane %v3572, 4
        %v3574 = vadd.f32 %v3572, %v3573
        %v3575 = vrot.slane %v3574, 2
        %v3576 = vadd.f32 %v3574, %v3575
        %v3577 = vrot.slane %v3576, 1
        %v3578 = vadd.f32 %v3576, %v3577
        %v3579 = vmul.f32 %v3477, 0.00390625
        %v3580 = vmul.f32 %v3578, 0.00390625
        %v3581 = vmul.f32 %v3579, %v3579
        %v3582 = vsub.f32 %v3580, %v3581
        %v3583 = vmax.f32 %v3582, 0.0
        %v3584 = vadd.f32 %v3583, 1e-05
        %v3585 = vrsqrt.pop %v3584
        %v3586 = vmul.f32 %v3585, %v3584
        %v3587 = vmul.f32 %v3586, %v3585
        %v3588 = vmul.f32 0.5, %v3587
        %v3589 = vsub.f32 1.5, %v3588
        %v3590 = vmul.f32 %v3585, %v3589
        %vm3591 = vweird.f32 %v3584
        %vm3592 = vweird.f32 %v3585
        %vm3593 = vmor %vm3591, %vm3592
        %v3594 = vsel %vm3593, %v3585, %v3590
        %v3595 = vmul.f32 %v3407, %v3594
        %v3596 = vmul.f32 %v3579, %v3595
        %v3597 = vsub.f32 %v3408, %v3596
        %v3599 = vperm.slane %v3595, 0
        %v3601 = vmul.f32 %v3375, %v3599
        %v3602 = vmul.f32 %v3376, %v3599
        %v3603 = vmul.f32 %v3377, %v3599
        %v3604 = vmul.f32 %v3378, %v3599
        %v3605 = vmul.f32 %v3379, %v3599
        %v3606 = vmul.f32 %v3380, %v3599
        %v3607 = vmul.f32 %v3381, %v3599
        %v3608 = vmul.f32 %v3382, %v3599
        %v3609 = vmul.f32 %v3383, %v3599
        %v3610 = vmul.f32 %v3384, %v3599
        %v3611 = vmul.f32 %v3385, %v3599
        %v3612 = vmul.f32 %v3386, %v3599
        %v3613 = vmul.f32 %v3387, %v3599
        %v3614 = vmul.f32 %v3388, %v3599
        %v3615 = vmul.f32 %v3389, %v3599
        %v3616 = vmul.f32 %v3390, %v3599
        %v3617 = vmul.f32 %v3391, %v3599
        %v3618 = vmul.f32 %v3392, %v3599
        %v3619 = vmul.f32 %v3393, %v3599
        %v3620 = vmul.f32 %v3394, %v3599
        %v3621 = vmul.f32 %v3395, %v3599
        %v3622 = vmul.f32 %v3396, %v3599
        %v3623 = vmul.f32 %v3397, %v3599
        %v3624 = vmul.f32 %v3398, %v3599
        %v3625 = vmul.f32 %v3399, %v3599
        %v3626 = vmul.f32 %v3400, %v3599
        %v3627 = vmul.f32 %v3401, %v3599
        %v3628 = vmul.f32 %v3402, %v3599
        %v3629 = vmul.f32 %v3403, %v3599
        %v3630 = vmul.f32 %v3404, %v3599
        %v3631 = vmul.f32 %v3405, %v3599
        %v3632 = vmul.f32 %v3406, %v3599
        %v3634 = vperm.slane %v3597, 0
        %v3636 = vadd.f32 %v3601, %v3634
        %v3637 = vadd.f32 %v3602, %v3634
        %v3638 = vadd.f32 %v3603, %v3634
        %v3639 = vadd.f32 %v3604, %v3634
        %v3640 = vadd.f32 %v3605, %v3634
        %v3641 = vadd.f32 %v3606, %v3634
        %v3642 = vadd.f32 %v3607, %v3634
        %v3643 = vadd.f32 %v3608, %v3634
        %v3644 = vadd.f32 %v3609, %v3634
        %v3645 = vadd.f32 %v3610, %v3634
        %v3646 = vadd.f32 %v3611, %v3634
        %v3647 = vadd.f32 %v3612, %v3634
        %v3648 = vadd.f32 %v3613, %v3634
        %v3649 = vadd.f32 %v3614, %v3634
        %v3650 = vadd.f32 %v3615, %v3634
        %v3651 = vadd.f32 %v3616, %v3634
        %v3652 = vadd.f32 %v3617, %v3634
        %v3653 = vadd.f32 %v3618, %v3634
        %v3654 = vadd.f32 %v3619, %v3634
        %v3655 = vadd.f32 %v3620, %v3634
        %v3656 = vadd.f32 %v3621, %v3634
        %v3657 = vadd.f32 %v3622, %v3634
        %v3658 = vadd.f32 %v3623, %v3634
        %v3659 = vadd.f32 %v3624, %v3634
        %v3660 = vadd.f32 %v3625, %v3634
        %v3661 = vadd.f32 %v3626, %v3634
        %v3662 = vadd.f32 %v3627, %v3634
        %v3663 = vadd.f32 %v3628, %v3634
        %v3664 = vadd.f32 %v3629, %v3634
        %v3665 = vadd.f32 %v3630, %v3634
        %v3666 = vadd.f32 %v3631, %v3634
        %v3667 = vadd.f32 %v3632, %v3634
        %v3668 = vmax.f32 %v3636, 0.0
        %v3669 = vmax.f32 %v3637, 0.0
        %v3670 = vmax.f32 %v3638, 0.0
        %v3671 = vmax.f32 %v3639, 0.0
        %v3672 = vmax.f32 %v3640, 0.0
        %v3673 = vmax.f32 %v3641, 0.0
        %v3674 = vmax.f32 %v3642, 0.0
        %v3675 = vmax.f32 %v3643, 0.0
        %v3676 = vmax.f32 %v3644, 0.0
        %v3677 = vmax.f32 %v3645, 0.0
        %v3678 = vmax.f32 %v3646, 0.0
        %v3679 = vmax.f32 %v3647, 0.0
        %v3680 = vmax.f32 %v3648, 0.0
        %v3681 = vmax.f32 %v3649, 0.0
        %v3682 = vmax.f32 %v3650, 0.0
        %v3683 = vmax.f32 %v3651, 0.0
        %v3684 = vmax.f32 %v3652, 0.0
        %v3685 = vmax.f32 %v3653, 0.0
        %v3686 = vmax.f32 %v3654, 0.0
        %v3687 = vmax.f32 %v3655, 0.0
        %v3688 = vmax.f32 %v3656, 0.0
        %v3689 = vmax.f32 %v3657, 0.0
        %v3690 = vmax.f32 %v3658, 0.0
        %v3691 = vmax.f32 %v3659, 0.0
        %v3692 = vmax.f32 %v3660, 0.0
        %v3693 = vmax.f32 %v3661, 0.0
        %v3694 = vmax.f32 %v3662, 0.0
        %v3695 = vmax.f32 %v3663, 0.0
        %v3696 = vmax.f32 %v3664, 0.0
        %v3697 = vmax.f32 %v3665, 0.0
        %v3698 = vmax.f32 %v3666, 0.0
        %v3699 = vmax.f32 %v3667, 0.0
        %v3700 = vpack.c.bf16 %v3669, %v3668
        %v3701 = vpack.c.bf16 %v3671, %v3670
        %v3702 = vpack.c.bf16 %v3673, %v3672
        %v3703 = vpack.c.bf16 %v3675, %v3674
        %v3704 = vpack.c.bf16 %v3677, %v3676
        %v3705 = vpack.c.bf16 %v3679, %v3678
        %v3706 = vpack.c.bf16 %v3681, %v3680
        %v3707 = vpack.c.bf16 %v3683, %v3682
        %v3708 = vpack.c.bf16 %v3685, %v3684
        %v3709 = vpack.c.bf16 %v3687, %v3686
        %v3710 = vpack.c.bf16 %v3689, %v3688
        %v3711 = vpack.c.bf16 %v3691, %v3690
        %v3712 = vpack.c.bf16 %v3693, %v3692
        %v3713 = vpack.c.bf16 %v3695, %v3694
        %v3714 = vpack.c.bf16 %v3697, %v3696
        %v3715 = vpack.c.bf16 %v3699, %v3698
        %v3716 = vld [vmem:[%s11] sm:$0xf]
        %v3717 = vld [vmem:[%s11 + $0x4] sm:$0xf]
        %v3718 = vld [vmem:[%s11 + $0x8] sm:$0xf]
        %v3719 = vld [vmem:[%s11 + $0xc] sm:$0xf]
        %v3724 = vunpack.c.l.b16 %v3716
        %v3725 = vunpack.c.l.b16 %v3717
        %v3726 = vunpack.c.l.b16 %v3718
        %v3727 = vunpack.c.l.b16 %v3719
        %v3728 = vpack.c.b16 %v3725, %v3724
        %v3729 = vpack.c.b16 %v3727, %v3726
        %3732 = vmatpush.bf16.msra.mxu0 0
        %3733 = vmatpush.bf16.msra.mxu0 0
        %3734 = vmatpush.bf16.msra.mxu0 0
        %3735 = vmatpush.bf16.msra.mxu0 0
        %3736 = vmatpush.bf16.msra.mxu0 0
        %3737 = vmatpush.bf16.msra.mxu0 0
        %3738 = vmatpush.bf16.msra.mxu0 %v3729
        %3739 = vmatpush.bf16.msra.mxu0 %v3728
        %3740 = vmatmul.bf16.gmra.mxu0 %v597
        %v3741 = vpop.f32.mrf.mxu0
        %v3742 = vadd.f32 0.0, %v3741
        %v3743 = vpop.f32.mrf.mxu0
        %v3744 = vadd.f32 0.0, %v3743
        %3745 = vmatmul.bf16.gmra.mxu0 %v600
        %v3746 = vpop.f32.mrf.mxu0
        %v3747 = vadd.f32 0.0, %v3746
        %v3748 = vpop.f32.mrf.mxu0
        %v3749 = vadd.f32 0.0, %v3748
        %3750 = vmatmul.bf16.gmra.mxu0 %v603
        %v3751 = vpop.f32.mrf.mxu0
        %v3752 = vadd.f32 0.0, %v3751
        %v3753 = vpop.f32.mrf.mxu0
        %v3754 = vadd.f32 0.0, %v3753
        %3755 = vmatmul.bf16.gmra.mxu0 %v606
        %v3756 = vpop.f32.mrf.mxu0
        %v3757 = vadd.f32 0.0, %v3756
        %v3758 = vpop.f32.mrf.mxu0
        %v3759 = vadd.f32 0.0, %v3758
        %3760 = vmatmul.bf16.gmra.mxu0 %v609
        %v3761 = vpop.f32.mrf.mxu0
        %v3762 = vadd.f32 0.0, %v3761
        %v3763 = vpop.f32.mrf.mxu0
        %v3764 = vadd.f32 0.0, %v3763
        %3765 = vmatmul.bf16.gmra.mxu0 %v612
        %v3766 = vpop.f32.mrf.mxu0
        %v3767 = vadd.f32 0.0, %v3766
        %v3768 = vpop.f32.mrf.mxu0
        %v3769 = vadd.f32 0.0, %v3768
        %3770 = vmatmul.bf16.gmra.mxu0 %v615
        %v3771 = vpop.f32.mrf.mxu0
        %v3772 = vadd.f32 0.0, %v3771
        %v3773 = vpop.f32.mrf.mxu0
        %v3774 = vadd.f32 0.0, %v3773
        %3775 = vmatmul.bf16.gmra.mxu0 %v618
        %v3776 = vpop.f32.mrf.mxu0
        %v3777 = vadd.f32 0.0, %v3776
        %v3778 = vpop.f32.mrf.mxu0
        %v3779 = vadd.f32 0.0, %v3778
        %3780 = vmatmul.bf16.gmra.mxu0 %v621
        %v3781 = vpop.f32.mrf.mxu0
        %v3782 = vadd.f32 0.0, %v3781
        %v3783 = vpop.f32.mrf.mxu0
        %v3784 = vadd.f32 0.0, %v3783
        %3785 = vmatmul.bf16.gmra.mxu0 %v624
        %v3786 = vpop.f32.mrf.mxu0
        %v3787 = vadd.f32 0.0, %v3786
        %v3788 = vpop.f32.mrf.mxu0
        %v3789 = vadd.f32 0.0, %v3788
        %3790 = vmatmul.bf16.gmra.mxu0 %v627
        %v3791 = vpop.f32.mrf.mxu0
        %v3792 = vadd.f32 0.0, %v3791
        %v3793 = vpop.f32.mrf.mxu0
        %v3794 = vadd.f32 0.0, %v3793
        %3795 = vmatmul.bf16.gmra.mxu0 %v630
        %v3796 = vpop.f32.mrf.mxu0
        %v3797 = vadd.f32 0.0, %v3796
        %v3798 = vpop.f32.mrf.mxu0
        %v3799 = vadd.f32 0.0, %v3798
        %3800 = vmatmul.bf16.gmra.mxu0 %v633
        %v3801 = vpop.f32.mrf.mxu0
        %v3802 = vadd.f32 0.0, %v3801
        %v3803 = vpop.f32.mrf.mxu0
        %v3804 = vadd.f32 0.0, %v3803
        %3805 = vmatmul.bf16.gmra.mxu0 %v636
        %v3806 = vpop.f32.mrf.mxu0
        %v3807 = vadd.f32 0.0, %v3806
        %v3808 = vpop.f32.mrf.mxu0
        %v3809 = vadd.f32 0.0, %v3808
        %3810 = vmatmul.bf16.gmra.mxu0 %v639
        %v3811 = vpop.f32.mrf.mxu0
        %v3812 = vadd.f32 0.0, %v3811
        %v3813 = vpop.f32.mrf.mxu0
        %v3814 = vadd.f32 0.0, %v3813
        %3815 = vmatmul.bf16.gmra.mxu0 %v642
        %v3816 = vpop.f32.mrf.mxu0
        %v3817 = vadd.f32 0.0, %v3816
        %v3818 = vpop.f32.mrf.mxu0
        %v3819 = vadd.f32 0.0, %v3818
        %3820 = vdwg.mxu0
        %v3821 = vld [vmem:[%s12] sm:$0x1]
        %v3822 = vld [vmem:[%s13] sm:$0x1]
        %vm3823 = vcmask 523264
        %v3824 = vsel %vm3823, %v3742, 0.0
        %v3825 = vsel %vm3823, %v3744, 0.0
        %v3826 = vadd.f32 %v3824, %v3825
        %v3827 = vsel %vm3823, %v3747, 0.0
        %v3828 = vadd.f32 %v3826, %v3827
        %v3829 = vsel %vm3823, %v3749, 0.0
        %v3830 = vadd.f32 %v3828, %v3829
        %v3831 = vsel %vm3823, %v3752, 0.0
        %v3832 = vadd.f32 %v3830, %v3831
        %v3833 = vsel %vm3823, %v3754, 0.0
        %v3834 = vadd.f32 %v3832, %v3833
        %v3835 = vsel %vm3823, %v3757, 0.0
        %v3836 = vadd.f32 %v3834, %v3835
        %v3837 = vsel %vm3823, %v3759, 0.0
        %v3838 = vadd.f32 %v3836, %v3837
        %v3839 = vsel %vm3823, %v3762, 0.0
        %v3840 = vadd.f32 %v3838, %v3839
        %v3841 = vsel %vm3823, %v3764, 0.0
        %v3842 = vadd.f32 %v3840, %v3841
        %v3843 = vsel %vm3823, %v3767, 0.0
        %v3844 = vadd.f32 %v3842, %v3843
        %v3845 = vsel %vm3823, %v3769, 0.0
        %v3846 = vadd.f32 %v3844, %v3845
        %v3847 = vsel %vm3823, %v3772, 0.0
        %v3848 = vadd.f32 %v3846, %v3847
        %v3849 = vsel %vm3823, %v3774, 0.0
        %v3850 = vadd.f32 %v3848, %v3849
        %v3851 = vsel %vm3823, %v3777, 0.0
        %v3852 = vadd.f32 %v3850, %v3851
        %v3853 = vsel %vm3823, %v3779, 0.0
        %v3854 = vadd.f32 %v3852, %v3853
        %v3855 = vsel %vm3823, %v3782, 0.0
        %v3856 = vadd.f32 %v3854, %v3855
        %v3857 = vsel %vm3823, %v3784, 0.0
        %v3858 = vadd.f32 %v3856, %v3857
        %v3859 = vsel %vm3823, %v3787, 0.0
        %v3860 = vadd.f32 %v3858, %v3859
        %v3861 = vsel %vm3823, %v3789, 0.0
        %v3862 = vadd.f32 %v3860, %v3861
        %v3863 = vsel %vm3823, %v3792, 0.0
        %v3864 = vadd.f32 %v3862, %v3863
        %v3865 = vsel %vm3823, %v3794, 0.0
        %v3866 = vadd.f32 %v3864, %v3865
        %v3867 = vsel %vm3823, %v3797, 0.0
        %v3868 = vadd.f32 %v3866, %v3867
        %v3869 = vsel %vm3823, %v3799, 0.0
        %v3870 = vadd.f32 %v3868, %v3869
        %v3871 = vsel %vm3823, %v3802, 0.0
        %v3872 = vadd.f32 %v3870, %v3871
        %v3873 = vsel %vm3823, %v3804, 0.0
        %v3874 = vadd.f32 %v3872, %v3873
        %v3875 = vsel %vm3823, %v3807, 0.0
        %v3876 = vadd.f32 %v3874, %v3875
        %v3877 = vsel %vm3823, %v3809, 0.0
        %v3878 = vadd.f32 %v3876, %v3877
        %v3879 = vsel %vm3823, %v3812, 0.0
        %v3880 = vadd.f32 %v3878, %v3879
        %v3881 = vsel %vm3823, %v3814, 0.0
        %v3882 = vadd.f32 %v3880, %v3881
        %v3883 = vsel %vm3823, %v3817, 0.0
        %v3884 = vadd.f32 %v3882, %v3883
        %v3885 = vsel %vm3823, %v3819, 0.0
        %v3886 = vadd.f32 %v3884, %v3885
        %v3887 = vrot.slane %v3886, 4
        %v3888 = vadd.f32 %v3886, %v3887
        %v3889 = vrot.slane %v3888, 2
        %v3890 = vadd.f32 %v3888, %v3889
        %v3891 = vrot.slane %v3890, 1
        %v3892 = vadd.f32 %v3890, %v3891
        %v3893 = vmul.f32 %v3742, %v3742
        %v3894 = vmul.f32 %v3744, %v3744
        %v3895 = vmul.f32 %v3747, %v3747
        %v3896 = vmul.f32 %v3749, %v3749
        %v3897 = vmul.f32 %v3752, %v3752
        %v3898 = vmul.f32 %v3754, %v3754
        %v3899 = vmul.f32 %v3757, %v3757
        %v3900 = vmul.f32 %v3759, %v3759
        %v3901 = vmul.f32 %v3762, %v3762
        %v3902 = vmul.f32 %v3764, %v3764
        %v3903 = vmul.f32 %v3767, %v3767
        %v3904 = vmul.f32 %v3769, %v3769
        %v3905 = vmul.f32 %v3772, %v3772
        %v3906 = vmul.f32 %v3774, %v3774
        %v3907 = vmul.f32 %v3777, %v3777
        %v3908 = vmul.f32 %v3779, %v3779
        %v3909 = vmul.f32 %v3782, %v3782
        %v3910 = vmul.f32 %v3784, %v3784
        %v3911 = vmul.f32 %v3787, %v3787
        %v3912 = vmul.f32 %v3789, %v3789
        %v3913 = vmul.f32 %v3792, %v3792
        %v3914 = vmul.f32 %v3794, %v3794
        %v3915 = vmul.f32 %v3797, %v3797
        %v3916 = vmul.f32 %v3799, %v3799
        %v3917 = vmul.f32 %v3802, %v3802
        %v3918 = vmul.f32 %v3804, %v3804
        %v3919 = vmul.f32 %v3807, %v3807
        %v3920 = vmul.f32 %v3809, %v3809
        %v3921 = vmul.f32 %v3812, %v3812
        %v3922 = vmul.f32 %v3814, %v3814
        %v3923 = vmul.f32 %v3817, %v3817
        %v3924 = vmul.f32 %v3819, %v3819
        %v3925 = vsel %vm3823, %v3893, 0.0
        %v3926 = vsel %vm3823, %v3894, 0.0
        %v3927 = vadd.f32 %v3925, %v3926
        %v3928 = vsel %vm3823, %v3895, 0.0
        %v3929 = vadd.f32 %v3927, %v3928
        %v3930 = vsel %vm3823, %v3896, 0.0
        %v3931 = vadd.f32 %v3929, %v3930
        %v3932 = vsel %vm3823, %v3897, 0.0
        %v3933 = vadd.f32 %v3931, %v3932
        %v3934 = vsel %vm3823, %v3898, 0.0
        %v3935 = vadd.f32 %v3933, %v3934
        %v3936 = vsel %vm3823, %v3899, 0.0
        %v3937 = vadd.f32 %v3935, %v3936
        %v3938 = vsel %vm3823, %v3900, 0.0
        %v3939 = vadd.f32 %v3937, %v3938
        %v3940 = vsel %vm3823, %v3901, 0.0
        %v3941 = vadd.f32 %v3939, %v3940
        %v3942 = vsel %vm3823, %v3902, 0.0
        %v3943 = vadd.f32 %v3941, %v3942
        %v3944 = vsel %vm3823, %v3903, 0.0
        %v3945 = vadd.f32 %v3943, %v3944
        %v3946 = vsel %vm3823, %v3904, 0.0
        %v3947 = vadd.f32 %v3945, %v3946
        %v3948 = vsel %vm3823, %v3905, 0.0
        %v3949 = vadd.f32 %v3947, %v3948
        %v3950 = vsel %vm3823, %v3906, 0.0
        %v3951 = vadd.f32 %v3949, %v3950
        %v3952 = vsel %vm3823, %v3907, 0.0
        %v3953 = vadd.f32 %v3951, %v3952
        %v3954 = vsel %vm3823, %v3908, 0.0
        %v3955 = vadd.f32 %v3953, %v3954
        %v3956 = vsel %vm3823, %v3909, 0.0
        %v3957 = vadd.f32 %v3955, %v3956
        %v3958 = vsel %vm3823, %v3910, 0.0
        %v3959 = vadd.f32 %v3957, %v3958
        %v3960 = vsel %vm3823, %v3911, 0.0
        %v3961 = vadd.f32 %v3959, %v3960
        %v3962 = vsel %vm3823, %v3912, 0.0
        %v3963 = vadd.f32 %v3961, %v3962
        %v3964 = vsel %vm3823, %v3913, 0.0
        %v3965 = vadd.f32 %v3963, %v3964
        %v3966 = vsel %vm3823, %v3914, 0.0
        %v3967 = vadd.f32 %v3965, %v3966
        %v3968 = vsel %vm3823, %v3915, 0.0
        %v3969 = vadd.f32 %v3967, %v3968
        %v3970 = vsel %vm3823, %v3916, 0.0
        %v3971 = vadd.f32 %v3969, %v3970
        %v3972 = vsel %vm3823, %v3917, 0.0
        %v3973 = vadd.f32 %v3971, %v3972
        %v3974 = vsel %vm3823, %v3918, 0.0
        %v3975 = vadd.f32 %v3973, %v3974
        %v3976 = vsel %vm3823, %v3919, 0.0
        %v3977 = vadd.f32 %v3975, %v3976
        %v3978 = vsel %vm3823, %v3920, 0.0
        %v3979 = vadd.f32 %v3977, %v3978
        %v3980 = vsel %vm3823, %v3921, 0.0
        %v3981 = vadd.f32 %v3979, %v3980
        %v3982 = vsel %vm3823, %v3922, 0.0
        %v3983 = vadd.f32 %v3981, %v3982
        %v3984 = vsel %vm3823, %v3923, 0.0
        %v3985 = vadd.f32 %v3983, %v3984
        %v3986 = vsel %vm3823, %v3924, 0.0
        %v3987 = vadd.f32 %v3985, %v3986
        %v3988 = vrot.slane %v3987, 4
        %v3989 = vadd.f32 %v3987, %v3988
        %v3990 = vrot.slane %v3989, 2
        %v3991 = vadd.f32 %v3989, %v3990
        %v3992 = vrot.slane %v3991, 1
        %v3993 = vadd.f32 %v3991, %v3992
        %v3994 = vmul.f32 %v3892, 0.00390625
        %v3995 = vmul.f32 %v3993, 0.00390625
        %v3996 = vmul.f32 %v3994, %v3994
        %v3997 = vsub.f32 %v3995, %v3996
        %v3998 = vmax.f32 %v3997, 0.0
        %v3999 = vadd.f32 %v3998, 1e-05
        %v4000 = vrsqrt.pop %v3999
        %v4001 = vmul.f32 %v4000, %v3999
        %v4002 = vmul.f32 %v4001, %v4000
        %v4003 = vmul.f32 0.5, %v4002
        %v4004 = vsub.f32 1.5, %v4003
        %v4005 = vmul.f32 %v4000, %v4004
        %vm4006 = vweird.f32 %v3999
        %vm4007 = vweird.f32 %v4000
        %vm4008 = vmor %vm4006, %vm4007
        %v4009 = vsel %vm4008, %v4000, %v4005
        %v4010 = vmul.f32 %v3821, %v4009
        %v4011 = vmul.f32 %v3994, %v4010
        %v4012 = vsub.f32 %v3822, %v4011
        %v4014 = vperm.slane %v4010, 0
        %v4016 = vmul.f32 %v3742, %v4014
        %v4017 = vmul.f32 %v3744, %v4014
        %v4018 = vmul.f32 %v3747, %v4014
        %v4019 = vmul.f32 %v3749, %v4014
        %v4020 = vmul.f32 %v3752, %v4014
        %v4021 = vmul.f32 %v3754, %v4014
        %v4022 = vmul.f32 %v3757, %v4014
        %v4023 = vmul.f32 %v3759, %v4014
        %v4024 = vmul.f32 %v3762, %v4014
        %v4025 = vmul.f32 %v3764, %v4014
        %v4026 = vmul.f32 %v3767, %v4014
        %v4027 = vmul.f32 %v3769, %v4014
        %v4028 = vmul.f32 %v3772, %v4014
        %v4029 = vmul.f32 %v3774, %v4014
        %v4030 = vmul.f32 %v3777, %v4014
        %v4031 = vmul.f32 %v3779, %v4014
        %v4032 = vmul.f32 %v3782, %v4014
        %v4033 = vmul.f32 %v3784, %v4014
        %v4034 = vmul.f32 %v3787, %v4014
        %v4035 = vmul.f32 %v3789, %v4014
        %v4036 = vmul.f32 %v3792, %v4014
        %v4037 = vmul.f32 %v3794, %v4014
        %v4038 = vmul.f32 %v3797, %v4014
        %v4039 = vmul.f32 %v3799, %v4014
        %v4040 = vmul.f32 %v3802, %v4014
        %v4041 = vmul.f32 %v3804, %v4014
        %v4042 = vmul.f32 %v3807, %v4014
        %v4043 = vmul.f32 %v3809, %v4014
        %v4044 = vmul.f32 %v3812, %v4014
        %v4045 = vmul.f32 %v3814, %v4014
        %v4046 = vmul.f32 %v3817, %v4014
        %v4047 = vmul.f32 %v3819, %v4014
        %v4049 = vperm.slane %v4012, 0
        %v4051 = vadd.f32 %v4016, %v4049
        %v4052 = vadd.f32 %v4017, %v4049
        %v4053 = vadd.f32 %v4018, %v4049
        %v4054 = vadd.f32 %v4019, %v4049
        %v4055 = vadd.f32 %v4020, %v4049
        %v4056 = vadd.f32 %v4021, %v4049
        %v4057 = vadd.f32 %v4022, %v4049
        %v4058 = vadd.f32 %v4023, %v4049
        %v4059 = vadd.f32 %v4024, %v4049
        %v4060 = vadd.f32 %v4025, %v4049
        %v4061 = vadd.f32 %v4026, %v4049
        %v4062 = vadd.f32 %v4027, %v4049
        %v4063 = vadd.f32 %v4028, %v4049
        %v4064 = vadd.f32 %v4029, %v4049
        %v4065 = vadd.f32 %v4030, %v4049
        %v4066 = vadd.f32 %v4031, %v4049
        %v4067 = vadd.f32 %v4032, %v4049
        %v4068 = vadd.f32 %v4033, %v4049
        %v4069 = vadd.f32 %v4034, %v4049
        %v4070 = vadd.f32 %v4035, %v4049
        %v4071 = vadd.f32 %v4036, %v4049
        %v4072 = vadd.f32 %v4037, %v4049
        %v4073 = vadd.f32 %v4038, %v4049
        %v4074 = vadd.f32 %v4039, %v4049
        %v4075 = vadd.f32 %v4040, %v4049
        %v4076 = vadd.f32 %v4041, %v4049
        %v4077 = vadd.f32 %v4042, %v4049
        %v4078 = vadd.f32 %v4043, %v4049
        %v4079 = vadd.f32 %v4044, %v4049
        %v4080 = vadd.f32 %v4045, %v4049
        %v4081 = vadd.f32 %v4046, %v4049
        %v4082 = vadd.f32 %v4047, %v4049
        %v4083 = vld [vmem:[%s8] sm:$0xf]
        %v4084 = vld [vmem:[%s8 + $0x4] sm:$0xf]
        %v4087 = vunpack.c.l.b16 %v4083
        %v4088 = vunpack.c.l.b16 %v4084
        %v4089 = vpack.c.b16 %v4088, %v4087
        %v4092 = vsel %vm735, %v3700, 0
        %v4095 = vsel %vm735, %v3701, 0
        %v4098 = vsel %vm735, %v3702, 0
        %v4101 = vsel %vm735, %v3703, 0
        %v4104 = vsel %vm735, %v3704, 0
        %v4107 = vsel %vm735, %v3705, 0
        %v4110 = vsel %vm735, %v3706, 0
        %v4113 = vsel %vm735, %v3707, 0
        %v4116 = vsel %vm735, %v3708, 0
        %v4119 = vsel %vm735, %v3709, 0
        %v4122 = vsel %vm735, %v3710, 0
        %v4125 = vsel %vm735, %v3711, 0
        %v4128 = vsel %vm735, %v3712, 0
        %v4131 = vsel %vm735, %v3713, 0
        %v4134 = vsel %vm735, %v3714, 0
        %v4137 = vsel %vm735, %v3715, 0
        %4139 = vmatpush.bf16.msra.mxu0 0
        %4140 = vmatpush.bf16.msra.mxu0 0
        %4141 = vmatpush.bf16.msra.mxu0 0
        %4142 = vmatpush.bf16.msra.mxu0 0
        %4143 = vmatpush.bf16.msra.mxu0 0
        %4144 = vmatpush.bf16.msra.mxu0 0
        %4145 = vmatpush.bf16.msra.mxu0 0
        %4146 = vmatpush.bf16.msra.mxu0 %v4089
        %4147 = vmatmul.bf16.gmra.mxu0 %v4092
        %v4148 = vpop.f32.mrf.mxu0
        %v4149 = vadd.f32 0.0, %v4148
        %v4150 = vpop.f32.mrf.mxu0
        %v4151 = vadd.f32 0.0, %v4150
        %4152 = vmatmul.bf16.gmra.mxu0 %v4095
        %v4153 = vpop.f32.mrf.mxu0
        %v4154 = vadd.f32 0.0, %v4153
        %v4155 = vpop.f32.mrf.mxu0
        %v4156 = vadd.f32 0.0, %v4155
        %4157 = vmatmul.bf16.gmra.mxu0 %v4098
        %v4158 = vpop.f32.mrf.mxu0
        %v4159 = vadd.f32 0.0, %v4158
        %v4160 = vpop.f32.mrf.mxu0
        %v4161 = vadd.f32 0.0, %v4160
        %4162 = vmatmul.bf16.gmra.mxu0 %v4101
        %v4163 = vpop.f32.mrf.mxu0
        %v4164 = vadd.f32 0.0, %v4163
        %v4165 = vpop.f32.mrf.mxu0
        %v4166 = vadd.f32 0.0, %v4165
        %4167 = vmatmul.bf16.gmra.mxu0 %v4104
        %v4168 = vpop.f32.mrf.mxu0
        %v4169 = vadd.f32 0.0, %v4168
        %v4170 = vpop.f32.mrf.mxu0
        %v4171 = vadd.f32 0.0, %v4170
        %4172 = vmatmul.bf16.gmra.mxu0 %v4107
        %v4173 = vpop.f32.mrf.mxu0
        %v4174 = vadd.f32 0.0, %v4173
        %v4175 = vpop.f32.mrf.mxu0
        %v4176 = vadd.f32 0.0, %v4175
        %4177 = vmatmul.bf16.gmra.mxu0 %v4110
        %v4178 = vpop.f32.mrf.mxu0
        %v4179 = vadd.f32 0.0, %v4178
        %v4180 = vpop.f32.mrf.mxu0
        %v4181 = vadd.f32 0.0, %v4180
        %4182 = vmatmul.bf16.gmra.mxu0 %v4113
        %v4183 = vpop.f32.mrf.mxu0
        %v4184 = vadd.f32 0.0, %v4183
        %v4185 = vpop.f32.mrf.mxu0
        %v4186 = vadd.f32 0.0, %v4185
        %4187 = vmatmul.bf16.gmra.mxu0 %v4116
        %v4188 = vpop.f32.mrf.mxu0
        %v4189 = vadd.f32 0.0, %v4188
        %v4190 = vpop.f32.mrf.mxu0
        %v4191 = vadd.f32 0.0, %v4190
        %4192 = vmatmul.bf16.gmra.mxu0 %v4119
        %v4193 = vpop.f32.mrf.mxu0
        %v4194 = vadd.f32 0.0, %v4193
        %v4195 = vpop.f32.mrf.mxu0
        %v4196 = vadd.f32 0.0, %v4195
        %4197 = vmatmul.bf16.gmra.mxu0 %v4122
        %v4198 = vpop.f32.mrf.mxu0
        %v4199 = vadd.f32 0.0, %v4198
        %v4200 = vpop.f32.mrf.mxu0
        %v4201 = vadd.f32 0.0, %v4200
        %4202 = vmatmul.bf16.gmra.mxu0 %v4125
        %v4203 = vpop.f32.mrf.mxu0
        %v4204 = vadd.f32 0.0, %v4203
        %v4205 = vpop.f32.mrf.mxu0
        %v4206 = vadd.f32 0.0, %v4205
        %4207 = vmatmul.bf16.gmra.mxu0 %v4128
        %v4208 = vpop.f32.mrf.mxu0
        %v4209 = vadd.f32 0.0, %v4208
        %v4210 = vpop.f32.mrf.mxu0
        %v4211 = vadd.f32 0.0, %v4210
        %4212 = vmatmul.bf16.gmra.mxu0 %v4131
        %v4213 = vpop.f32.mrf.mxu0
        %v4214 = vadd.f32 0.0, %v4213
        %v4215 = vpop.f32.mrf.mxu0
        %v4216 = vadd.f32 0.0, %v4215
        %4217 = vmatmul.bf16.gmra.mxu0 %v4134
        %v4218 = vpop.f32.mrf.mxu0
        %v4219 = vadd.f32 0.0, %v4218
        %v4220 = vpop.f32.mrf.mxu0
        %v4221 = vadd.f32 0.0, %v4220
        %4222 = vmatmul.bf16.gmra.mxu0 %v4137
        %v4223 = vpop.f32.mrf.mxu0
        %v4224 = vadd.f32 0.0, %v4223
        %v4225 = vpop.f32.mrf.mxu0
        %v4226 = vadd.f32 0.0, %v4225
        %4227 = vdwg.mxu0
        %v4228 = vld [vmem:[%s9] sm:$0x1]
        %v4229 = vld [vmem:[%s10] sm:$0x1]
        %v4230 = vsel %vm3823, %v4149, 0.0
        %v4231 = vsel %vm3823, %v4151, 0.0
        %v4232 = vadd.f32 %v4230, %v4231
        %v4233 = vsel %vm3823, %v4154, 0.0
        %v4234 = vadd.f32 %v4232, %v4233
        %v4235 = vsel %vm3823, %v4156, 0.0
        %v4236 = vadd.f32 %v4234, %v4235
        %v4237 = vsel %vm3823, %v4159, 0.0
        %v4238 = vadd.f32 %v4236, %v4237
        %v4239 = vsel %vm3823, %v4161, 0.0
        %v4240 = vadd.f32 %v4238, %v4239
        %v4241 = vsel %vm3823, %v4164, 0.0
        %v4242 = vadd.f32 %v4240, %v4241
        %v4243 = vsel %vm3823, %v4166, 0.0
        %v4244 = vadd.f32 %v4242, %v4243
        %v4245 = vsel %vm3823, %v4169, 0.0
        %v4246 = vadd.f32 %v4244, %v4245
        %v4247 = vsel %vm3823, %v4171, 0.0
        %v4248 = vadd.f32 %v4246, %v4247
        %v4249 = vsel %vm3823, %v4174, 0.0
        %v4250 = vadd.f32 %v4248, %v4249
        %v4251 = vsel %vm3823, %v4176, 0.0
        %v4252 = vadd.f32 %v4250, %v4251
        %v4253 = vsel %vm3823, %v4179, 0.0
        %v4254 = vadd.f32 %v4252, %v4253
        %v4255 = vsel %vm3823, %v4181, 0.0
        %v4256 = vadd.f32 %v4254, %v4255
        %v4257 = vsel %vm3823, %v4184, 0.0
        %v4258 = vadd.f32 %v4256, %v4257
        %v4259 = vsel %vm3823, %v4186, 0.0
        %v4260 = vadd.f32 %v4258, %v4259
        %v4261 = vsel %vm3823, %v4189, 0.0
        %v4262 = vadd.f32 %v4260, %v4261
        %v4263 = vsel %vm3823, %v4191, 0.0
        %v4264 = vadd.f32 %v4262, %v4263
        %v4265 = vsel %vm3823, %v4194, 0.0
        %v4266 = vadd.f32 %v4264, %v4265
        %v4267 = vsel %vm3823, %v4196, 0.0
        %v4268 = vadd.f32 %v4266, %v4267
        %v4269 = vsel %vm3823, %v4199, 0.0
        %v4270 = vadd.f32 %v4268, %v4269
        %v4271 = vsel %vm3823, %v4201, 0.0
        %v4272 = vadd.f32 %v4270, %v4271
        %v4273 = vsel %vm3823, %v4204, 0.0
        %v4274 = vadd.f32 %v4272, %v4273
        %v4275 = vsel %vm3823, %v4206, 0.0
        %v4276 = vadd.f32 %v4274, %v4275
        %v4277 = vsel %vm3823, %v4209, 0.0
        %v4278 = vadd.f32 %v4276, %v4277
        %v4279 = vsel %vm3823, %v4211, 0.0
        %v4280 = vadd.f32 %v4278, %v4279
        %v4281 = vsel %vm3823, %v4214, 0.0
        %v4282 = vadd.f32 %v4280, %v4281
        %v4283 = vsel %vm3823, %v4216, 0.0
        %v4284 = vadd.f32 %v4282, %v4283
        %v4285 = vsel %vm3823, %v4219, 0.0
        %v4286 = vadd.f32 %v4284, %v4285
        %v4287 = vsel %vm3823, %v4221, 0.0
        %v4288 = vadd.f32 %v4286, %v4287
        %v4289 = vsel %vm3823, %v4224, 0.0
        %v4290 = vadd.f32 %v4288, %v4289
        %v4291 = vsel %vm3823, %v4226, 0.0
        %v4292 = vadd.f32 %v4290, %v4291
        %v4293 = vrot.slane %v4292, 4
        %v4294 = vadd.f32 %v4292, %v4293
        %v4295 = vrot.slane %v4294, 2
        %v4296 = vadd.f32 %v4294, %v4295
        %v4297 = vrot.slane %v4296, 1
        %v4298 = vadd.f32 %v4296, %v4297
        %v4299 = vmul.f32 %v4149, %v4149
        %v4300 = vmul.f32 %v4151, %v4151
        %v4301 = vmul.f32 %v4154, %v4154
        %v4302 = vmul.f32 %v4156, %v4156
        %v4303 = vmul.f32 %v4159, %v4159
        %v4304 = vmul.f32 %v4161, %v4161
        %v4305 = vmul.f32 %v4164, %v4164
        %v4306 = vmul.f32 %v4166, %v4166
        %v4307 = vmul.f32 %v4169, %v4169
        %v4308 = vmul.f32 %v4171, %v4171
        %v4309 = vmul.f32 %v4174, %v4174
        %v4310 = vmul.f32 %v4176, %v4176
        %v4311 = vmul.f32 %v4179, %v4179
        %v4312 = vmul.f32 %v4181, %v4181
        %v4313 = vmul.f32 %v4184, %v4184
        %v4314 = vmul.f32 %v4186, %v4186
        %v4315 = vmul.f32 %v4189, %v4189
        %v4316 = vmul.f32 %v4191, %v4191
        %v4317 = vmul.f32 %v4194, %v4194
        %v4318 = vmul.f32 %v4196, %v4196
        %v4319 = vmul.f32 %v4199, %v4199
        %v4320 = vmul.f32 %v4201, %v4201
        %v4321 = vmul.f32 %v4204, %v4204
        %v4322 = vmul.f32 %v4206, %v4206
        %v4323 = vmul.f32 %v4209, %v4209
        %v4324 = vmul.f32 %v4211, %v4211
        %v4325 = vmul.f32 %v4214, %v4214
        %v4326 = vmul.f32 %v4216, %v4216
        %v4327 = vmul.f32 %v4219, %v4219
        %v4328 = vmul.f32 %v4221, %v4221
        %v4329 = vmul.f32 %v4224, %v4224
        %v4330 = vmul.f32 %v4226, %v4226
        %v4331 = vsel %vm3823, %v4299, 0.0
        %v4332 = vsel %vm3823, %v4300, 0.0
        %v4333 = vadd.f32 %v4331, %v4332
        %v4334 = vsel %vm3823, %v4301, 0.0
        %v4335 = vadd.f32 %v4333, %v4334
        %v4336 = vsel %vm3823, %v4302, 0.0
        %v4337 = vadd.f32 %v4335, %v4336
        %v4338 = vsel %vm3823, %v4303, 0.0
        %v4339 = vadd.f32 %v4337, %v4338
        %v4340 = vsel %vm3823, %v4304, 0.0
        %v4341 = vadd.f32 %v4339, %v4340
        %v4342 = vsel %vm3823, %v4305, 0.0
        %v4343 = vadd.f32 %v4341, %v4342
        %v4344 = vsel %vm3823, %v4306, 0.0
        %v4345 = vadd.f32 %v4343, %v4344
        %v4346 = vsel %vm3823, %v4307, 0.0
        %v4347 = vadd.f32 %v4345, %v4346
        %v4348 = vsel %vm3823, %v4308, 0.0
        %v4349 = vadd.f32 %v4347, %v4348
        %v4350 = vsel %vm3823, %v4309, 0.0
        %v4351 = vadd.f32 %v4349, %v4350
        %v4352 = vsel %vm3823, %v4310, 0.0
        %v4353 = vadd.f32 %v4351, %v4352
        %v4354 = vsel %vm3823, %v4311, 0.0
        %v4355 = vadd.f32 %v4353, %v4354
        %v4356 = vsel %vm3823, %v4312, 0.0
        %v4357 = vadd.f32 %v4355, %v4356
        %v4358 = vsel %vm3823, %v4313, 0.0
        %v4359 = vadd.f32 %v4357, %v4358
        %v4360 = vsel %vm3823, %v4314, 0.0
        %v4361 = vadd.f32 %v4359, %v4360
        %v4362 = vsel %vm3823, %v4315, 0.0
        %v4363 = vadd.f32 %v4361, %v4362
        %v4364 = vsel %vm3823, %v4316, 0.0
        %v4365 = vadd.f32 %v4363, %v4364
        %v4366 = vsel %vm3823, %v4317, 0.0
        %v4367 = vadd.f32 %v4365, %v4366
        %v4368 = vsel %vm3823, %v4318, 0.0
        %v4369 = vadd.f32 %v4367, %v4368
        %v4370 = vsel %vm3823, %v4319, 0.0
        %v4371 = vadd.f32 %v4369, %v4370
        %v4372 = vsel %vm3823, %v4320, 0.0
        %v4373 = vadd.f32 %v4371, %v4372
        %v4374 = vsel %vm3823, %v4321, 0.0
        %v4375 = vadd.f32 %v4373, %v4374
        %v4376 = vsel %vm3823, %v4322, 0.0
        %v4377 = vadd.f32 %v4375, %v4376
        %v4378 = vsel %vm3823, %v4323, 0.0
        %v4379 = vadd.f32 %v4377, %v4378
        %v4380 = vsel %vm3823, %v4324, 0.0
        %v4381 = vadd.f32 %v4379, %v4380
        %v4382 = vsel %vm3823, %v4325, 0.0
        %v4383 = vadd.f32 %v4381, %v4382
        %v4384 = vsel %vm3823, %v4326, 0.0
        %v4385 = vadd.f32 %v4383, %v4384
        %v4386 = vsel %vm3823, %v4327, 0.0
        %v4387 = vadd.f32 %v4385, %v4386
        %v4388 = vsel %vm3823, %v4328, 0.0
        %v4389 = vadd.f32 %v4387, %v4388
        %v4390 = vsel %vm3823, %v4329, 0.0
        %v4391 = vadd.f32 %v4389, %v4390
        %v4392 = vsel %vm3823, %v4330, 0.0
        %v4393 = vadd.f32 %v4391, %v4392
        %v4394 = vrot.slane %v4393, 4
        %v4395 = vadd.f32 %v4393, %v4394
        %v4396 = vrot.slane %v4395, 2
        %v4397 = vadd.f32 %v4395, %v4396
        %v4398 = vrot.slane %v4397, 1
        %v4399 = vadd.f32 %v4397, %v4398
        %v4400 = vmul.f32 %v4298, 0.00390625
        %v4401 = vmul.f32 %v4399, 0.00390625
        %v4402 = vmul.f32 %v4400, %v4400
        %v4403 = vsub.f32 %v4401, %v4402
        %v4404 = vmax.f32 %v4403, 0.0
        %v4405 = vadd.f32 %v4404, 1e-05
        %v4406 = vrsqrt.pop %v4405
        %v4407 = vmul.f32 %v4406, %v4405
        %v4408 = vmul.f32 %v4407, %v4406
        %v4409 = vmul.f32 0.5, %v4408
        %v4410 = vsub.f32 1.5, %v4409
        %v4411 = vmul.f32 %v4406, %v4410
        %vm4412 = vweird.f32 %v4405
        %vm4413 = vweird.f32 %v4406
        %vm4414 = vmor %vm4412, %vm4413
        %v4415 = vsel %vm4414, %v4406, %v4411
        %v4416 = vmul.f32 %v4228, %v4415
        %v4417 = vmul.f32 %v4400, %v4416
        %v4418 = vsub.f32 %v4229, %v4417
        %v4420 = vperm.slane %v4416, 0
        %v4422 = vmul.f32 %v4149, %v4420
        %v4423 = vmul.f32 %v4151, %v4420
        %v4424 = vmul.f32 %v4154, %v4420
        %v4425 = vmul.f32 %v4156, %v4420
        %v4426 = vmul.f32 %v4159, %v4420
        %v4427 = vmul.f32 %v4161, %v4420
        %v4428 = vmul.f32 %v4164, %v4420
        %v4429 = vmul.f32 %v4166, %v4420
        %v4430 = vmul.f32 %v4169, %v4420
        %v4431 = vmul.f32 %v4171, %v4420
        %v4432 = vmul.f32 %v4174, %v4420
        %v4433 = vmul.f32 %v4176, %v4420
        %v4434 = vmul.f32 %v4179, %v4420
        %v4435 = vmul.f32 %v4181, %v4420
        %v4436 = vmul.f32 %v4184, %v4420
        %v4437 = vmul.f32 %v4186, %v4420
        %v4438 = vmul.f32 %v4189, %v4420
        %v4439 = vmul.f32 %v4191, %v4420
        %v4440 = vmul.f32 %v4194, %v4420
        %v4441 = vmul.f32 %v4196, %v4420
        %v4442 = vmul.f32 %v4199, %v4420
        %v4443 = vmul.f32 %v4201, %v4420
        %v4444 = vmul.f32 %v4204, %v4420
        %v4445 = vmul.f32 %v4206, %v4420
        %v4446 = vmul.f32 %v4209, %v4420
        %v4447 = vmul.f32 %v4211, %v4420
        %v4448 = vmul.f32 %v4214, %v4420
        %v4449 = vmul.f32 %v4216, %v4420
        %v4450 = vmul.f32 %v4219, %v4420
        %v4451 = vmul.f32 %v4221, %v4420
        %v4452 = vmul.f32 %v4224, %v4420
        %v4453 = vmul.f32 %v4226, %v4420
        %v4455 = vperm.slane %v4418, 0
        %v4457 = vadd.f32 %v4422, %v4455
        %v4458 = vadd.f32 %v4423, %v4455
        %v4459 = vadd.f32 %v4424, %v4455
        %v4460 = vadd.f32 %v4425, %v4455
        %v4461 = vadd.f32 %v4426, %v4455
        %v4462 = vadd.f32 %v4427, %v4455
        %v4463 = vadd.f32 %v4428, %v4455
        %v4464 = vadd.f32 %v4429, %v4455
        %v4465 = vadd.f32 %v4430, %v4455
        %v4466 = vadd.f32 %v4431, %v4455
        %v4467 = vadd.f32 %v4432, %v4455
        %v4468 = vadd.f32 %v4433, %v4455
        %v4469 = vadd.f32 %v4434, %v4455
        %v4470 = vadd.f32 %v4435, %v4455
        %v4471 = vadd.f32 %v4436, %v4455
        %v4472 = vadd.f32 %v4437, %v4455
        %v4473 = vadd.f32 %v4438, %v4455
        %v4474 = vadd.f32 %v4439, %v4455
        %v4475 = vadd.f32 %v4440, %v4455
        %v4476 = vadd.f32 %v4441, %v4455
        %v4477 = vadd.f32 %v4442, %v4455
        %v4478 = vadd.f32 %v4443, %v4455
        %v4479 = vadd.f32 %v4444, %v4455
        %v4480 = vadd.f32 %v4445, %v4455
        %v4481 = vadd.f32 %v4446, %v4455
        %v4482 = vadd.f32 %v4447, %v4455
        %v4483 = vadd.f32 %v4448, %v4455
        %v4484 = vadd.f32 %v4449, %v4455
        %v4485 = vadd.f32 %v4450, %v4455
        %v4486 = vadd.f32 %v4451, %v4455
        %v4487 = vadd.f32 %v4452, %v4455
        %v4488 = vadd.f32 %v4453, %v4455
        %v4489 = vadd.f32 %v4457, %v4051
        %v4490 = vadd.f32 %v4458, %v4052
        %v4491 = vadd.f32 %v4459, %v4053
        %v4492 = vadd.f32 %v4460, %v4054
        %v4493 = vadd.f32 %v4461, %v4055
        %v4494 = vadd.f32 %v4462, %v4056
        %v4495 = vadd.f32 %v4463, %v4057
        %v4496 = vadd.f32 %v4464, %v4058
        %v4497 = vadd.f32 %v4465, %v4059
        %v4498 = vadd.f32 %v4466, %v4060
        %v4499 = vadd.f32 %v4467, %v4061
        %v4500 = vadd.f32 %v4468, %v4062
        %v4501 = vadd.f32 %v4469, %v4063
        %v4502 = vadd.f32 %v4470, %v4064
        %v4503 = vadd.f32 %v4471, %v4065
        %v4504 = vadd.f32 %v4472, %v4066
        %v4505 = vadd.f32 %v4473, %v4067
        %v4506 = vadd.f32 %v4474, %v4068
        %v4507 = vadd.f32 %v4475, %v4069
        %v4508 = vadd.f32 %v4476, %v4070
        %v4509 = vadd.f32 %v4477, %v4071
        %v4510 = vadd.f32 %v4478, %v4072
        %v4511 = vadd.f32 %v4479, %v4073
        %v4512 = vadd.f32 %v4480, %v4074
        %v4513 = vadd.f32 %v4481, %v4075
        %v4514 = vadd.f32 %v4482, %v4076
        %v4515 = vadd.f32 %v4483, %v4077
        %v4516 = vadd.f32 %v4484, %v4078
        %v4517 = vadd.f32 %v4485, %v4079
        %v4518 = vadd.f32 %v4486, %v4080
        %v4519 = vadd.f32 %v4487, %v4081
        %v4520 = vadd.f32 %v4488, %v4082
        %v4521 = vmax.f32 %v4489, 0.0
        %v4522 = vmax.f32 %v4490, 0.0
        %v4523 = vmax.f32 %v4491, 0.0
        %v4524 = vmax.f32 %v4492, 0.0
        %v4525 = vmax.f32 %v4493, 0.0
        %v4526 = vmax.f32 %v4494, 0.0
        %v4527 = vmax.f32 %v4495, 0.0
        %v4528 = vmax.f32 %v4496, 0.0
        %v4529 = vmax.f32 %v4497, 0.0
        %v4530 = vmax.f32 %v4498, 0.0
        %v4531 = vmax.f32 %v4499, 0.0
        %v4532 = vmax.f32 %v4500, 0.0
        %v4533 = vmax.f32 %v4501, 0.0
        %v4534 = vmax.f32 %v4502, 0.0
        %v4535 = vmax.f32 %v4503, 0.0
        %v4536 = vmax.f32 %v4504, 0.0
        %v4537 = vmax.f32 %v4505, 0.0
        %v4538 = vmax.f32 %v4506, 0.0
        %v4539 = vmax.f32 %v4507, 0.0
        %v4540 = vmax.f32 %v4508, 0.0
        %v4541 = vmax.f32 %v4509, 0.0
        %v4542 = vmax.f32 %v4510, 0.0
        %v4543 = vmax.f32 %v4511, 0.0
        %v4544 = vmax.f32 %v4512, 0.0
        %v4545 = vmax.f32 %v4513, 0.0
        %v4546 = vmax.f32 %v4514, 0.0
        %v4547 = vmax.f32 %v4515, 0.0
        %v4548 = vmax.f32 %v4516, 0.0
        %v4549 = vmax.f32 %v4517, 0.0
        %v4550 = vmax.f32 %v4518, 0.0
        %v4551 = vmax.f32 %v4519, 0.0
        %v4552 = vmax.f32 %v4520, 0.0
        %4553 = vst.msk [vmem:[%s460] sm:$0xff] %vm3823, %v4521
        %4554 = vst.msk [vmem:[%s460 + $0x8] sm:$0xff] %vm3823, %v4522
        %4555 = vst.msk [vmem:[%s460 + $0x10] sm:$0xff] %vm3823, %v4523
        %4556 = vst.msk [vmem:[%s460 + $0x18] sm:$0xff] %vm3823, %v4524
        %4557 = vst.msk [vmem:[%s460 + $0x20] sm:$0xff] %vm3823, %v4525
        %4558 = vst.msk [vmem:[%s460 + $0x28] sm:$0xff] %vm3823, %v4526
        %4559 = vst.msk [vmem:[%s460 + $0x30] sm:$0xff] %vm3823, %v4527
        %4560 = vst.msk [vmem:[%s460 + $0x38] sm:$0xff] %vm3823, %v4528
        %4561 = vst.msk [vmem:[%s460 + $0x40] sm:$0xff] %vm3823, %v4529
        %4562 = vst.msk [vmem:[%s460 + $0x48] sm:$0xff] %vm3823, %v4530
        %4563 = vst.msk [vmem:[%s460 + $0x50] sm:$0xff] %vm3823, %v4531
        %4564 = vst.msk [vmem:[%s460 + $0x58] sm:$0xff] %vm3823, %v4532
        %4565 = vst.msk [vmem:[%s460 + $0x60] sm:$0xff] %vm3823, %v4533
        %4566 = vst.msk [vmem:[%s460 + $0x68] sm:$0xff] %vm3823, %v4534
        %4567 = vst.msk [vmem:[%s460 + $0x70] sm:$0xff] %vm3823, %v4535
        %4568 = vst.msk [vmem:[%s460 + $0x78] sm:$0xff] %vm3823, %v4536
        %4569 = vst.msk [vmem:[%s460 + $0x80] sm:$0xff] %vm3823, %v4537
        %4570 = vst.msk [vmem:[%s460 + $0x88] sm:$0xff] %vm3823, %v4538
        %4571 = vst.msk [vmem:[%s460 + $0x90] sm:$0xff] %vm3823, %v4539
        %4572 = vst.msk [vmem:[%s460 + $0x98] sm:$0xff] %vm3823, %v4540
        %4573 = vst.msk [vmem:[%s460 + $0xa0] sm:$0xff] %vm3823, %v4541
        %4574 = vst.msk [vmem:[%s460 + $0xa8] sm:$0xff] %vm3823, %v4542
        %4575 = vst.msk [vmem:[%s460 + $0xb0] sm:$0xff] %vm3823, %v4543
        %4576 = vst.msk [vmem:[%s460 + $0xb8] sm:$0xff] %vm3823, %v4544
        %4577 = vst.msk [vmem:[%s460 + $0xc0] sm:$0xff] %vm3823, %v4545
        %4578 = vst.msk [vmem:[%s460 + $0xc8] sm:$0xff] %vm3823, %v4546
        %4579 = vst.msk [vmem:[%s460 + $0xd0] sm:$0xff] %vm3823, %v4547
        %4580 = vst.msk [vmem:[%s460 + $0xd8] sm:$0xff] %vm3823, %v4548
        %4581 = vst.msk [vmem:[%s460 + $0xe0] sm:$0xff] %vm3823, %v4549
        %4582 = vst.msk [vmem:[%s460 + $0xe8] sm:$0xff] %vm3823, %v4550
        %4583 = vst.msk [vmem:[%s460 + $0xf0] sm:$0xff] %vm3823, %v4551
        %4584 = vst.msk [vmem:[%s460 + $0xf8] sm:$0xff] %vm3823, %v4552
        %s4585 = sand.u32 %s335, 1
        %s4586 = scalar_lea.sflag [#allocation4], %s4585
        %s4587 = sand.u32 %s335, 1
        %s4588 = smul.addr %s4587, 256
        %s4589 = scalar_lea.vmem [#allocation3], %s4588
        // Predicated region
        $region77: #{bottleneck_forward.1} parent=75 // pred_check
          %p4590 = pneg %p345
        $region78: #{bottleneck_forward.1} parent=75 // pred_check_branch
          %4592 = sbr.rel (%p4590) target = $region80
        $region79: #{bottleneck_forward.1} parent=75 // pred_region
          %4594 = vsyncadd %s4586, 0
          %s4595 = smul.addr %s28, 32
          %s4596 = smul.addr %s4595, 8
          %s4597 = scalar_lea.hbm %s14, %s4596
          %s4598 = sshll.u32 %s4589, 4
          %s4599 = int_to_ptr.vmem [resolvable:$true] %s4598
          %s4600 = sshll.u32 %s4597, 4
          %s4601 = int_to_ptr.hbm [resolvable:$true] %s4600
          %4606 = dma.vmem_to_hbm [thread:$0]  %s4599, 4096, %s4601, %s4586, 128, 128, 8
        $region80: #{bottleneck_forward.1} parent=75 // pred_fallthru
          _
      $region76: #{bottleneck_forward.1} parent=5 // pred_fallthru
        _
      %p4607 = scmp.le.s32.totalorder 2, %s23
      // Predicated region
      $region81: #{bottleneck_forward.1} parent=5 // pred_check
        %p4608 = pneg %p4607
      $region82: #{bottleneck_forward.1} parent=5 // pred_check_branch
        %4610 = sbr.rel (%p4608) target = $region84
      $region83: #{bottleneck_forward.1} parent=5 // pred_region
        %s4611 = ssub.s32 %s23, 2
        // Predicated region
        $region85: #{bottleneck_forward.1} parent=83 // pred_check
          %p4612 = pneg %p351
        $region86: #{bottleneck_forward.1} parent=83 // pred_check_branch
          %4614 = sbr.rel (%p4612) target = $region88
        $region87: #{bottleneck_forward.1} parent=83 // pred_region
          %s4615 = sand.u32 %s336, 1
          %s4616 = scalar_lea.sflag [#allocation4], %s4615
          %s4617 = sand.u32 %s336, 1
          %s4618 = smul.addr %s4617, 256
          %s4619 = scalar_lea.vmem [#allocation3], %s4618
          %4621 = dma.done %s4616, 4096
        $region88: #{bottleneck_forward.1} parent=83 // pred_fallthru
          _
      $region84: #{bottleneck_forward.1} parent=5 // pred_fallthru
        _
    $region6: #{bottleneck_forward.1} parent=1 // loop_footer
      %s27 = sadd.s32 1, %s23
    $region7: #{bottleneck_forward.1} parent=1 // loop_footer_branch
      %22 = sbr.rel target = $region3
    $region8: #{bottleneck_forward.1} parent=1 // loop_exit
      _
    %4622 = vsyncpa [#allocation4], 1
    %s4623 = scalar_lea.sflag [#allocation4], 1
    %4624 = vsyncpa %s4623, 1

</llo_original>
